<compile_context>
chip_gen: v6e
topology: v6e:2x2x1
jax: 0.10.0
libtpu: 0.0.40
codegen_flags: <defaults>
</compile_context>

<pallas_src>
import functools

import jax
import jax.numpy as jnp
from jax import lax
from jax.experimental import pallas as pl
from jax.experimental.pallas import tpu as pltpu

BN_EPS = 1e-5
NEG_BIG = -1e30  # finite "-inf" for masking padded lanes in log_softmax


def _round_up(v, m=128):
    return ((v + m - 1) // m) * m


# ----------------------------- fused kernel --------------------------------

def fused_kernel(x_ref,
                 w1_ref, b1_ref,
                 w2_ref, b2_ref,
                 w3_ref, b3_ref,
                 w4_ref, b4_ref,
                 pw_ref, adj_ref,
                 alpha_ref, pb_ref,
                 out_ref, *, K, C):
    """bf16 MLP (BN folded) -> K-hop gated propagation -> masked log_softmax, all in VMEM."""
    alpha = alpha_ref[0, 0]   # PReLU slope (SMEM scalar)
    pb = pb_ref[0, 0]         # proj bias   (SMEM scalar)

    def prelu_bf16(h):
        # PReLU in f32, then narrow to bf16 for the next MXU matmul.
        return jnp.where(h >= 0.0, h, alpha * h).astype(jnp.bfloat16)

    # ---- FeedForwardNetIII (eval mode, BN folded). bf16 operands, f32 accumulation. ----
    h = jnp.dot(x_ref[...], w1_ref[...], preferred_element_type=jnp.float32) + b1_ref[...]
    h = prelu_bf16(h)
    h = jnp.dot(h, w2_ref[...], preferred_element_type=jnp.float32) + b2_ref[...]
    h = prelu_bf16(h)
    h = jnp.dot(h, w3_ref[...], preferred_element_type=jnp.float32) + b3_ref[...]
    h = prelu_bf16(h)
    h = jnp.dot(h, w4_ref[...], preferred_element_type=jnp.float32) + b4_ref[...]
    # h: [N, CP] f32; lanes >= C are exactly zero (w4/b4 zero-padded).

    adj = adj_ref[...]                                   # bf16 normalized adjacency, A[dst, src]
    pw_b = jnp.broadcast_to(pw_ref[...], h.shape)        # hoisted: broadcast proj_w once, not per hop

    def gated(xk):
        score = jnp.sum(xk * pw_b, axis=1, keepdims=True) + pb       # XLU lane reduce
        e = jnp.exp(jnp.minimum(-score, 30.0))                       # EUP exp; clamp avoids inf
        gate = pl.reciprocal(1.0 + e, approx=True)                   # sigmoid via EUP reciprocal
        return gate * xk

    def hop(_, carry):
        xk, acc = carry
        xk = jnp.dot(adj, xk.astype(jnp.bfloat16), preferred_element_type=jnp.float32)
        return xk, acc + gated(xk)

    # hop 0 (pre-propagation features) + K adjacency hops; K is small and static.
    _, acc = lax.fori_loop(0, K, hop, (h, gated(h)), unroll=True)

    # ---- log_softmax over the first C (real) lanes only ----
    col = lax.broadcasted_iota(jnp.int32, acc.shape, 1)
    masked = jnp.where(col < C, acc, jnp.float32(NEG_BIG))
    m = jnp.max(masked, axis=1, keepdims=True)
    z = masked - m
    lse = jnp.log(jnp.sum(jnp.exp(z), axis=1, keepdims=True))
    out_ref[...] = z - lse             # padded lanes hold garbage (~NEG_BIG); sliced off outside


# ----------------------------- wrapper ------------------------------------

@functools.partial(jax.jit, static_argnames=("K",))
def appnp_air_forward(x, adj, params, K):
    N, F = x.shape
    H = params["w1"].shape[1]
    C = params["w4"].shape[1]
    FP, HP, CP = _round_up(F), _round_up(H), _round_up(C)   # lane-dense feature/hidden/class dims

    # --- host-side prep (jitted, cached): fold BN into Linears (f32), pad, cast to bf16 ---
    def fold_bn(w, b, bn):
        gamma, beta, mean, var = bn[0], bn[1], bn[2], bn[3]
        scale = gamma * lax.rsqrt(var + BN_EPS)
        return w * scale[None, :], (b - mean[None, :]) * scale[None, :] + beta[None, :]

    w1, b1 = fold_bn(params["w1"], params["b1"], params["bn1"])
    w2, b2 = fold_bn(params["w2"], params["b2"], params["bn2"])
    w3, b3 = fold_bn(params["w3"], params["b3"], params["bn3"])

    # Zero padding is semantics-preserving: padded activations stay exactly 0 through
    # Linear (+0 bias) and PReLU(0) = 0, and padded class lanes are masked in log_softmax.
    w1p = jnp.pad(w1, ((0, FP - F), (0, HP - H))).astype(jnp.bfloat16)
    b1p = jnp.pad(b1, ((0, 0), (0, HP - H)))
    w2p = jnp.pad(w2, ((0, HP - H), (0, HP - H))).astype(jnp.bfloat16)
    b2p = jnp.pad(b2, ((0, 0), (0, HP - H)))
    w3p = jnp.pad(w3, ((0, HP - H), (0, HP - H))).astype(jnp.bfloat16)
    b3p = jnp.pad(b3, ((0, 0), (0, HP - H)))
    w4p = jnp.pad(params["w4"], ((0, HP - H), (0, CP - C))).astype(jnp.bfloat16)
    b4p = jnp.pad(params["b4"], ((0, 0), (0, CP - C)))
    pwp = jnp.pad(params["proj_w"], ((0, 0), (0, CP - C)))        # [1, CP] f32, zero padded lanes

    xp = jnp.pad(x, ((0, 0), (0, FP - F))).astype(jnp.bfloat16)
    adj_bf16 = adj.astype(jnp.bfloat16)

    vmem = pl.BlockSpec(memory_space=pltpu.MemorySpace.VMEM)
    smem = pl.BlockSpec(memory_space=pltpu.MemorySpace.SMEM)

    out_padded = pl.pallas_call(
        functools.partial(fused_kernel, K=K, C=C),
        out_shape=jax.ShapeDtypeStruct((N, CP), jnp.float32),
        in_specs=[vmem] * 11 + [smem, smem],
        out_specs=vmem,
        compiler_params=pltpu.CompilerParams(vmem_limit_bytes=48 * 1024 * 1024),
    )(xp,
      w1p, b1p, w2p, b2p, w3p, b3p, w4p, b4p,
      pwp, adj_bf16,
      params["prelu"], params["proj_b"])

    return out_padded[:, :C]


# ------------------------ deterministic setup ------------------------------

def init_params(key, F, H, C):
    ks = jax.random.split(key, 12)

    def lin(kw, kb, fan_in, fan_out):
        bound = 1.0 / jnp.sqrt(jnp.float32(fan_in))
        w = jax.random.uniform(kw, (fan_in, fan_out), jnp.float32, -bound, bound)
        b = jax.random.uniform(kb, (1, fan_out), jnp.float32, -bound, bound)
        return w, b

    def bn(k, dim):
        kg, kb, km, kv = jax.random.split(k, 4)
        gamma = jax.random.uniform(kg, (dim,), jnp.float32, 0.5, 1.5)
        beta = jax.random.uniform(kb, (dim,), jnp.float32, -0.1, 0.1)
        mean = jax.random.uniform(km, (dim,), jnp.float32, -0.1, 0.1)
        var = jax.random.uniform(kv, (dim,), jnp.float32, 0.5, 1.5)
        return jnp.stack([gamma, beta, mean, var], axis=0)   # [4, dim]

    w1, b1 = lin(ks[0], ks[1], F, H)
    w2, b2 = lin(ks[2], ks[3], H, H)
    w3, b3 = lin(ks[4], ks[5], H, H)
    w4, b4 = lin(ks[6], ks[7], H, C)
    pw, pb = lin(ks[8], ks[9], C, 1)
    return {
        "w1": w1, "b1": b1, "bn1": bn(ks[10], H),
        "w2": w2, "b2": b2, "bn2": bn(ks[11], H),
        "w3": w3, "b3": b3, "bn3": bn(jax.random.fold_in(key, 101), H),
        "w4": w4, "b4": b4,
        "prelu": jnp.full((1, 1), 0.25, jnp.float32),         # nn.PReLU() default
        "proj_w": pw.T,                                       # stored as [1, C]
        "proj_b": pb.reshape(1, 1),
    }


def build_adjacency(key, N, E):
    """Random graph + self-loops, symmetric GCN-style normalization; A[dst, src] = norm."""
    ks, kd = jax.random.split(key)
    src = jax.random.randint(ks, (E,), 0, N)
    dst = jax.random.randint(kd, (E,), 0, N)
    loops = jnp.arange(N)
    src = jnp.concatenate([src, loops])
    dst = jnp.concatenate([dst, loops])
    deg = jnp.zeros((N,), jnp.float32).at[dst].add(1.0)
    dinv = 1.0 / jnp.sqrt(jnp.maximum(deg, 1.0))
    norm = dinv[src] * dinv[dst]
    adj = jnp.zeros((N, N), jnp.float32).at[dst, src].add(norm)
    return adj


if __name__ == "__main__":
    N, F, H, C, K, E = 128, 32, 64, 10, 8, 512

    key = jax.random.PRNGKey(0)
    k_x, k_g, k_p = jax.random.split(key, 3)

    x = jax.random.normal(k_x, (N, F), jnp.float32)
    adj = build_adjacency(k_g, N, E)
    params = init_params(k_p, F, H, C)

    out = appnp_air_forward(x, adj, params, K=K)
    out = jax.block_until_ready(out)

    assert out.shape == (N, C) and out.dtype == jnp.float32
    assert bool(jnp.all(jnp.isfinite(out)))
    # log_softmax self-consistency: rows of exp(out) sum to 1
    assert bool(jnp.allclose(jnp.sum(jnp.exp(out), axis=1), 1.0, atol=1e-3))

    print("KERNEL_OK")
</pallas_src>

<mosaic_0001>
module attributes {stable_mosaic.version = 11 : i64} {
  func.func @fused_kernel(%arg0: memref<128x128xbf16, #tpu.memory_space<vmem>>, %arg1: memref<128x128xbf16, #tpu.memory_space<vmem>>, %arg2: memref<1x128xf32, #tpu.memory_space<vmem>>, %arg3: memref<128x128xbf16, #tpu.memory_space<vmem>>, %arg4: memref<1x128xf32, #tpu.memory_space<vmem>>, %arg5: memref<128x128xbf16, #tpu.memory_space<vmem>>, %arg6: memref<1x128xf32, #tpu.memory_space<vmem>>, %arg7: memref<128x128xbf16, #tpu.memory_space<vmem>>, %arg8: memref<1x128xf32, #tpu.memory_space<vmem>>, %arg9: memref<1x128xf32, #tpu.memory_space<vmem>>, %arg10: memref<128x128xbf16, #tpu.memory_space<vmem>>, %arg11: memref<1x1xf32, #tpu.memory_space<smem>>, %arg12: memref<1x1xf32, #tpu.memory_space<smem>>, %arg13: memref<128x128xf32, #tpu.memory_space<vmem>>) attributes {dimension_semantics = [], scalar_prefetch = 0 : i64, scratch_operands = 0 : i64, tpu.core_type = #tpu.core_type<tc>} {
    %c0 = arith.constant 0 : index
    %c0_0 = arith.constant 0 : index
    %0 = memref.load %arg11[%c0, %c0_0] : memref<1x1xf32, #tpu.memory_space<smem>>
    %c0_1 = arith.constant 0 : index
    %c0_2 = arith.constant 0 : index
    %1 = memref.load %arg12[%c0_1, %c0_2] : memref<1x1xf32, #tpu.memory_space<smem>>
    %c0_3 = arith.constant 0 : index
    %c0_4 = arith.constant 0 : index
    %2 = vector.load %arg0[%c0_3, %c0_4] : memref<128x128xbf16, #tpu.memory_space<vmem>>, vector<128x128xbf16>
    %c0_5 = arith.constant 0 : index
    %c0_6 = arith.constant 0 : index
    %3 = vector.load %arg1[%c0_5, %c0_6] : memref<128x128xbf16, #tpu.memory_space<vmem>>, vector<128x128xbf16>
    %cst = arith.constant dense<0.000000e+00> : vector<128x128xf32>
    %4 = tpu.matmul %2, %3, %cst {dimension_numbers = #tpu.dot_dimension_numbers<[1], [0], [0], [1], [0, 0, 1, 1], [], []>} : vector<128x128xbf16>, vector<128x128xbf16>, vector<128x128xf32> -> vector<128x128xf32>
    %c0_7 = arith.constant 0 : index
    %c0_8 = arith.constant 0 : index
    %5 = vector.load %arg2[%c0_7, %c0_8] : memref<1x128xf32, #tpu.memory_space<vmem>>, vector<1x128xf32>
    %6 = vector.broadcast %5 : vector<1x128xf32> to vector<128x128xf32>
    %7 = arith.addf %4, %6 : vector<128x128xf32>
    %cst_9 = arith.constant 0.000000e+00 : f32
    %8 = vector.broadcast %cst_9 : f32 to vector<128x128xf32>
    %9 = arith.cmpf oge, %7, %8 : vector<128x128xf32>
    %10 = vector.broadcast %0 : f32 to vector<128x128xf32>
    %11 = arith.mulf %10, %7 : vector<128x128xf32>
    %12 = arith.select %9, %7, %11 : vector<128x128xi1>, vector<128x128xf32>
    %13 = arith.truncf %12 : vector<128x128xf32> to vector<128x128xbf16>
    %c0_10 = arith.constant 0 : index
    %c0_11 = arith.constant 0 : index
    %14 = vector.load %arg3[%c0_10, %c0_11] : memref<128x128xbf16, #tpu.memory_space<vmem>>, vector<128x128xbf16>
    %cst_12 = arith.constant dense<0.000000e+00> : vector<128x128xf32>
    %15 = tpu.matmul %13, %14, %cst_12 {dimension_numbers = #tpu.dot_dimension_numbers<[1], [0], [0], [1], [0, 0, 1, 1], [], []>} : vector<128x128xbf16>, vector<128x128xbf16>, vector<128x128xf32> -> vector<128x128xf32>
    %c0_13 = arith.constant 0 : index
    %c0_14 = arith.constant 0 : index
    %16 = vector.load %arg4[%c0_13, %c0_14] : memref<1x128xf32, #tpu.memory_space<vmem>>, vector<1x128xf32>
    %17 = vector.broadcast %16 : vector<1x128xf32> to vector<128x128xf32>
    %18 = arith.addf %15, %17 : vector<128x128xf32>
    %cst_15 = arith.constant 0.000000e+00 : f32
    %19 = vector.broadcast %cst_15 : f32 to vector<128x128xf32>
    %20 = arith.cmpf oge, %18, %19 : vector<128x128xf32>
    %21 = vector.broadcast %0 : f32 to vector<128x128xf32>
    %22 = arith.mulf %21, %18 : vector<128x128xf32>
    %23 = arith.select %20, %18, %22 : vector<128x128xi1>, vector<128x128xf32>
    %24 = arith.truncf %23 : vector<128x128xf32> to vector<128x128xbf16>
    %c0_16 = arith.constant 0 : index
    %c0_17 = arith.constant 0 : index
    %25 = vector.load %arg5[%c0_16, %c0_17] : memref<128x128xbf16, #tpu.memory_space<vmem>>, vector<128x128xbf16>
    %cst_18 = arith.constant dense<0.000000e+00> : vector<128x128xf32>
    %26 = tpu.matmul %24, %25, %cst_18 {dimension_numbers = #tpu.dot_dimension_numbers<[1], [0], [0], [1], [0, 0, 1, 1], [], []>} : vector<128x128xbf16>, vector<128x128xbf16>, vector<128x128xf32> -> vector<128x128xf32>
    %c0_19 = arith.constant 0 : index
    %c0_20 = arith.constant 0 : index
    %27 = vector.load %arg6[%c0_19, %c0_20] : memref<1x128xf32, #tpu.memory_space<vmem>>, vector<1x128xf32>
    %28 = vector.broadcast %27 : vector<1x128xf32> to vector<128x128xf32>
    %29 = arith.addf %26, %28 : vector<128x128xf32>
    %cst_21 = arith.constant 0.000000e+00 : f32
    %30 = vector.broadcast %cst_21 : f32 to vector<128x128xf32>
    %31 = arith.cmpf oge, %29, %30 : vector<128x128xf32>
    %32 = vector.broadcast %0 : f32 to vector<128x128xf32>
    %33 = arith.mulf %32, %29 : vector<128x128xf32>
    %34 = arith.select %31, %29, %33 : vector<128x128xi1>, vector<128x128xf32>
    %35 = arith.truncf %34 : vector<128x128xf32> to vector<128x128xbf16>
    %c0_22 = arith.constant 0 : index
    %c0_23 = arith.constant 0 : index
    %36 = vector.load %arg7[%c0_22, %c0_23] : memref<128x128xbf16, #tpu.memory_space<vmem>>, vector<128x128xbf16>
    %cst_24 = arith.constant dense<0.000000e+00> : vector<128x128xf32>
    %37 = tpu.matmul %35, %36, %cst_24 {dimension_numbers = #tpu.dot_dimension_numbers<[1], [0], [0], [1], [0, 0, 1, 1], [], []>} : vector<128x128xbf16>, vector<128x128xbf16>, vector<128x128xf32> -> vector<128x128xf32>
    %c0_25 = arith.constant 0 : index
    %c0_26 = arith.constant 0 : index
    %38 = vector.load %arg8[%c0_25, %c0_26] : memref<1x128xf32, #tpu.memory_space<vmem>>, vector<1x128xf32>
    %39 = vector.broadcast %38 : vector<1x128xf32> to vector<128x128xf32>
    %40 = arith.addf %37, %39 : vector<128x128xf32>
    %c0_27 = arith.constant 0 : index
    %c0_28 = arith.constant 0 : index
    %41 = vector.load %arg10[%c0_27, %c0_28] : memref<128x128xbf16, #tpu.memory_space<vmem>>, vector<128x128xbf16>
    %c0_29 = arith.constant 0 : index
    %c0_30 = arith.constant 0 : index
    %42 = vector.load %arg9[%c0_29, %c0_30] : memref<1x128xf32, #tpu.memory_space<vmem>>, vector<1x128xf32>
    %43 = vector.shape_cast %42 : vector<1x128xf32> to vector<1x128xf32>
    %44 = vector.broadcast %43 : vector<1x128xf32> to vector<128x128xf32>
    %45 = arith.mulf %40, %44 : vector<128x128xf32>
    %cst_31 = arith.constant dense<0.000000e+00> : vector<128xf32>
    %46 = vector.multi_reduction <add>, %45, %cst_31 [1] : vector<128x128xf32> to vector<128xf32>
    %47 = vector.shape_cast %46 : vector<128xf32> to vector<128x1xf32>
    %48 = vector.broadcast %1 : f32 to vector<128x1xf32>
    %49 = arith.addf %47, %48 : vector<128x1xf32>
    %cst_32 = arith.constant 0.000000e+00 : f32
    %50 = vector.broadcast %cst_32 : f32 to vector<128x1xf32>
    %51 = arith.subf %50, %49 : vector<128x1xf32>
    %cst_33 = arith.constant 3.000000e+01 : f32
    %52 = vector.broadcast %cst_33 : f32 to vector<128x1xf32>
    %53 = arith.minimumf %51, %52 : vector<128x1xf32>
    %54 = math.exp %53 : vector<128x1xf32>
    %cst_34 = arith.constant 1.000000e+00 : f32
    %55 = vector.broadcast %cst_34 : f32 to vector<128x1xf32>
    %56 = arith.addf %55, %54 : vector<128x1xf32>
    %57 = tpu.reciprocal %56 {approx = true} : vector<128x1xf32> -> vector<128x1xf32>
    %58 = vector.broadcast %57 : vector<128x1xf32> to vector<128x128xf32>
    %59 = arith.mulf %58, %40 : vector<128x128xf32>
    %c0_i32 = arith.constant 0 : i32
    %60 = arith.truncf %40 : vector<128x128xf32> to vector<128x128xbf16>
    %cst_35 = arith.constant dense<0.000000e+00> : vector<128x128xf32>
    %61 = tpu.matmul %41, %60, %cst_35 {dimension_numbers = #tpu.dot_dimension_numbers<[1], [0], [0], [1], [0, 0, 1, 1], [], []>} : vector<128x128xbf16>, vector<128x128xbf16>, vector<128x128xf32> -> vector<128x128xf32>
    %62 = arith.mulf %61, %44 : vector<128x128xf32>
    %cst_36 = arith.constant dense<0.000000e+00> : vector<128xf32>
    %63 = vector.multi_reduction <add>, %62, %cst_36 [1] : vector<128x128xf32> to vector<128xf32>
    %64 = vector.shape_cast %63 : vector<128xf32> to vector<128x1xf32>
    %65 = vector.broadcast %1 : f32 to vector<128x1xf32>
    %66 = arith.addf %64, %65 : vector<128x1xf32>
    %cst_37 = arith.constant 0.000000e+00 : f32
    %67 = vector.broadcast %cst_37 : f32 to vector<128x1xf32>
    %68 = arith.subf %67, %66 : vector<128x1xf32>
    %cst_38 = arith.constant 3.000000e+01 : f32
    %69 = vector.broadcast %cst_38 : f32 to vector<128x1xf32>
    %70 = arith.minimumf %68, %69 : vector<128x1xf32>
    %71 = math.exp %70 : vector<128x1xf32>
    %cst_39 = arith.constant 1.000000e+00 : f32
    %72 = vector.broadcast %cst_39 : f32 to vector<128x1xf32>
    %73 = arith.addf %72, %71 : vector<128x1xf32>
    %74 = tpu.reciprocal %73 {approx = true} : vector<128x1xf32> -> vector<128x1xf32>
    %75 = vector.broadcast %74 : vector<128x1xf32> to vector<128x128xf32>
    %76 = arith.mulf %75, %61 : vector<128x128xf32>
    %77 = arith.addf %59, %76 : vector<128x128xf32>
    %c1_i32 = arith.constant 1 : i32
    %78 = arith.truncf %61 : vector<128x128xf32> to vector<128x128xbf16>
    %cst_40 = arith.constant dense<0.000000e+00> : vector<128x128xf32>
    %79 = tpu.matmul %41, %78, %cst_40 {dimension_numbers = #tpu.dot_dimension_numbers<[1], [0], [0], [1], [0, 0, 1, 1], [], []>} : vector<128x128xbf16>, vector<128x128xbf16>, vector<128x128xf32> -> vector<128x128xf32>
    %80 = arith.mulf %79, %44 : vector<128x128xf32>
    %cst_41 = arith.constant dense<0.000000e+00> : vector<128xf32>
    %81 = vector.multi_reduction <add>, %80, %cst_41 [1] : vector<128x128xf32> to vector<128xf32>
    %82 = vector.shape_cast %81 : vector<128xf32> to vector<128x1xf32>
    %83 = vector.broadcast %1 : f32 to vector<128x1xf32>
    %84 = arith.addf %82, %83 : vector<128x1xf32>
    %cst_42 = arith.constant 0.000000e+00 : f32
    %85 = vector.broadcast %cst_42 : f32 to vector<128x1xf32>
    %86 = arith.subf %85, %84 : vector<128x1xf32>
    %cst_43 = arith.constant 3.000000e+01 : f32
    %87 = vector.broadcast %cst_43 : f32 to vector<128x1xf32>
    %88 = arith.minimumf %86, %87 : vector<128x1xf32>
    %89 = math.exp %88 : vector<128x1xf32>
    %cst_44 = arith.constant 1.000000e+00 : f32
    %90 = vector.broadcast %cst_44 : f32 to vector<128x1xf32>
    %91 = arith.addf %90, %89 : vector<128x1xf32>
    %92 = tpu.reciprocal %91 {approx = true} : vector<128x1xf32> -> vector<128x1xf32>
    %93 = vector.broadcast %92 : vector<128x1xf32> to vector<128x128xf32>
    %94 = arith.mulf %93, %79 : vector<128x128xf32>
    %95 = arith.addf %77, %94 : vector<128x128xf32>
    %c2_i32 = arith.constant 2 : i32
    %96 = arith.truncf %79 : vector<128x128xf32> to vector<128x128xbf16>
    %cst_45 = arith.constant dense<0.000000e+00> : vector<128x128xf32>
    %97 = tpu.matmul %41, %96, %cst_45 {dimension_numbers = #tpu.dot_dimension_numbers<[1], [0], [0], [1], [0, 0, 1, 1], [], []>} : vector<128x128xbf16>, vector<128x128xbf16>, vector<128x128xf32> -> vector<128x128xf32>
    %98 = arith.mulf %97, %44 : vector<128x128xf32>
    %cst_46 = arith.constant dense<0.000000e+00> : vector<128xf32>
    %99 = vector.multi_reduction <add>, %98, %cst_46 [1] : vector<128x128xf32> to vector<128xf32>
    %100 = vector.shape_cast %99 : vector<128xf32> to vector<128x1xf32>
    %101 = vector.broadcast %1 : f32 to vector<128x1xf32>
    %102 = arith.addf %100, %101 : vector<128x1xf32>
    %cst_47 = arith.constant 0.000000e+00 : f32
    %103 = vector.broadcast %cst_47 : f32 to vector<128x1xf32>
    %104 = arith.subf %103, %102 : vector<128x1xf32>
    %cst_48 = arith.constant 3.000000e+01 : f32
    %105 = vector.broadcast %cst_48 : f32 to vector<128x1xf32>
    %106 = arith.minimumf %104, %105 : vector<128x1xf32>
    %107 = math.exp %106 : vector<128x1xf32>
    %cst_49 = arith.constant 1.000000e+00 : f32
    %108 = vector.broadcast %cst_49 : f32 to vector<128x1xf32>
    %109 = arith.addf %108, %107 : vector<128x1xf32>
    %110 = tpu.reciprocal %109 {approx = true} : vector<128x1xf32> -> vector<128x1xf32>
    %111 = vector.broadcast %110 : vector<128x1xf32> to vector<128x128xf32>
    %112 = arith.mulf %111, %97 : vector<128x128xf32>
    %113 = arith.addf %95, %112 : vector<128x128xf32>
    %c3_i32 = arith.constant 3 : i32
    %114 = arith.truncf %97 : vector<128x128xf32> to vector<128x128xbf16>
    %cst_50 = arith.constant dense<0.000000e+00> : vector<128x128xf32>
    %115 = tpu.matmul %41, %114, %cst_50 {dimension_numbers = #tpu.dot_dimension_numbers<[1], [0], [0], [1], [0, 0, 1, 1], [], []>} : vector<128x128xbf16>, vector<128x128xbf16>, vector<128x128xf32> -> vector<128x128xf32>
    %116 = arith.mulf %115, %44 : vector<128x128xf32>
    %cst_51 = arith.constant dense<0.000000e+00> : vector<128xf32>
    %117 = vector.multi_reduction <add>, %116, %cst_51 [1] : vector<128x128xf32> to vector<128xf32>
    %118 = vector.shape_cast %117 : vector<128xf32> to vector<128x1xf32>
    %119 = vector.broadcast %1 : f32 to vector<128x1xf32>
    %120 = arith.addf %118, %119 : vector<128x1xf32>
    %cst_52 = arith.constant 0.000000e+00 : f32
    %121 = vector.broadcast %cst_52 : f32 to vector<128x1xf32>
    %122 = arith.subf %121, %120 : vector<128x1xf32>
    %cst_53 = arith.constant 3.000000e+01 : f32
    %123 = vector.broadcast %cst_53 : f32 to vector<128x1xf32>
    %124 = arith.minimumf %122, %123 : vector<128x1xf32>
    %125 = math.exp %124 : vector<128x1xf32>
    %cst_54 = arith.constant 1.000000e+00 : f32
    %126 = vector.broadcast %cst_54 : f32 to vector<128x1xf32>
    %127 = arith.addf %126, %125 : vector<128x1xf32>
    %128 = tpu.reciprocal %127 {approx = true} : vector<128x1xf32> -> vector<128x1xf32>
    %129 = vector.broadcast %128 : vector<128x1xf32> to vector<128x128xf32>
    %130 = arith.mulf %129, %115 : vector<128x128xf32>
    %131 = arith.addf %113, %130 : vector<128x128xf32>
    %c4_i32 = arith.constant 4 : i32
    %132 = arith.truncf %115 : vector<128x128xf32> to vector<128x128xbf16>
    %cst_55 = arith.constant dense<0.000000e+00> : vector<128x128xf32>
    %133 = tpu.matmul %41, %132, %cst_55 {dimension_numbers = #tpu.dot_dimension_numbers<[1], [0], [0], [1], [0, 0, 1, 1], [], []>} : vector<128x128xbf16>, vector<128x128xbf16>, vector<128x128xf32> -> vector<128x128xf32>
    %134 = arith.mulf %133, %44 : vector<128x128xf32>
    %cst_56 = arith.constant dense<0.000000e+00> : vector<128xf32>
    %135 = vector.multi_reduction <add>, %134, %cst_56 [1] : vector<128x128xf32> to vector<128xf32>
    %136 = vector.shape_cast %135 : vector<128xf32> to vector<128x1xf32>
    %137 = vector.broadcast %1 : f32 to vector<128x1xf32>
    %138 = arith.addf %136, %137 : vector<128x1xf32>
    %cst_57 = arith.constant 0.000000e+00 : f32
    %139 = vector.broadcast %cst_57 : f32 to vector<128x1xf32>
    %140 = arith.subf %139, %138 : vector<128x1xf32>
    %cst_58 = arith.constant 3.000000e+01 : f32
    %141 = vector.broadcast %cst_58 : f32 to vector<128x1xf32>
    %142 = arith.minimumf %140, %141 : vector<128x1xf32>
    %143 = math.exp %142 : vector<128x1xf32>
    %cst_59 = arith.constant 1.000000e+00 : f32
    %144 = vector.broadcast %cst_59 : f32 to vector<128x1xf32>
    %145 = arith.addf %144, %143 : vector<128x1xf32>
    %146 = tpu.reciprocal %145 {approx = true} : vector<128x1xf32> -> vector<128x1xf32>
    %147 = vector.broadcast %146 : vector<128x1xf32> to vector<128x128xf32>
    %148 = arith.mulf %147, %133 : vector<128x128xf32>
    %149 = arith.addf %131, %148 : vector<128x128xf32>
    %c5_i32 = arith.constant 5 : i32
    %150 = arith.truncf %133 : vector<128x128xf32> to vector<128x128xbf16>
    %cst_60 = arith.constant dense<0.000000e+00> : vector<128x128xf32>
    %151 = tpu.matmul %41, %150, %cst_60 {dimension_numbers = #tpu.dot_dimension_numbers<[1], [0], [0], [1], [0, 0, 1, 1], [], []>} : vector<128x128xbf16>, vector<128x128xbf16>, vector<128x128xf32> -> vector<128x128xf32>
    %152 = arith.mulf %151, %44 : vector<128x128xf32>
    %cst_61 = arith.constant dense<0.000000e+00> : vector<128xf32>
    %153 = vector.multi_reduction <add>, %152, %cst_61 [1] : vector<128x128xf32> to vector<128xf32>
    %154 = vector.shape_cast %153 : vector<128xf32> to vector<128x1xf32>
    %155 = vector.broadcast %1 : f32 to vector<128x1xf32>
    %156 = arith.addf %154, %155 : vector<128x1xf32>
    %cst_62 = arith.constant 0.000000e+00 : f32
    %157 = vector.broadcast %cst_62 : f32 to vector<128x1xf32>
    %158 = arith.subf %157, %156 : vector<128x1xf32>
    %cst_63 = arith.constant 3.000000e+01 : f32
    %159 = vector.broadcast %cst_63 : f32 to vector<128x1xf32>
    %160 = arith.minimumf %158, %159 : vector<128x1xf32>
    %161 = math.exp %160 : vector<128x1xf32>
    %cst_64 = arith.constant 1.000000e+00 : f32
    %162 = vector.broadcast %cst_64 : f32 to vector<128x1xf32>
    %163 = arith.addf %162, %161 : vector<128x1xf32>
    %164 = tpu.reciprocal %163 {approx = true} : vector<128x1xf32> -> vector<128x1xf32>
    %165 = vector.broadcast %164 : vector<128x1xf32> to vector<128x128xf32>
    %166 = arith.mulf %165, %151 : vector<128x128xf32>
    %167 = arith.addf %149, %166 : vector<128x128xf32>
    %c6_i32 = arith.constant 6 : i32
    %168 = arith.truncf %151 : vector<128x128xf32> to vector<128x128xbf16>
    %cst_65 = arith.constant dense<0.000000e+00> : vector<128x128xf32>
    %169 = tpu.matmul %41, %168, %cst_65 {dimension_numbers = #tpu.dot_dimension_numbers<[1], [0], [0], [1], [0, 0, 1, 1], [], []>} : vector<128x128xbf16>, vector<128x128xbf16>, vector<128x128xf32> -> vector<128x128xf32>
    %170 = arith.mulf %169, %44 : vector<128x128xf32>
    %cst_66 = arith.constant dense<0.000000e+00> : vector<128xf32>
    %171 = vector.multi_reduction <add>, %170, %cst_66 [1] : vector<128x128xf32> to vector<128xf32>
    %172 = vector.shape_cast %171 : vector<128xf32> to vector<128x1xf32>
    %173 = vector.broadcast %1 : f32 to vector<128x1xf32>
    %174 = arith.addf %172, %173 : vector<128x1xf32>
    %cst_67 = arith.constant 0.000000e+00 : f32
    %175 = vector.broadcast %cst_67 : f32 to vector<128x1xf32>
    %176 = arith.subf %175, %174 : vector<128x1xf32>
    %cst_68 = arith.constant 3.000000e+01 : f32
    %177 = vector.broadcast %cst_68 : f32 to vector<128x1xf32>
    %178 = arith.minimumf %176, %177 : vector<128x1xf32>
    %179 = math.exp %178 : vector<128x1xf32>
    %cst_69 = arith.constant 1.000000e+00 : f32
    %180 = vector.broadcast %cst_69 : f32 to vector<128x1xf32>
    %181 = arith.addf %180, %179 : vector<128x1xf32>
    %182 = tpu.reciprocal %181 {approx = true} : vector<128x1xf32> -> vector<128x1xf32>
    %183 = vector.broadcast %182 : vector<128x1xf32> to vector<128x128xf32>
    %184 = arith.mulf %183, %169 : vector<128x128xf32>
    %185 = arith.addf %167, %184 : vector<128x128xf32>
    %c7_i32 = arith.constant 7 : i32
    %186 = arith.truncf %169 : vector<128x128xf32> to vector<128x128xbf16>
    %cst_70 = arith.constant dense<0.000000e+00> : vector<128x128xf32>
    %187 = tpu.matmul %41, %186, %cst_70 {dimension_numbers = #tpu.dot_dimension_numbers<[1], [0], [0], [1], [0, 0, 1, 1], [], []>} : vector<128x128xbf16>, vector<128x128xbf16>, vector<128x128xf32> -> vector<128x128xf32>
    %188 = arith.mulf %187, %44 : vector<128x128xf32>
    %cst_71 = arith.constant dense<0.000000e+00> : vector<128xf32>
    %189 = vector.multi_reduction <add>, %188, %cst_71 [1] : vector<128x128xf32> to vector<128xf32>
    %190 = vector.shape_cast %189 : vector<128xf32> to vector<128x1xf32>
    %191 = vector.broadcast %1 : f32 to vector<128x1xf32>
    %192 = arith.addf %190, %191 : vector<128x1xf32>
    %cst_72 = arith.constant 0.000000e+00 : f32
    %193 = vector.broadcast %cst_72 : f32 to vector<128x1xf32>
    %194 = arith.subf %193, %192 : vector<128x1xf32>
    %cst_73 = arith.constant 3.000000e+01 : f32
    %195 = vector.broadcast %cst_73 : f32 to vector<128x1xf32>
    %196 = arith.minimumf %194, %195 : vector<128x1xf32>
    %197 = math.exp %196 : vector<128x1xf32>
    %cst_74 = arith.constant 1.000000e+00 : f32
    %198 = vector.broadcast %cst_74 : f32 to vector<128x1xf32>
    %199 = arith.addf %198, %197 : vector<128x1xf32>
    %200 = tpu.reciprocal %199 {approx = true} : vector<128x1xf32> -> vector<128x1xf32>
    %201 = vector.broadcast %200 : vector<128x1xf32> to vector<128x128xf32>
    %202 = arith.mulf %201, %187 : vector<128x128xf32>
    %203 = arith.addf %185, %202 : vector<128x128xf32>
    %204 = tpu.iota {dimensions = array<i32: 1>} : vector<128x128xi32>
    %c10_i32 = arith.constant 10 : i32
    %205 = vector.broadcast %c10_i32 : i32 to vector<128x128xi32>
    %206 = arith.cmpi slt, %204, %205 : vector<128x128xi32>
    %cst_75 = arith.constant -1.000000e+30 : f32
    %207 = vector.broadcast %cst_75 : f32 to vector<128x128xf32>
    %208 = arith.select %206, %203, %207 : vector<128x128xi1>, vector<128x128xf32>
    %cst_76 = arith.constant dense<0xFF800000> : vector<128xf32>
    %209 = vector.multi_reduction <maximumf>, %208, %cst_76 [1] : vector<128x128xf32> to vector<128xf32>
    %210 = vector.shape_cast %209 : vector<128xf32> to vector<128x1xf32>
    %211 = vector.broadcast %210 : vector<128x1xf32> to vector<128x128xf32>
    %212 = arith.subf %208, %211 : vector<128x128xf32>
    %213 = math.exp %212 : vector<128x128xf32>
    %cst_77 = arith.constant dense<0.000000e+00> : vector<128xf32>
    %214 = vector.multi_reduction <add>, %213, %cst_77 [1] : vector<128x128xf32> to vector<128xf32>
    %215 = vector.shape_cast %214 : vector<128xf32> to vector<128x1xf32>
    %216 = math.log %215 : vector<128x1xf32>
    %217 = vector.broadcast %216 : vector<128x1xf32> to vector<128x128xf32>
    %218 = arith.subf %212, %217 : vector<128x128xf32>
    %c0_78 = arith.constant 0 : index
    %c0_79 = arith.constant 0 : index
    %219 = vector.load %arg13[%c0_78, %c0_79] : memref<128x128xf32, #tpu.memory_space<vmem>>, vector<128x128xf32>
    tpu.vector_store %arg13[%c0_78, %c0_79], %218 {strides = array<i32>} : memref<128x128xf32, #tpu.memory_space<vmem>>, vector<128x128xf32>,
    return
  }
}

</mosaic_0001>

<llo_original>
// kernel: appnp_air_forward.1
$region0: #{appnp_air_forward.1}
  #allocation0 [shape = 'u32[]', space=smem, size = 0x4, offset = 0x4, fixed_abs, tag = 'smem constant byte address 0x4 - core index']
  #allocation1 [shape = 'u32[144,128]{1,0:T(1,128)}', space=vmem, size = 0x12000, scoped, tag = 'internal scratch']
  #allocation2 [shape = 'f32[1,1]{1,0:T(1,128)S(6)}', space=smem, size = 0x200, scoped, tag = 'scoped memory for appnp_air_forward.1']
  #allocation3 [shape = 'f32[1,1]{1,0:T(1,128)S(6)}', space=smem, size = 0x200, scoped, tag = 'scoped memory for appnp_air_forward.1']
  %s0 = inlined_call_operand.vmem [shape: bf16[128,128], index: 0, kind: input, shape index: {}]
  %s1 = inlined_call_operand.vmem [shape: bf16[128,128], index: 1, kind: input, shape index: {}]
  %s2 = inlined_call_operand.vmem [shape: f32[1,128], index: 2, kind: input, shape index: {}]
  %s3 = inlined_call_operand.vmem [shape: bf16[128,128], index: 3, kind: input, shape index: {}]
  %s4 = inlined_call_operand.vmem [shape: f32[1,128], index: 4, kind: input, shape index: {}]
  %s5 = inlined_call_operand.vmem [shape: bf16[128,128], index: 5, kind: input, shape index: {}]
  %s6 = inlined_call_operand.vmem [shape: f32[1,128], index: 6, kind: input, shape index: {}]
  %s7 = inlined_call_operand.vmem [shape: bf16[128,128], index: 7, kind: input, shape index: {}]
  %s8 = inlined_call_operand.vmem [shape: f32[1,128], index: 8, kind: input, shape index: {}]
  %s9 = inlined_call_operand.vmem [shape: f32[1,128], index: 9, kind: input, shape index: {}]
  %s10 = inlined_call_operand.vmem [shape: bf16[128,128], index: 10, kind: input, shape index: {}]
  %s11 = inlined_call_operand.<no memory space> [shape: f32[1,1], index: 11, kind: input, shape index: {}]
  %s12 = inlined_call_operand.<no memory space> [shape: f32[1,1], index: 12, kind: input, shape index: {}]
  %s13 = inlined_call_operand.vmem [shape: f32[128,128], index: 13, kind: output, shape index: {}]
  %s14 = sld [smem:[#allocation0]]
  $region62: #{appnp_air_forward.1} parent=0
    _
  %s16 = ssub.s32 1, %s14
  %s17 = scalar_select 0, %s16, %s14
  %18 = sst [smem:[#allocation2]] %s11
  %19 = sst [smem:[#allocation3]] %s12
  // Predicated region
  $region2: #{appnp_air_forward.1} parent=0 // pred_check
    _
  $region3: #{appnp_air_forward.1} parent=0 // pred_check_branch
    %21 = sbr.rel (0) target = $region5
  $region4: #{appnp_air_forward.1} parent=0 // pred_region
    _
  $region5: #{appnp_air_forward.1} parent=0 // pred_fallthru
    _
  // Predicated region
  $region6: #{appnp_air_forward.1} parent=0 // pred_check
    _
  $region7: #{appnp_air_forward.1} parent=0 // pred_check_branch
    %23 = sbr.rel (0) target = $region9
  $region8: #{appnp_air_forward.1} parent=0 // pred_region
    _
  $region9: #{appnp_air_forward.1} parent=0 // pred_fallthru
    _
  // Predicated region
  $region10: #{appnp_air_forward.1} parent=0 // pred_check
    _
  $region11: #{appnp_air_forward.1} parent=0 // pred_check_branch
    %25 = sbr.rel (0) target = $region13
  $region12: #{appnp_air_forward.1} parent=0 // pred_region
    _
  $region13: #{appnp_air_forward.1} parent=0 // pred_fallthru
    _
  // Predicated region
  $region14: #{appnp_air_forward.1} parent=0 // pred_check
    _
  $region15: #{appnp_air_forward.1} parent=0 // pred_check_branch
    %27 = sbr.rel (0) target = $region17
  $region16: #{appnp_air_forward.1} parent=0 // pred_region
    _
  $region17: #{appnp_air_forward.1} parent=0 // pred_fallthru
    _
  // Predicated region
  $region18: #{appnp_air_forward.1} parent=0 // pred_check
    _
  $region19: #{appnp_air_forward.1} parent=0 // pred_check_branch
    %29 = sbr.rel (0) target = $region21
  $region20: #{appnp_air_forward.1} parent=0 // pred_region
    _
  $region21: #{appnp_air_forward.1} parent=0 // pred_fallthru
    _
  // Predicated region
  $region22: #{appnp_air_forward.1} parent=0 // pred_check
    _
  $region23: #{appnp_air_forward.1} parent=0 // pred_check_branch
    %31 = sbr.rel (0) target = $region25
  $region24: #{appnp_air_forward.1} parent=0 // pred_region
    _
  $region25: #{appnp_air_forward.1} parent=0 // pred_fallthru
    _
  // Predicated region
  $region26: #{appnp_air_forward.1} parent=0 // pred_check
    _
  $region27: #{appnp_air_forward.1} parent=0 // pred_check_branch
    %33 = sbr.rel (0) target = $region29
  $region28: #{appnp_air_forward.1} parent=0 // pred_region
    _
  $region29: #{appnp_air_forward.1} parent=0 // pred_fallthru
    _
  // Predicated region
  $region30: #{appnp_air_forward.1} parent=0 // pred_check
    _
  $region31: #{appnp_air_forward.1} parent=0 // pred_check_branch
    %35 = sbr.rel (0) target = $region33
  $region32: #{appnp_air_forward.1} parent=0 // pred_region
    _
  $region33: #{appnp_air_forward.1} parent=0 // pred_fallthru
    _
  // Predicated region
  $region34: #{appnp_air_forward.1} parent=0 // pred_check
    _
  $region35: #{appnp_air_forward.1} parent=0 // pred_check_branch
    %37 = sbr.rel (0) target = $region37
  $region36: #{appnp_air_forward.1} parent=0 // pred_region
    _
  $region37: #{appnp_air_forward.1} parent=0 // pred_fallthru
    _
  // Predicated region
  $region38: #{appnp_air_forward.1} parent=0 // pred_check
    _
  $region39: #{appnp_air_forward.1} parent=0 // pred_check_branch
    %39 = sbr.rel (0) target = $region41
  $region40: #{appnp_air_forward.1} parent=0 // pred_region
    _
  $region41: #{appnp_air_forward.1} parent=0 // pred_fallthru
    _
  // Predicated region
  $region42: #{appnp_air_forward.1} parent=0 // pred_check
    _
  $region43: #{appnp_air_forward.1} parent=0 // pred_check_branch
    %41 = sbr.rel (0) target = $region45
  $region44: #{appnp_air_forward.1} parent=0 // pred_region
    _
  $region45: #{appnp_air_forward.1} parent=0 // pred_fallthru
    _
  // Predicated region
  $region46: #{appnp_air_forward.1} parent=0 // pred_check
    _
  $region47: #{appnp_air_forward.1} parent=0 // pred_check_branch
    %43 = sbr.rel (0) target = $region49
  $region48: #{appnp_air_forward.1} parent=0 // pred_region
    _
  $region49: #{appnp_air_forward.1} parent=0 // pred_fallthru
    _
  // Predicated region
  $region50: #{appnp_air_forward.1} parent=0 // pred_check
    _
  $region51: #{appnp_air_forward.1} parent=0 // pred_check_branch
    %45 = sbr.rel (0) target = $region53
  $region52: #{appnp_air_forward.1} parent=0 // pred_region
    _
  $region53: #{appnp_air_forward.1} parent=0 // pred_fallthru
    _
  %s47 = sld [smem:[#allocation2]]
  %s48 = sld [smem:[#allocation3]]
  %v49 = vld [vmem:[%s0] sm:$0xf]
  %v50 = vld [vmem:[%s0 + $0x4] sm:$0xf]
  %v51 = vld [vmem:[%s0 + $0x8] sm:$0xf]
  %v52 = vld [vmem:[%s0 + $0xc] sm:$0xf]
  %v53 = vld [vmem:[%s0 + $0x10] sm:$0xf]
  %v54 = vld [vmem:[%s0 + $0x14] sm:$0xf]
  %v55 = vld [vmem:[%s0 + $0x18] sm:$0xf]
  %v56 = vld [vmem:[%s0 + $0x1c] sm:$0xf]
  %v57 = vld [vmem:[%s0 + $0x20] sm:$0xf]
  %v58 = vld [vmem:[%s0 + $0x24] sm:$0xf]
  %v59 = vld [vmem:[%s0 + $0x28] sm:$0xf]
  %v60 = vld [vmem:[%s0 + $0x2c] sm:$0xf]
  %v61 = vld [vmem:[%s0 + $0x30] sm:$0xf]
  %v62 = vld [vmem:[%s0 + $0x34] sm:$0xf]
  %v63 = vld [vmem:[%s0 + $0x38] sm:$0xf]
  %v64 = vld [vmem:[%s0 + $0x3c] sm:$0xf]
  %v65 = vld [vmem:[%s1] sm:$0xf]
  %v66 = vld [vmem:[%s1 + $0x4] sm:$0xf]
  %v67 = vld [vmem:[%s1 + $0x8] sm:$0xf]
  %v68 = vld [vmem:[%s1 + $0xc] sm:$0xf]
  %v69 = vld [vmem:[%s1 + $0x10] sm:$0xf]
  %v70 = vld [vmem:[%s1 + $0x14] sm:$0xf]
  %v71 = vld [vmem:[%s1 + $0x18] sm:$0xf]
  %v72 = vld [vmem:[%s1 + $0x1c] sm:$0xf]
  %v73 = vld [vmem:[%s1 + $0x20] sm:$0xf]
  %v74 = vld [vmem:[%s1 + $0x24] sm:$0xf]
  %v75 = vld [vmem:[%s1 + $0x28] sm:$0xf]
  %v76 = vld [vmem:[%s1 + $0x2c] sm:$0xf]
  %v77 = vld [vmem:[%s1 + $0x30] sm:$0xf]
  %v78 = vld [vmem:[%s1 + $0x34] sm:$0xf]
  %v79 = vld [vmem:[%s1 + $0x38] sm:$0xf]
  %v80 = vld [vmem:[%s1 + $0x3c] sm:$0xf]
  %v81 = vld [vmem:[%s2] sm:$0x1]
  %v83 = vlaneseq
  %v84 = vshrl.u32 %v83, 7
  %v85 = vsub.s32 0, %v84
  %v86 = vrot.slane %v81, %v85
  %v104 = vunpack.c.l.b16 %v49
  %v105 = vunpack.c.l.b16 %v50
  %v106 = vunpack.c.l.b16 %v51
  %v107 = vunpack.c.l.b16 %v52
  %v108 = vunpack.c.l.b16 %v53
  %v109 = vunpack.c.l.b16 %v54
  %v110 = vunpack.c.l.b16 %v55
  %v111 = vunpack.c.l.b16 %v56
  %v112 = vunpack.c.l.b16 %v57
  %v113 = vunpack.c.l.b16 %v58
  %v114 = vunpack.c.l.b16 %v59
  %v115 = vunpack.c.l.b16 %v60
  %v116 = vunpack.c.l.b16 %v61
  %v117 = vunpack.c.l.b16 %v62
  %v118 = vunpack.c.l.b16 %v63
  %v119 = vunpack.c.l.b16 %v64
  %v120 = vpack.c.b16 %v105, %v104
  %v121 = vpack.c.b16 %v107, %v106
  %v122 = vpack.c.b16 %v109, %v108
  %v123 = vpack.c.b16 %v111, %v110
  %v124 = vpack.c.b16 %v113, %v112
  %v125 = vpack.c.b16 %v115, %v114
  %v126 = vpack.c.b16 %v117, %v116
  %v127 = vpack.c.b16 %v119, %v118
  %v152 = vunpack.c.l.b16 %v65
  %v153 = vunpack.c.l.b16 %v66
  %v154 = vunpack.c.l.b16 %v67
  %v155 = vunpack.c.l.b16 %v68
  %v156 = vunpack.c.l.b16 %v69
  %v157 = vunpack.c.l.b16 %v70
  %v158 = vunpack.c.l.b16 %v71
  %v159 = vunpack.c.l.b16 %v72
  %v160 = vunpack.c.l.b16 %v73
  %v161 = vunpack.c.l.b16 %v74
  %v162 = vunpack.c.l.b16 %v75
  %v163 = vunpack.c.l.b16 %v76
  %v164 = vunpack.c.l.b16 %v77
  %v165 = vunpack.c.l.b16 %v78
  %v166 = vunpack.c.l.b16 %v79
  %v167 = vunpack.c.l.b16 %v80
  %v168 = vpack.c.b16 %v153, %v152
  %v169 = vpack.c.b16 %v155, %v154
  %v170 = vpack.c.b16 %v157, %v156
  %v171 = vpack.c.b16 %v159, %v158
  %v172 = vpack.c.b16 %v161, %v160
  %v173 = vpack.c.b16 %v163, %v162
  %v174 = vpack.c.b16 %v165, %v164
  %v175 = vpack.c.b16 %v167, %v166
  %184 = vmatprep.subr.bf16.mxu0 0
  %185 = vmatpush1.bf16.msra.mxu0 %v175
  %186 = vmatprep.subr.bf16.mxu0 0
  %187 = vmatpush1.bf16.msra.mxu0 %v174
  %188 = vmatprep.subr.bf16.mxu0 0
  %189 = vmatpush1.bf16.msra.mxu0 %v173
  %190 = vmatprep.subr.bf16.mxu0 0
  %191 = vmatpush1.bf16.msra.mxu0 %v172
  %192 = vmatprep.subr.bf16.mxu0 0
  %193 = vmatpush1.bf16.msra.mxu0 %v171
  %194 = vmatprep.subr.bf16.mxu0 0
  %195 = vmatpush1.bf16.msra.mxu0 %v170
  %196 = vmatprep.subr.bf16.mxu0 0
  %197 = vmatpush1.bf16.msra.mxu0 %v169
  %198 = vmatprep.subr.bf16.mxu0 0
  %199 = vmatpush1.bf16.msra.mxu0 %v168
  %200 = vmatprep.subr.bf16.mxu0 0
  %201 = vmatpush2.bf16.msra.mxu0 0
  %202 = vmatprep.subr.bf16.mxu0 0
  %203 = vmatpush2.bf16.msra.mxu0 0
  %204 = vmatprep.subr.bf16.mxu0 0
  %205 = vmatpush2.bf16.msra.mxu0 0
  %206 = vmatprep.subr.bf16.mxu0 0
  %207 = vmatpush2.bf16.msra.mxu0 0
  %208 = vmatprep.subr.bf16.mxu0 0
  %209 = vmatpush2.bf16.msra.mxu0 0
  %210 = vmatprep.subr.bf16.mxu0 0
  %211 = vmatpush2.bf16.msra.mxu0 0
  %212 = vmatprep.subr.bf16.mxu0 0
  %213 = vmatpush2.bf16.msra.mxu0 0
  %214 = vmatprep.subr.bf16.mxu0 0
  %215 = vmatpush2.bf16.msra.mxu0 0
  %216 = vmatprep.mubr.bf16.mxu0 0
  %217 = vmatmul.mubr.bf16.gmra.mxu0 %v120
  %v218 = vpop.f32.mrf.mxu0
  %v219 = vadd.f32 %v86, %v218
  %v220 = vpop.f32.mrf.mxu0
  %v221 = vpop.f32.mrf.mxu0
  %v222 = vadd.f32 %v86, %v221
  %v223 = vpop.f32.mrf.mxu0
  %224 = vmatprep.mubr.bf16.mxu0 0
  %225 = vmatmul.mubr.bf16.gmra.mxu0 %v121
  %v226 = vpop.f32.mrf.mxu0
  %v227 = vadd.f32 %v86, %v226
  %v228 = vpop.f32.mrf.mxu0
  %v229 = vpop.f32.mrf.mxu0
  %v230 = vadd.f32 %v86, %v229
  %v231 = vpop.f32.mrf.mxu0
  %232 = vmatprep.mubr.bf16.mxu0 0
  %233 = vmatmul.mubr.bf16.gmra.mxu0 %v122
  %v234 = vpop.f32.mrf.mxu0
  %v235 = vadd.f32 %v86, %v234
  %v236 = vpop.f32.mrf.mxu0
  %v237 = vpop.f32.mrf.mxu0
  %v238 = vadd.f32 %v86, %v237
  %v239 = vpop.f32.mrf.mxu0
  %240 = vmatprep.mubr.bf16.mxu0 0
  %241 = vmatmul.mubr.bf16.gmra.mxu0 %v123
  %v242 = vpop.f32.mrf.mxu0
  %v243 = vadd.f32 %v86, %v242
  %v244 = vpop.f32.mrf.mxu0
  %v245 = vpop.f32.mrf.mxu0
  %v246 = vadd.f32 %v86, %v245
  %v247 = vpop.f32.mrf.mxu0
  %248 = vmatprep.mubr.bf16.mxu0 0
  %249 = vmatmul.mubr.bf16.gmra.mxu0 %v124
  %v250 = vpop.f32.mrf.mxu0
  %v251 = vadd.f32 %v86, %v250
  %v252 = vpop.f32.mrf.mxu0
  %v253 = vpop.f32.mrf.mxu0
  %v254 = vadd.f32 %v86, %v253
  %v255 = vpop.f32.mrf.mxu0
  %256 = vmatprep.mubr.bf16.mxu0 0
  %257 = vmatmul.mubr.bf16.gmra.mxu0 %v125
  %v258 = vpop.f32.mrf.mxu0
  %v259 = vadd.f32 %v86, %v258
  %v260 = vpop.f32.mrf.mxu0
  %v261 = vpop.f32.mrf.mxu0
  %v262 = vadd.f32 %v86, %v261
  %v263 = vpop.f32.mrf.mxu0
  %264 = vmatprep.mubr.bf16.mxu0 0
  %265 = vmatmul.mubr.bf16.gmra.mxu0 %v126
  %v266 = vpop.f32.mrf.mxu0
  %v267 = vadd.f32 %v86, %v266
  %v268 = vpop.f32.mrf.mxu0
  %v269 = vpop.f32.mrf.mxu0
  %v270 = vadd.f32 %v86, %v269
  %v271 = vpop.f32.mrf.mxu0
  %272 = vmatprep.mubr.bf16.mxu0 0
  %273 = vmatmul.mubr.bf16.gmra.mxu0 %v127
  %v274 = vpop.f32.mrf.mxu0
  %v275 = vadd.f32 %v86, %v274
  %v276 = vpop.f32.mrf.mxu0
  %v277 = vpop.f32.mrf.mxu0
  %v278 = vadd.f32 %v86, %v277
  %v279 = vpop.f32.mrf.mxu0
  %280 = vdwg.mxu0
  %vm281 = vcmp.ge.f32.partialorder %v219, 0.0
  %vm282 = vcmp.ge.f32.partialorder %v222, 0.0
  %vm283 = vcmp.ge.f32.partialorder %v227, 0.0
  %vm284 = vcmp.ge.f32.partialorder %v230, 0.0
  %vm285 = vcmp.ge.f32.partialorder %v235, 0.0
  %vm286 = vcmp.ge.f32.partialorder %v238, 0.0
  %vm287 = vcmp.ge.f32.partialorder %v243, 0.0
  %vm288 = vcmp.ge.f32.partialorder %v246, 0.0
  %vm289 = vcmp.ge.f32.partialorder %v251, 0.0
  %vm290 = vcmp.ge.f32.partialorder %v254, 0.0
  %vm291 = vcmp.ge.f32.partialorder %v259, 0.0
  %vm292 = vcmp.ge.f32.partialorder %v262, 0.0
  %vm293 = vcmp.ge.f32.partialorder %v267, 0.0
  %vm294 = vcmp.ge.f32.partialorder %v270, 0.0
  %vm295 = vcmp.ge.f32.partialorder %v275, 0.0
  %vm296 = vcmp.ge.f32.partialorder %v278, 0.0
  %v297 = vstv %s47
  %v298 = vmul.f32 %v297, %v219
  %v299 = vmul.f32 %v297, %v222
  %v300 = vmul.f32 %v297, %v227
  %v301 = vmul.f32 %v297, %v230
  %v302 = vmul.f32 %v297, %v235
  %v303 = vmul.f32 %v297, %v238
  %v304 = vmul.f32 %v297, %v243
  %v305 = vmul.f32 %v297, %v246
  %v306 = vmul.f32 %v297, %v251
  %v307 = vmul.f32 %v297, %v254
  %v308 = vmul.f32 %v297, %v259
  %v309 = vmul.f32 %v297, %v262
  %v310 = vmul.f32 %v297, %v267
  %v311 = vmul.f32 %v297, %v270
  %v312 = vmul.f32 %v297, %v275
  %v313 = vmul.f32 %v297, %v278
  %v314 = vsel %vm281, %v219, %v298
  %v315 = vsel %vm282, %v222, %v299
  %v316 = vsel %vm283, %v227, %v300
  %v317 = vsel %vm284, %v230, %v301
  %v318 = vsel %vm285, %v235, %v302
  %v319 = vsel %vm286, %v238, %v303
  %v320 = vsel %vm287, %v243, %v304
  %v321 = vsel %vm288, %v246, %v305
  %v322 = vsel %vm289, %v251, %v306
  %v323 = vsel %vm290, %v254, %v307
  %v324 = vsel %vm291, %v259, %v308
  %v325 = vsel %vm292, %v262, %v309
  %v326 = vsel %vm293, %v267, %v310
  %v327 = vsel %vm294, %v270, %v311
  %v328 = vsel %vm295, %v275, %v312
  %v329 = vsel %vm296, %v278, %v313
  %v330 = vpack.c.bf16 %v315, %v314
  %v331 = vpack.c.bf16 %v317, %v316
  %v332 = vpack.c.bf16 %v319, %v318
  %v333 = vpack.c.bf16 %v321, %v320
  %v334 = vpack.c.bf16 %v323, %v322
  %v335 = vpack.c.bf16 %v325, %v324
  %v336 = vpack.c.bf16 %v327, %v326
  %v337 = vpack.c.bf16 %v329, %v328
  %v338 = vld [vmem:[%s3] sm:$0xf]
  %v339 = vld [vmem:[%s3 + $0x4] sm:$0xf]
  %v340 = vld [vmem:[%s3 + $0x8] sm:$0xf]
  %v341 = vld [vmem:[%s3 + $0xc] sm:$0xf]
  %v342 = vld [vmem:[%s3 + $0x10] sm:$0xf]
  %v343 = vld [vmem:[%s3 + $0x14] sm:$0xf]
  %v344 = vld [vmem:[%s3 + $0x18] sm:$0xf]
  %v345 = vld [vmem:[%s3 + $0x1c] sm:$0xf]
  %v346 = vld [vmem:[%s3 + $0x20] sm:$0xf]
  %v347 = vld [vmem:[%s3 + $0x24] sm:$0xf]
  %v348 = vld [vmem:[%s3 + $0x28] sm:$0xf]
  %v349 = vld [vmem:[%s3 + $0x2c] sm:$0xf]
  %v350 = vld [vmem:[%s3 + $0x30] sm:$0xf]
  %v351 = vld [vmem:[%s3 + $0x34] sm:$0xf]
  %v352 = vld [vmem:[%s3 + $0x38] sm:$0xf]
  %v353 = vld [vmem:[%s3 + $0x3c] sm:$0xf]
  %v354 = vld [vmem:[%s4] sm:$0x1]
  %v356 = vlaneseq
  %v357 = vshrl.u32 %v356, 7
  %v358 = vsub.s32 0, %v357
  %v359 = vrot.slane %v354, %v358
  %v377 = vunpack.c.l.b16 %v338
  %v378 = vunpack.c.l.b16 %v339
  %v379 = vunpack.c.l.b16 %v340
  %v380 = vunpack.c.l.b16 %v341
  %v381 = vunpack.c.l.b16 %v342
  %v382 = vunpack.c.l.b16 %v343
  %v383 = vunpack.c.l.b16 %v344
  %v384 = vunpack.c.l.b16 %v345
  %v385 = vunpack.c.l.b16 %v346
  %v386 = vunpack.c.l.b16 %v347
  %v387 = vunpack.c.l.b16 %v348
  %v388 = vunpack.c.l.b16 %v349
  %v389 = vunpack.c.l.b16 %v350
  %v390 = vunpack.c.l.b16 %v351
  %v391 = vunpack.c.l.b16 %v352
  %v392 = vunpack.c.l.b16 %v353
  %v393 = vpack.c.b16 %v378, %v377
  %v394 = vpack.c.b16 %v380, %v379
  %v395 = vpack.c.b16 %v382, %v381
  %v396 = vpack.c.b16 %v384, %v383
  %v397 = vpack.c.b16 %v386, %v385
  %v398 = vpack.c.b16 %v388, %v387
  %v399 = vpack.c.b16 %v390, %v389
  %v400 = vpack.c.b16 %v392, %v391
  %409 = vmatprep.subr.bf16.mxu0 0
  %410 = vmatpush1.bf16.msra.mxu0 %v400
  %411 = vmatprep.subr.bf16.mxu0 0
  %412 = vmatpush1.bf16.msra.mxu0 %v399
  %413 = vmatprep.subr.bf16.mxu0 0
  %414 = vmatpush1.bf16.msra.mxu0 %v398
  %415 = vmatprep.subr.bf16.mxu0 0
  %416 = vmatpush1.bf16.msra.mxu0 %v397
  %417 = vmatprep.subr.bf16.mxu0 0
  %418 = vmatpush1.bf16.msra.mxu0 %v396
  %419 = vmatprep.subr.bf16.mxu0 0
  %420 = vmatpush1.bf16.msra.mxu0 %v395
  %421 = vmatprep.subr.bf16.mxu0 0
  %422 = vmatpush1.bf16.msra.mxu0 %v394
  %423 = vmatprep.subr.bf16.mxu0 0
  %424 = vmatpush1.bf16.msra.mxu0 %v393
  %425 = vmatprep.subr.bf16.mxu0 0
  %426 = vmatpush2.bf16.msra.mxu0 0
  %427 = vmatprep.subr.bf16.mxu0 0
  %428 = vmatpush2.bf16.msra.mxu0 0
  %429 = vmatprep.subr.bf16.mxu0 0
  %430 = vmatpush2.bf16.msra.mxu0 0
  %431 = vmatprep.subr.bf16.mxu0 0
  %432 = vmatpush2.bf16.msra.mxu0 0
  %433 = vmatprep.subr.bf16.mxu0 0
  %434 = vmatpush2.bf16.msra.mxu0 0
  %435 = vmatprep.subr.bf16.mxu0 0
  %436 = vmatpush2.bf16.msra.mxu0 0
  %437 = vmatprep.subr.bf16.mxu0 0
  %438 = vmatpush2.bf16.msra.mxu0 0
  %439 = vmatprep.subr.bf16.mxu0 0
  %440 = vmatpush2.bf16.msra.mxu0 0
  %441 = vmatprep.mubr.bf16.mxu0 0
  %442 = vmatmul.mubr.bf16.gmra.mxu0 %v330
  %v443 = vpop.f32.mrf.mxu0
  %v444 = vadd.f32 %v359, %v443
  %v445 = vpop.f32.mrf.mxu0
  %v446 = vpop.f32.mrf.mxu0
  %v447 = vadd.f32 %v359, %v446
  %v448 = vpop.f32.mrf.mxu0
  %449 = vmatprep.mubr.bf16.mxu0 0
  %450 = vmatmul.mubr.bf16.gmra.mxu0 %v331
  %v451 = vpop.f32.mrf.mxu0
  %v452 = vadd.f32 %v359, %v451
  %v453 = vpop.f32.mrf.mxu0
  %v454 = vpop.f32.mrf.mxu0
  %v455 = vadd.f32 %v359, %v454
  %v456 = vpop.f32.mrf.mxu0
  %457 = vmatprep.mubr.bf16.mxu0 0
  %458 = vmatmul.mubr.bf16.gmra.mxu0 %v332
  %v459 = vpop.f32.mrf.mxu0
  %v460 = vadd.f32 %v359, %v459
  %v461 = vpop.f32.mrf.mxu0
  %v462 = vpop.f32.mrf.mxu0
  %v463 = vadd.f32 %v359, %v462
  %v464 = vpop.f32.mrf.mxu0
  %465 = vmatprep.mubr.bf16.mxu0 0
  %466 = vmatmul.mubr.bf16.gmra.mxu0 %v333
  %v467 = vpop.f32.mrf.mxu0
  %v468 = vadd.f32 %v359, %v467
  %v469 = vpop.f32.mrf.mxu0
  %v470 = vpop.f32.mrf.mxu0
  %v471 = vadd.f32 %v359, %v470
  %v472 = vpop.f32.mrf.mxu0
  %473 = vmatprep.mubr.bf16.mxu0 0
  %474 = vmatmul.mubr.bf16.gmra.mxu0 %v334
  %v475 = vpop.f32.mrf.mxu0
  %v476 = vadd.f32 %v359, %v475
  %v477 = vpop.f32.mrf.mxu0
  %v478 = vpop.f32.mrf.mxu0
  %v479 = vadd.f32 %v359, %v478
  %v480 = vpop.f32.mrf.mxu0
  %481 = vmatprep.mubr.bf16.mxu0 0
  %482 = vmatmul.mubr.bf16.gmra.mxu0 %v335
  %v483 = vpop.f32.mrf.mxu0
  %v484 = vadd.f32 %v359, %v483
  %v485 = vpop.f32.mrf.mxu0
  %v486 = vpop.f32.mrf.mxu0
  %v487 = vadd.f32 %v359, %v486
  %v488 = vpop.f32.mrf.mxu0
  %489 = vmatprep.mubr.bf16.mxu0 0
  %490 = vmatmul.mubr.bf16.gmra.mxu0 %v336
  %v491 = vpop.f32.mrf.mxu0
  %v492 = vadd.f32 %v359, %v491
  %v493 = vpop.f32.mrf.mxu0
  %v494 = vpop.f32.mrf.mxu0
  %v495 = vadd.f32 %v359, %v494
  %v496 = vpop.f32.mrf.mxu0
  %497 = vmatprep.mubr.bf16.mxu0 0
  %498 = vmatmul.mubr.bf16.gmra.mxu0 %v337
  %v499 = vpop.f32.mrf.mxu0
  %v500 = vadd.f32 %v359, %v499
  %v501 = vpop.f32.mrf.mxu0
  %v502 = vpop.f32.mrf.mxu0
  %v503 = vadd.f32 %v359, %v502
  %v504 = vpop.f32.mrf.mxu0
  %505 = vdwg.mxu0
  %vm506 = vcmp.ge.f32.partialorder %v444, 0.0
  %vm507 = vcmp.ge.f32.partialorder %v447, 0.0
  %vm508 = vcmp.ge.f32.partialorder %v452, 0.0
  %vm509 = vcmp.ge.f32.partialorder %v455, 0.0
  %vm510 = vcmp.ge.f32.partialorder %v460, 0.0
  %vm511 = vcmp.ge.f32.partialorder %v463, 0.0
  %vm512 = vcmp.ge.f32.partialorder %v468, 0.0
  %vm513 = vcmp.ge.f32.partialorder %v471, 0.0
  %vm514 = vcmp.ge.f32.partialorder %v476, 0.0
  %vm515 = vcmp.ge.f32.partialorder %v479, 0.0
  %vm516 = vcmp.ge.f32.partialorder %v484, 0.0
  %vm517 = vcmp.ge.f32.partialorder %v487, 0.0
  %vm518 = vcmp.ge.f32.partialorder %v492, 0.0
  %vm519 = vcmp.ge.f32.partialorder %v495, 0.0
  %vm520 = vcmp.ge.f32.partialorder %v500, 0.0
  %vm521 = vcmp.ge.f32.partialorder %v503, 0.0
  %v522 = vmul.f32 %v297, %v444
  %v523 = vmul.f32 %v297, %v447
  %v524 = vmul.f32 %v297, %v452
  %v525 = vmul.f32 %v297, %v455
  %v526 = vmul.f32 %v297, %v460
  %v527 = vmul.f32 %v297, %v463
  %v528 = vmul.f32 %v297, %v468
  %v529 = vmul.f32 %v297, %v471
  %v530 = vmul.f32 %v297, %v476
  %v531 = vmul.f32 %v297, %v479
  %v532 = vmul.f32 %v297, %v484
  %v533 = vmul.f32 %v297, %v487
  %v534 = vmul.f32 %v297, %v492
  %v535 = vmul.f32 %v297, %v495
  %v536 = vmul.f32 %v297, %v500
  %v537 = vmul.f32 %v297, %v503
  %v538 = vsel %vm506, %v444, %v522
  %v539 = vsel %vm507, %v447, %v523
  %v540 = vsel %vm508, %v452, %v524
  %v541 = vsel %vm509, %v455, %v525
  %v542 = vsel %vm510, %v460, %v526
  %v543 = vsel %vm511, %v463, %v527
  %v544 = vsel %vm512, %v468, %v528
  %v545 = vsel %vm513, %v471, %v529
  %v546 = vsel %vm514, %v476, %v530
  %v547 = vsel %vm515, %v479, %v531
  %v548 = vsel %vm516, %v484, %v532
  %v549 = vsel %vm517, %v487, %v533
  %v550 = vsel %vm518, %v492, %v534
  %v551 = vsel %vm519, %v495, %v535
  %v552 = vsel %vm520, %v500, %v536
  %v553 = vsel %vm521, %v503, %v537
  %v554 = vpack.c.bf16 %v539, %v538
  %v555 = vpack.c.bf16 %v541, %v540
  %v556 = vpack.c.bf16 %v543, %v542
  %v557 = vpack.c.bf16 %v545, %v544
  %v558 = vpack.c.bf16 %v547, %v546
  %v559 = vpack.c.bf16 %v549, %v548
  %v560 = vpack.c.bf16 %v551, %v550
  %v561 = vpack.c.bf16 %v553, %v552
  %v562 = vld [vmem:[%s5] sm:$0xf]
  %v563 = vld [vmem:[%s5 + $0x4] sm:$0xf]
  %v564 = vld [vmem:[%s5 + $0x8] sm:$0xf]
  %v565 = vld [vmem:[%s5 + $0xc] sm:$0xf]
  %v566 = vld [vmem:[%s5 + $0x10] sm:$0xf]
  %v567 = vld [vmem:[%s5 + $0x14] sm:$0xf]
  %v568 = vld [vmem:[%s5 + $0x18] sm:$0xf]
  %v569 = vld [vmem:[%s5 + $0x1c] sm:$0xf]
  %v570 = vld [vmem:[%s5 + $0x20] sm:$0xf]
  %v571 = vld [vmem:[%s5 + $0x24] sm:$0xf]
  %v572 = vld [vmem:[%s5 + $0x28] sm:$0xf]
  %v573 = vld [vmem:[%s5 + $0x2c] sm:$0xf]
  %v574 = vld [vmem:[%s5 + $0x30] sm:$0xf]
  %v575 = vld [vmem:[%s5 + $0x34] sm:$0xf]
  %v576 = vld [vmem:[%s5 + $0x38] sm:$0xf]
  %v577 = vld [vmem:[%s5 + $0x3c] sm:$0xf]
  %v578 = vld [vmem:[%s6] sm:$0x1]
  %v580 = vlaneseq
  %v581 = vshrl.u32 %v580, 7
  %v582 = vsub.s32 0, %v581
  %v583 = vrot.slane %v578, %v582
  %v601 = vunpack.c.l.b16 %v562
  %v602 = vunpack.c.l.b16 %v563
  %v603 = vunpack.c.l.b16 %v564
  %v604 = vunpack.c.l.b16 %v565
  %v605 = vunpack.c.l.b16 %v566
  %v606 = vunpack.c.l.b16 %v567
  %v607 = vunpack.c.l.b16 %v568
  %v608 = vunpack.c.l.b16 %v569
  %v609 = vunpack.c.l.b16 %v570
  %v610 = vunpack.c.l.b16 %v571
  %v611 = vunpack.c.l.b16 %v572
  %v612 = vunpack.c.l.b16 %v573
  %v613 = vunpack.c.l.b16 %v574
  %v614 = vunpack.c.l.b16 %v575
  %v615 = vunpack.c.l.b16 %v576
  %v616 = vunpack.c.l.b16 %v577
  %v617 = vpack.c.b16 %v602, %v601
  %v618 = vpack.c.b16 %v604, %v603
  %v619 = vpack.c.b16 %v606, %v605
  %v620 = vpack.c.b16 %v608, %v607
  %v621 = vpack.c.b16 %v610, %v609
  %v622 = vpack.c.b16 %v612, %v611
  %v623 = vpack.c.b16 %v614, %v613
  %v624 = vpack.c.b16 %v616, %v615
  %633 = vmatprep.subr.bf16.mxu0 0
  %634 = vmatpush1.bf16.msra.mxu0 %v624
  %635 = vmatprep.subr.bf16.mxu0 0
  %636 = vmatpush1.bf16.msra.mxu0 %v623
  %637 = vmatprep.subr.bf16.mxu0 0
  %638 = vmatpush1.bf16.msra.mxu0 %v622
  %639 = vmatprep.subr.bf16.mxu0 0
  %640 = vmatpush1.bf16.msra.mxu0 %v621
  %641 = vmatprep.subr.bf16.mxu0 0
  %642 = vmatpush1.bf16.msra.mxu0 %v620
  %643 = vmatprep.subr.bf16.mxu0 0
  %644 = vmatpush1.bf16.msra.mxu0 %v619
  %645 = vmatprep.subr.bf16.mxu0 0
  %646 = vmatpush1.bf16.msra.mxu0 %v618
  %647 = vmatprep.subr.bf16.mxu0 0
  %648 = vmatpush1.bf16.msra.mxu0 %v617
  %649 = vmatprep.subr.bf16.mxu0 0
  %650 = vmatpush2.bf16.msra.mxu0 0
  %651 = vmatprep.subr.bf16.mxu0 0
  %652 = vmatpush2.bf16.msra.mxu0 0
  %653 = vmatprep.subr.bf16.mxu0 0
  %654 = vmatpush2.bf16.msra.mxu0 0
  %655 = vmatprep.subr.bf16.mxu0 0
  %656 = vmatpush2.bf16.msra.mxu0 0
  %657 = vmatprep.subr.bf16.mxu0 0
  %658 = vmatpush2.bf16.msra.mxu0 0
  %659 = vmatprep.subr.bf16.mxu0 0
  %660 = vmatpush2.bf16.msra.mxu0 0
  %661 = vmatprep.subr.bf16.mxu0 0
  %662 = vmatpush2.bf16.msra.mxu0 0
  %663 = vmatprep.subr.bf16.mxu0 0
  %664 = vmatpush2.bf16.msra.mxu0 0
  %665 = vmatprep.mubr.bf16.mxu0 0
  %666 = vmatmul.mubr.bf16.gmra.mxu0 %v554
  %v667 = vpop.f32.mrf.mxu0
  %v668 = vadd.f32 %v583, %v667
  %v669 = vpop.f32.mrf.mxu0
  %v670 = vpop.f32.mrf.mxu0
  %v671 = vadd.f32 %v583, %v670
  %v672 = vpop.f32.mrf.mxu0
  %673 = vmatprep.mubr.bf16.mxu0 0
  %674 = vmatmul.mubr.bf16.gmra.mxu0 %v555
  %v675 = vpop.f32.mrf.mxu0
  %v676 = vadd.f32 %v583, %v675
  %v677 = vpop.f32.mrf.mxu0
  %v678 = vpop.f32.mrf.mxu0
  %v679 = vadd.f32 %v583, %v678
  %v680 = vpop.f32.mrf.mxu0
  %681 = vmatprep.mubr.bf16.mxu0 0
  %682 = vmatmul.mubr.bf16.gmra.mxu0 %v556
  %v683 = vpop.f32.mrf.mxu0
  %v684 = vadd.f32 %v583, %v683
  %v685 = vpop.f32.mrf.mxu0
  %v686 = vpop.f32.mrf.mxu0
  %v687 = vadd.f32 %v583, %v686
  %v688 = vpop.f32.mrf.mxu0
  %689 = vmatprep.mubr.bf16.mxu0 0
  %690 = vmatmul.mubr.bf16.gmra.mxu0 %v557
  %v691 = vpop.f32.mrf.mxu0
  %v692 = vadd.f32 %v583, %v691
  %v693 = vpop.f32.mrf.mxu0
  %v694 = vpop.f32.mrf.mxu0
  %v695 = vadd.f32 %v583, %v694
  %v696 = vpop.f32.mrf.mxu0
  %697 = vmatprep.mubr.bf16.mxu0 0
  %698 = vmatmul.mubr.bf16.gmra.mxu0 %v558
  %v699 = vpop.f32.mrf.mxu0
  %v700 = vadd.f32 %v583, %v699
  %v701 = vpop.f32.mrf.mxu0
  %v702 = vpop.f32.mrf.mxu0
  %v703 = vadd.f32 %v583, %v702
  %v704 = vpop.f32.mrf.mxu0
  %705 = vmatprep.mubr.bf16.mxu0 0
  %706 = vmatmul.mubr.bf16.gmra.mxu0 %v559
  %v707 = vpop.f32.mrf.mxu0
  %v708 = vadd.f32 %v583, %v707
  %v709 = vpop.f32.mrf.mxu0
  %v710 = vpop.f32.mrf.mxu0
  %v711 = vadd.f32 %v583, %v710
  %v712 = vpop.f32.mrf.mxu0
  %713 = vmatprep.mubr.bf16.mxu0 0
  %714 = vmatmul.mubr.bf16.gmra.mxu0 %v560
  %v715 = vpop.f32.mrf.mxu0
  %v716 = vadd.f32 %v583, %v715
  %v717 = vpop.f32.mrf.mxu0
  %v718 = vpop.f32.mrf.mxu0
  %v719 = vadd.f32 %v583, %v718
  %v720 = vpop.f32.mrf.mxu0
  %721 = vmatprep.mubr.bf16.mxu0 0
  %722 = vmatmul.mubr.bf16.gmra.mxu0 %v561
  %v723 = vpop.f32.mrf.mxu0
  %v724 = vadd.f32 %v583, %v723
  %v725 = vpop.f32.mrf.mxu0
  %v726 = vpop.f32.mrf.mxu0
  %v727 = vadd.f32 %v583, %v726
  %v728 = vpop.f32.mrf.mxu0
  %729 = vdwg.mxu0
  %vm730 = vcmp.ge.f32.partialorder %v668, 0.0
  %vm731 = vcmp.ge.f32.partialorder %v671, 0.0
  %vm732 = vcmp.ge.f32.partialorder %v676, 0.0
  %vm733 = vcmp.ge.f32.partialorder %v679, 0.0
  %vm734 = vcmp.ge.f32.partialorder %v684, 0.0
  %vm735 = vcmp.ge.f32.partialorder %v687, 0.0
  %vm736 = vcmp.ge.f32.partialorder %v692, 0.0
  %vm737 = vcmp.ge.f32.partialorder %v695, 0.0
  %vm738 = vcmp.ge.f32.partialorder %v700, 0.0
  %vm739 = vcmp.ge.f32.partialorder %v703, 0.0
  %vm740 = vcmp.ge.f32.partialorder %v708, 0.0
  %vm741 = vcmp.ge.f32.partialorder %v711, 0.0
  %vm742 = vcmp.ge.f32.partialorder %v716, 0.0
  %vm743 = vcmp.ge.f32.partialorder %v719, 0.0
  %vm744 = vcmp.ge.f32.partialorder %v724, 0.0
  %vm745 = vcmp.ge.f32.partialorder %v727, 0.0
  %v746 = vmul.f32 %v297, %v668
  %v747 = vmul.f32 %v297, %v671
  %v748 = vmul.f32 %v297, %v676
  %v749 = vmul.f32 %v297, %v679
  %v750 = vmul.f32 %v297, %v684
  %v751 = vmul.f32 %v297, %v687
  %v752 = vmul.f32 %v297, %v692
  %v753 = vmul.f32 %v297, %v695
  %v754 = vmul.f32 %v297, %v700
  %v755 = vmul.f32 %v297, %v703
  %v756 = vmul.f32 %v297, %v708
  %v757 = vmul.f32 %v297, %v711
  %v758 = vmul.f32 %v297, %v716
  %v759 = vmul.f32 %v297, %v719
  %v760 = vmul.f32 %v297, %v724
  %v761 = vmul.f32 %v297, %v727
  %v762 = vsel %vm730, %v668, %v746
  %v763 = vsel %vm731, %v671, %v747
  %v764 = vsel %vm732, %v676, %v748
  %v765 = vsel %vm733, %v679, %v749
  %v766 = vsel %vm734, %v684, %v750
  %v767 = vsel %vm735, %v687, %v751
  %v768 = vsel %vm736, %v692, %v752
  %v769 = vsel %vm737, %v695, %v753
  %v770 = vsel %vm738, %v700, %v754
  %v771 = vsel %vm739, %v703, %v755
  %v772 = vsel %vm740, %v708, %v756
  %v773 = vsel %vm741, %v711, %v757
  %v774 = vsel %vm742, %v716, %v758
  %v775 = vsel %vm743, %v719, %v759
  %v776 = vsel %vm744, %v724, %v760
  %v777 = vsel %vm745, %v727, %v761
  %v778 = vpack.c.bf16 %v763, %v762
  %v779 = vpack.c.bf16 %v765, %v764
  %v780 = vpack.c.bf16 %v767, %v766
  %v781 = vpack.c.bf16 %v769, %v768
  %v782 = vpack.c.bf16 %v771, %v770
  %v783 = vpack.c.bf16 %v773, %v772
  %v784 = vpack.c.bf16 %v775, %v774
  %v785 = vpack.c.bf16 %v777, %v776
  %v786 = vld [vmem:[%s7] sm:$0xf]
  %v787 = vld [vmem:[%s7 + $0x4] sm:$0xf]
  %v788 = vld [vmem:[%s7 + $0x8] sm:$0xf]
  %v789 = vld [vmem:[%s7 + $0xc] sm:$0xf]
  %v790 = vld [vmem:[%s7 + $0x10] sm:$0xf]
  %v791 = vld [vmem:[%s7 + $0x14] sm:$0xf]
  %v792 = vld [vmem:[%s7 + $0x18] sm:$0xf]
  %v793 = vld [vmem:[%s7 + $0x1c] sm:$0xf]
  %v794 = vld [vmem:[%s7 + $0x20] sm:$0xf]
  %v795 = vld [vmem:[%s7 + $0x24] sm:$0xf]
  %v796 = vld [vmem:[%s7 + $0x28] sm:$0xf]
  %v797 = vld [vmem:[%s7 + $0x2c] sm:$0xf]
  %v798 = vld [vmem:[%s7 + $0x30] sm:$0xf]
  %v799 = vld [vmem:[%s7 + $0x34] sm:$0xf]
  %v800 = vld [vmem:[%s7 + $0x38] sm:$0xf]
  %v801 = vld [vmem:[%s7 + $0x3c] sm:$0xf]
  %v802 = vld [vmem:[%s8] sm:$0x1]
  %v804 = vlaneseq
  %v805 = vshrl.u32 %v804, 7
  %v806 = vsub.s32 0, %v805
  %v807 = vrot.slane %v802, %v806
  %v825 = vunpack.c.l.b16 %v786
  %v826 = vunpack.c.l.b16 %v787
  %v827 = vunpack.c.l.b16 %v788
  %v828 = vunpack.c.l.b16 %v789
  %v829 = vunpack.c.l.b16 %v790
  %v830 = vunpack.c.l.b16 %v791
  %v831 = vunpack.c.l.b16 %v792
  %v832 = vunpack.c.l.b16 %v793
  %v833 = vunpack.c.l.b16 %v794
  %v834 = vunpack.c.l.b16 %v795
  %v835 = vunpack.c.l.b16 %v796
  %v836 = vunpack.c.l.b16 %v797
  %v837 = vunpack.c.l.b16 %v798
  %v838 = vunpack.c.l.b16 %v799
  %v839 = vunpack.c.l.b16 %v800
  %v840 = vunpack.c.l.b16 %v801
  %v841 = vpack.c.b16 %v826, %v825
  %v842 = vpack.c.b16 %v828, %v827
  %v843 = vpack.c.b16 %v830, %v829
  %v844 = vpack.c.b16 %v832, %v831
  %v845 = vpack.c.b16 %v834, %v833
  %v846 = vpack.c.b16 %v836, %v835
  %v847 = vpack.c.b16 %v838, %v837
  %v848 = vpack.c.b16 %v840, %v839
  %857 = vmatprep.subr.bf16.mxu0 0
  %858 = vmatpush1.bf16.msra.mxu0 %v848
  %859 = vmatprep.subr.bf16.mxu0 0
  %860 = vmatpush1.bf16.msra.mxu0 %v847
  %861 = vmatprep.subr.bf16.mxu0 0
  %862 = vmatpush1.bf16.msra.mxu0 %v846
  %863 = vmatprep.subr.bf16.mxu0 0
  %864 = vmatpush1.bf16.msra.mxu0 %v845
  %865 = vmatprep.subr.bf16.mxu0 0
  %866 = vmatpush1.bf16.msra.mxu0 %v844
  %867 = vmatprep.subr.bf16.mxu0 0
  %868 = vmatpush1.bf16.msra.mxu0 %v843
  %869 = vmatprep.subr.bf16.mxu0 0
  %870 = vmatpush1.bf16.msra.mxu0 %v842
  %871 = vmatprep.subr.bf16.mxu0 0
  %872 = vmatpush1.bf16.msra.mxu0 %v841
  %873 = vmatprep.subr.bf16.mxu0 0
  %874 = vmatpush2.bf16.msra.mxu0 0
  %875 = vmatprep.subr.bf16.mxu0 0
  %876 = vmatpush2.bf16.msra.mxu0 0
  %877 = vmatprep.subr.bf16.mxu0 0
  %878 = vmatpush2.bf16.msra.mxu0 0
  %879 = vmatprep.subr.bf16.mxu0 0
  %880 = vmatpush2.bf16.msra.mxu0 0
  %881 = vmatprep.subr.bf16.mxu0 0
  %882 = vmatpush2.bf16.msra.mxu0 0
  %883 = vmatprep.subr.bf16.mxu0 0
  %884 = vmatpush2.bf16.msra.mxu0 0
  %885 = vmatprep.subr.bf16.mxu0 0
  %886 = vmatpush2.bf16.msra.mxu0 0
  %887 = vmatprep.subr.bf16.mxu0 0
  %888 = vmatpush2.bf16.msra.mxu0 0
  %889 = vmatprep.mubr.bf16.mxu0 0
  %890 = vmatmul.mubr.bf16.gmra.mxu0 %v778
  %v891 = vpop.f32.mrf.mxu0
  %v892 = vadd.f32 %v807, %v891
  %v893 = vpop.f32.mrf.mxu0
  %v894 = vpop.f32.mrf.mxu0
  %v895 = vadd.f32 %v807, %v894
  %v896 = vpop.f32.mrf.mxu0
  %897 = vmatprep.mubr.bf16.mxu0 0
  %898 = vmatmul.mubr.bf16.gmra.mxu0 %v779
  %v899 = vpop.f32.mrf.mxu0
  %v900 = vadd.f32 %v807, %v899
  %v901 = vpop.f32.mrf.mxu0
  %v902 = vpop.f32.mrf.mxu0
  %v903 = vadd.f32 %v807, %v902
  %v904 = vpop.f32.mrf.mxu0
  %905 = vmatprep.mubr.bf16.mxu0 0
  %906 = vmatmul.mubr.bf16.gmra.mxu0 %v780
  %v907 = vpop.f32.mrf.mxu0
  %v908 = vadd.f32 %v807, %v907
  %v909 = vpop.f32.mrf.mxu0
  %v910 = vpop.f32.mrf.mxu0
  %v911 = vadd.f32 %v807, %v910
  %v912 = vpop.f32.mrf.mxu0
  %913 = vmatprep.mubr.bf16.mxu0 0
  %914 = vmatmul.mubr.bf16.gmra.mxu0 %v781
  %v915 = vpop.f32.mrf.mxu0
  %v916 = vadd.f32 %v807, %v915
  %v917 = vpop.f32.mrf.mxu0
  %v918 = vpop.f32.mrf.mxu0
  %v919 = vadd.f32 %v807, %v918
  %v920 = vpop.f32.mrf.mxu0
  %921 = vmatprep.mubr.bf16.mxu0 0
  %922 = vmatmul.mubr.bf16.gmra.mxu0 %v782
  %v923 = vpop.f32.mrf.mxu0
  %v924 = vadd.f32 %v807, %v923
  %v925 = vpop.f32.mrf.mxu0
  %v926 = vpop.f32.mrf.mxu0
  %v927 = vadd.f32 %v807, %v926
  %v928 = vpop.f32.mrf.mxu0
  %929 = vmatprep.mubr.bf16.mxu0 0
  %930 = vmatmul.mubr.bf16.gmra.mxu0 %v783
  %v931 = vpop.f32.mrf.mxu0
  %v932 = vadd.f32 %v807, %v931
  %v933 = vpop.f32.mrf.mxu0
  %v934 = vpop.f32.mrf.mxu0
  %v935 = vadd.f32 %v807, %v934
  %v936 = vpop.f32.mrf.mxu0
  %937 = vmatprep.mubr.bf16.mxu0 0
  %938 = vmatmul.mubr.bf16.gmra.mxu0 %v784
  %v939 = vpop.f32.mrf.mxu0
  %v940 = vadd.f32 %v807, %v939
  %v941 = vpop.f32.mrf.mxu0
  %v942 = vpop.f32.mrf.mxu0
  %v943 = vadd.f32 %v807, %v942
  %v944 = vpop.f32.mrf.mxu0
  %945 = vmatprep.mubr.bf16.mxu0 0
  %946 = vmatmul.mubr.bf16.gmra.mxu0 %v785
  %v947 = vpop.f32.mrf.mxu0
  %v948 = vadd.f32 %v807, %v947
  %v949 = vpop.f32.mrf.mxu0
  %v950 = vpop.f32.mrf.mxu0
  %v951 = vadd.f32 %v807, %v950
  %v952 = vpop.f32.mrf.mxu0
  %953 = vdwg.mxu0
  %v954 = vld [vmem:[%s10] sm:$0xf]
  %v955 = vld [vmem:[%s10 + $0x4] sm:$0xf]
  %v956 = vld [vmem:[%s10 + $0x8] sm:$0xf]
  %v957 = vld [vmem:[%s10 + $0xc] sm:$0xf]
  %v958 = vld [vmem:[%s10 + $0x10] sm:$0xf]
  %v959 = vld [vmem:[%s10 + $0x14] sm:$0xf]
  %v960 = vld [vmem:[%s10 + $0x18] sm:$0xf]
  %v961 = vld [vmem:[%s10 + $0x1c] sm:$0xf]
  %v962 = vld [vmem:[%s10 + $0x20] sm:$0xf]
  %v963 = vld [vmem:[%s10 + $0x24] sm:$0xf]
  %v964 = vld [vmem:[%s10 + $0x28] sm:$0xf]
  %v965 = vld [vmem:[%s10 + $0x2c] sm:$0xf]
  %v966 = vld [vmem:[%s10 + $0x30] sm:$0xf]
  %v967 = vld [vmem:[%s10 + $0x34] sm:$0xf]
  %v968 = vld [vmem:[%s10 + $0x38] sm:$0xf]
  %v969 = vld [vmem:[%s10 + $0x3c] sm:$0xf]
  %v970 = vld [vmem:[%s9] sm:$0x1]
  %v972 = vlaneseq
  %v973 = vshrl.u32 %v972, 7
  %v974 = vsub.s32 0, %v973
  %v975 = vrot.slane %v970, %v974
  %v977 = vmul.f32 %v892, %v975
  %v978 = vmul.f32 %v895, %v975
  %v979 = vmul.f32 %v900, %v975
  %v980 = vmul.f32 %v903, %v975
  %v981 = vmul.f32 %v908, %v975
  %v982 = vmul.f32 %v911, %v975
  %v983 = vmul.f32 %v916, %v975
  %v984 = vmul.f32 %v919, %v975
  %v985 = vmul.f32 %v924, %v975
  %v986 = vmul.f32 %v927, %v975
  %v987 = vmul.f32 %v932, %v975
  %v988 = vmul.f32 %v935, %v975
  %v989 = vmul.f32 %v940, %v975
  %v990 = vmul.f32 %v943, %v975
  %v991 = vmul.f32 %v948, %v975
  %v992 = vmul.f32 %v951, %v975
  %993 = vadd.xlane.f32.xlu0 %v977
  %v994 = vpop.xlane.xlu0 %993
  %995 = vadd.xlane.f32.xlu0 %v978
  %v996 = vpop.xlane.xlu0 %995
  %997 = vadd.xlane.f32.xlu0 %v979
  %v998 = vpop.xlane.xlu0 %997
  %999 = vadd.xlane.f32.xlu0 %v980
  %v1000 = vpop.xlane.xlu0 %999
  %1001 = vadd.xlane.f32.xlu0 %v981
  %v1002 = vpop.xlane.xlu0 %1001
  %1003 = vadd.xlane.f32.xlu0 %v982
  %v1004 = vpop.xlane.xlu0 %1003
  %1005 = vadd.xlane.f32.xlu0 %v983
  %v1006 = vpop.xlane.xlu0 %1005
  %1007 = vadd.xlane.f32.xlu0 %v984
  %v1008 = vpop.xlane.xlu0 %1007
  %1009 = vadd.xlane.f32.xlu0 %v985
  %v1010 = vpop.xlane.xlu0 %1009
  %1011 = vadd.xlane.f32.xlu0 %v986
  %v1012 = vpop.xlane.xlu0 %1011
  %1013 = vadd.xlane.f32.xlu0 %v987
  %v1014 = vpop.xlane.xlu0 %1013
  %1015 = vadd.xlane.f32.xlu0 %v988
  %v1016 = vpop.xlane.xlu0 %1015
  %1017 = vadd.xlane.f32.xlu0 %v989
  %v1018 = vpop.xlane.xlu0 %1017
  %1019 = vadd.xlane.f32.xlu0 %v990
  %v1020 = vpop.xlane.xlu0 %1019
  %1021 = vadd.xlane.f32.xlu0 %v991
  %v1022 = vpop.xlane.xlu0 %1021
  %1023 = vadd.xlane.f32.xlu0 %v992
  %v1024 = vpop.xlane.xlu0 %1023
  %v1025 = vstv %s48
  %v1026 = vadd.f32 %v994, %v1025
  %v1027 = vadd.f32 %v996, %v1025
  %v1028 = vadd.f32 %v998, %v1025
  %v1029 = vadd.f32 %v1000, %v1025
  %v1030 = vadd.f32 %v1002, %v1025
  %v1031 = vadd.f32 %v1004, %v1025
  %v1032 = vadd.f32 %v1006, %v1025
  %v1033 = vadd.f32 %v1008, %v1025
  %v1034 = vadd.f32 %v1010, %v1025
  %v1035 = vadd.f32 %v1012, %v1025
  %v1036 = vadd.f32 %v1014, %v1025
  %v1037 = vadd.f32 %v1016, %v1025
  %v1038 = vadd.f32 %v1018, %v1025
  %v1039 = vadd.f32 %v1020, %v1025
  %v1040 = vadd.f32 %v1022, %v1025
  %v1041 = vadd.f32 %v1024, %v1025
  %v1042 = vsub.f32 0.0, %v1026
  %v1043 = vsub.f32 0.0, %v1027
  %v1044 = vsub.f32 0.0, %v1028
  %v1045 = vsub.f32 0.0, %v1029
  %v1046 = vsub.f32 0.0, %v1030
  %v1047 = vsub.f32 0.0, %v1031
  %v1048 = vsub.f32 0.0, %v1032
  %v1049 = vsub.f32 0.0, %v1033
  %v1050 = vsub.f32 0.0, %v1034
  %v1051 = vsub.f32 0.0, %v1035
  %v1052 = vsub.f32 0.0, %v1036
  %v1053 = vsub.f32 0.0, %v1037
  %v1054 = vsub.f32 0.0, %v1038
  %v1055 = vsub.f32 0.0, %v1039
  %v1056 = vsub.f32 0.0, %v1040
  %v1057 = vsub.f32 0.0, %v1041
  %v1058 = vmin.f32 %v1042, 30.0
  %v1059 = vmin.f32 %v1043, 30.0
  %v1060 = vmin.f32 %v1044, 30.0
  %v1061 = vmin.f32 %v1045, 30.0
  %v1062 = vmin.f32 %v1046, 30.0
  %v1063 = vmin.f32 %v1047, 30.0
  %v1064 = vmin.f32 %v1048, 30.0
  %v1065 = vmin.f32 %v1049, 30.0
  %v1066 = vmin.f32 %v1050, 30.0
  %v1067 = vmin.f32 %v1051, 30.0
  %v1068 = vmin.f32 %v1052, 30.0
  %v1069 = vmin.f32 %v1053, 30.0
  %v1070 = vmin.f32 %v1054, 30.0
  %v1071 = vmin.f32 %v1055, 30.0
  %v1072 = vmin.f32 %v1056, 30.0
  %v1073 = vmin.f32 %v1057, 30.0
  %v1074 = vmul.f32 %v1058, 1.442695
  %v1075 = vpow.pop %v1074
  %v1076 = vmul.f32 %v1059, 1.442695
  %v1077 = vpow.pop %v1076
  %v1078 = vmul.f32 %v1060, 1.442695
  %v1079 = vpow.pop %v1078
  %v1080 = vmul.f32 %v1061, 1.442695
  %v1081 = vpow.pop %v1080
  %v1082 = vmul.f32 %v1062, 1.442695
  %v1083 = vpow.pop %v1082
  %v1084 = vmul.f32 %v1063, 1.442695
  %v1085 = vpow.pop %v1084
  %v1086 = vmul.f32 %v1064, 1.442695
  %v1087 = vpow.pop %v1086
  %v1088 = vmul.f32 %v1065, 1.442695
  %v1089 = vpow.pop %v1088
  %v1090 = vmul.f32 %v1066, 1.442695
  %v1091 = vpow.pop %v1090
  %v1092 = vmul.f32 %v1067, 1.442695
  %v1093 = vpow.pop %v1092
  %v1094 = vmul.f32 %v1068, 1.442695
  %v1095 = vpow.pop %v1094
  %v1096 = vmul.f32 %v1069, 1.442695
  %v1097 = vpow.pop %v1096
  %v1098 = vmul.f32 %v1070, 1.442695
  %v1099 = vpow.pop %v1098
  %v1100 = vmul.f32 %v1071, 1.442695
  %v1101 = vpow.pop %v1100
  %v1102 = vmul.f32 %v1072, 1.442695
  %v1103 = vpow.pop %v1102
  %v1104 = vmul.f32 %v1073, 1.442695
  %v1105 = vpow.pop %v1104
  %v1106 = vadd.f32 %v1075, 1.0
  %v1107 = vadd.f32 %v1077, 1.0
  %v1108 = vadd.f32 %v1079, 1.0
  %v1109 = vadd.f32 %v1081, 1.0
  %v1110 = vadd.f32 %v1083, 1.0
  %v1111 = vadd.f32 %v1085, 1.0
  %v1112 = vadd.f32 %v1087, 1.0
  %v1113 = vadd.f32 %v1089, 1.0
  %v1114 = vadd.f32 %v1091, 1.0
  %v1115 = vadd.f32 %v1093, 1.0
  %v1116 = vadd.f32 %v1095, 1.0
  %v1117 = vadd.f32 %v1097, 1.0
  %v1118 = vadd.f32 %v1099, 1.0
  %v1119 = vadd.f32 %v1101, 1.0
  %v1120 = vadd.f32 %v1103, 1.0
  %v1121 = vadd.f32 %v1105, 1.0
  %v1122 = vrcp.pop %v1106
  %v1123 = vrcp.pop %v1107
  %v1124 = vrcp.pop %v1108
  %v1125 = vrcp.pop %v1109
  %v1126 = vrcp.pop %v1110
  %v1127 = vrcp.pop %v1111
  %v1128 = vrcp.pop %v1112
  %v1129 = vrcp.pop %v1113
  %v1130 = vrcp.pop %v1114
  %v1131 = vrcp.pop %v1115
  %v1132 = vrcp.pop %v1116
  %v1133 = vrcp.pop %v1117
  %v1134 = vrcp.pop %v1118
  %v1135 = vrcp.pop %v1119
  %v1136 = vrcp.pop %v1120
  %v1137 = vrcp.pop %v1121
  %v1138 = vmul.f32 %v1122, %v892
  %v1139 = vmul.f32 %v1123, %v895
  %v1140 = vmul.f32 %v1124, %v900
  %v1141 = vmul.f32 %v1125, %v903
  %v1142 = vmul.f32 %v1126, %v908
  %v1143 = vmul.f32 %v1127, %v911
  %v1144 = vmul.f32 %v1128, %v916
  %v1145 = vmul.f32 %v1129, %v919
  %v1146 = vmul.f32 %v1130, %v924
  %v1147 = vmul.f32 %v1131, %v927
  %v1148 = vmul.f32 %v1132, %v932
  %v1149 = vmul.f32 %v1133, %v935
  %v1150 = vmul.f32 %v1134, %v940
  %v1151 = vmul.f32 %v1135, %v943
  %v1152 = vmul.f32 %v1136, %v948
  %v1153 = vmul.f32 %v1137, %v951
  %v1154 = vpack.c.bf16 %v895, %v892
  %v1155 = vpack.c.bf16 %v903, %v900
  %v1156 = vpack.c.bf16 %v911, %v908
  %v1157 = vpack.c.bf16 %v919, %v916
  %v1158 = vpack.c.bf16 %v927, %v924
  %v1159 = vpack.c.bf16 %v935, %v932
  %v1160 = vpack.c.bf16 %v943, %v940
  %v1161 = vpack.c.bf16 %v951, %v948
  %v1178 = vunpack.c.l.b16 %v954
  %v1179 = vunpack.c.l.b16 %v955
  %v1180 = vunpack.c.l.b16 %v956
  %v1181 = vunpack.c.l.b16 %v957
  %v1182 = vunpack.c.l.b16 %v958
  %v1183 = vunpack.c.l.b16 %v959
  %v1184 = vunpack.c.l.b16 %v960
  %v1185 = vunpack.c.l.b16 %v961
  %v1186 = vunpack.c.l.b16 %v962
  %v1187 = vunpack.c.l.b16 %v963
  %v1188 = vunpack.c.l.b16 %v964
  %v1189 = vunpack.c.l.b16 %v965
  %v1190 = vunpack.c.l.b16 %v966
  %v1191 = vunpack.c.l.b16 %v967
  %v1192 = vunpack.c.l.b16 %v968
  %v1193 = vunpack.c.l.b16 %v969
  %v1194 = vpack.c.b16 %v1179, %v1178
  %v1195 = vpack.c.b16 %v1181, %v1180
  %v1196 = vpack.c.b16 %v1183, %v1182
  %v1197 = vpack.c.b16 %v1185, %v1184
  %v1198 = vpack.c.b16 %v1187, %v1186
  %v1199 = vpack.c.b16 %v1189, %v1188
  %v1200 = vpack.c.b16 %v1191, %v1190
  %v1201 = vpack.c.b16 %v1193, %v1192
  %1210 = vmatprep.subr.bf16.mxu0 0
  %1211 = vmatpush1.bf16.msra.mxu0 %v1161
  %1212 = vmatprep.subr.bf16.mxu0 0
  %1213 = vmatpush1.bf16.msra.mxu0 %v1160
  %1214 = vmatprep.subr.bf16.mxu0 0
  %1215 = vmatpush1.bf16.msra.mxu0 %v1159
  %1216 = vmatprep.subr.bf16.mxu0 0
  %1217 = vmatpush1.bf16.msra.mxu0 %v1158
  %1218 = vmatprep.subr.bf16.mxu0 0
  %1219 = vmatpush1.bf16.msra.mxu0 %v1157
  %1220 = vmatprep.subr.bf16.mxu0 0
  %1221 = vmatpush1.bf16.msra.mxu0 %v1156
  %1222 = vmatprep.subr.bf16.mxu0 0
  %1223 = vmatpush1.bf16.msra.mxu0 %v1155
  %1224 = vmatprep.subr.bf16.mxu0 0
  %1225 = vmatpush1.bf16.msra.mxu0 %v1154
  %1226 = vmatprep.subr.bf16.mxu0 0
  %1227 = vmatpush2.bf16.msra.mxu0 0
  %1228 = vmatprep.subr.bf16.mxu0 0
  %1229 = vmatpush2.bf16.msra.mxu0 0
  %1230 = vmatprep.subr.bf16.mxu0 0
  %1231 = vmatpush2.bf16.msra.mxu0 0
  %1232 = vmatprep.subr.bf16.mxu0 0
  %1233 = vmatpush2.bf16.msra.mxu0 0
  %1234 = vmatprep.subr.bf16.mxu0 0
  %1235 = vmatpush2.bf16.msra.mxu0 0
  %1236 = vmatprep.subr.bf16.mxu0 0
  %1237 = vmatpush2.bf16.msra.mxu0 0
  %1238 = vmatprep.subr.bf16.mxu0 0
  %1239 = vmatpush2.bf16.msra.mxu0 0
  %1240 = vmatprep.subr.bf16.mxu0 0
  %1241 = vmatpush2.bf16.msra.mxu0 0
  %1242 = vmatprep.mubr.bf16.mxu0 0
  %1243 = vmatmul.mubr.bf16.gmra.mxu0 %v1194
  %v1244 = vpop.f32.mrf.mxu0
  %v1245 = vadd.f32 0.0, %v1244
  %v1246 = vpop.f32.mrf.mxu0
  %v1247 = vpop.f32.mrf.mxu0
  %v1248 = vadd.f32 0.0, %v1247
  %v1249 = vpop.f32.mrf.mxu0
  %1250 = vmatprep.mubr.bf16.mxu0 0
  %1251 = vmatmul.mubr.bf16.gmra.mxu0 %v1195
  %v1252 = vpop.f32.mrf.mxu0
  %v1253 = vadd.f32 0.0, %v1252
  %v1254 = vpop.f32.mrf.mxu0
  %v1255 = vpop.f32.mrf.mxu0
  %v1256 = vadd.f32 0.0, %v1255
  %v1257 = vpop.f32.mrf.mxu0
  %1258 = vmatprep.mubr.bf16.mxu0 0
  %1259 = vmatmul.mubr.bf16.gmra.mxu0 %v1196
  %v1260 = vpop.f32.mrf.mxu0
  %v1261 = vadd.f32 0.0, %v1260
  %v1262 = vpop.f32.mrf.mxu0
  %v1263 = vpop.f32.mrf.mxu0
  %v1264 = vadd.f32 0.0, %v1263
  %v1265 = vpop.f32.mrf.mxu0
  %1266 = vmatprep.mubr.bf16.mxu0 0
  %1267 = vmatmul.mubr.bf16.gmra.mxu0 %v1197
  %v1268 = vpop.f32.mrf.mxu0
  %v1269 = vadd.f32 0.0, %v1268
  %v1270 = vpop.f32.mrf.mxu0
  %v1271 = vpop.f32.mrf.mxu0
  %v1272 = vadd.f32 0.0, %v1271
  %v1273 = vpop.f32.mrf.mxu0
  %1274 = vmatprep.mubr.bf16.mxu0 0
  %1275 = vmatmul.mubr.bf16.gmra.mxu0 %v1198
  %v1276 = vpop.f32.mrf.mxu0
  %v1277 = vadd.f32 0.0, %v1276
  %v1278 = vpop.f32.mrf.mxu0
  %v1279 = vpop.f32.mrf.mxu0
  %v1280 = vadd.f32 0.0, %v1279
  %v1281 = vpop.f32.mrf.mxu0
  %1282 = vmatprep.mubr.bf16.mxu0 0
  %1283 = vmatmul.mubr.bf16.gmra.mxu0 %v1199
  %v1284 = vpop.f32.mrf.mxu0
  %v1285 = vadd.f32 0.0, %v1284
  %v1286 = vpop.f32.mrf.mxu0
  %v1287 = vpop.f32.mrf.mxu0
  %v1288 = vadd.f32 0.0, %v1287
  %v1289 = vpop.f32.mrf.mxu0
  %1290 = vmatprep.mubr.bf16.mxu0 0
  %1291 = vmatmul.mubr.bf16.gmra.mxu0 %v1200
  %v1292 = vpop.f32.mrf.mxu0
  %v1293 = vadd.f32 0.0, %v1292
  %v1294 = vpop.f32.mrf.mxu0
  %v1295 = vpop.f32.mrf.mxu0
  %v1296 = vadd.f32 0.0, %v1295
  %v1297 = vpop.f32.mrf.mxu0
  %1298 = vmatprep.mubr.bf16.mxu0 0
  %1299 = vmatmul.mubr.bf16.gmra.mxu0 %v1201
  %v1300 = vpop.f32.mrf.mxu0
  %v1301 = vadd.f32 0.0, %v1300
  %v1302 = vpop.f32.mrf.mxu0
  %v1303 = vpop.f32.mrf.mxu0
  %v1304 = vadd.f32 0.0, %v1303
  %v1305 = vpop.f32.mrf.mxu0
  %1306 = vdwg.mxu0
  %v1307 = vmul.f32 %v1245, %v975
  %v1308 = vmul.f32 %v1248, %v975
  %v1309 = vmul.f32 %v1253, %v975
  %v1310 = vmul.f32 %v1256, %v975
  %v1311 = vmul.f32 %v1261, %v975
  %v1312 = vmul.f32 %v1264, %v975
  %v1313 = vmul.f32 %v1269, %v975
  %v1314 = vmul.f32 %v1272, %v975
  %v1315 = vmul.f32 %v1277, %v975
  %v1316 = vmul.f32 %v1280, %v975
  %v1317 = vmul.f32 %v1285, %v975
  %v1318 = vmul.f32 %v1288, %v975
  %v1319 = vmul.f32 %v1293, %v975
  %v1320 = vmul.f32 %v1296, %v975
  %v1321 = vmul.f32 %v1301, %v975
  %v1322 = vmul.f32 %v1304, %v975
  %1323 = vadd.xlane.f32.xlu0 %v1307
  %v1324 = vpop.xlane.xlu0 %1323
  %1325 = vadd.xlane.f32.xlu0 %v1308
  %v1326 = vpop.xlane.xlu0 %1325
  %1327 = vadd.xlane.f32.xlu0 %v1309
  %v1328 = vpop.xlane.xlu0 %1327
  %1329 = vadd.xlane.f32.xlu0 %v1310
  %v1330 = vpop.xlane.xlu0 %1329
  %1331 = vadd.xlane.f32.xlu0 %v1311
  %v1332 = vpop.xlane.xlu0 %1331
  %1333 = vadd.xlane.f32.xlu0 %v1312
  %v1334 = vpop.xlane.xlu0 %1333
  %1335 = vadd.xlane.f32.xlu0 %v1313
  %v1336 = vpop.xlane.xlu0 %1335
  %1337 = vadd.xlane.f32.xlu0 %v1314
  %v1338 = vpop.xlane.xlu0 %1337
  %1339 = vadd.xlane.f32.xlu0 %v1315
  %v1340 = vpop.xlane.xlu0 %1339
  %1341 = vadd.xlane.f32.xlu0 %v1316
  %v1342 = vpop.xlane.xlu0 %1341
  %1343 = vadd.xlane.f32.xlu0 %v1317
  %v1344 = vpop.xlane.xlu0 %1343
  %1345 = vadd.xlane.f32.xlu0 %v1318
  %v1346 = vpop.xlane.xlu0 %1345
  %1347 = vadd.xlane.f32.xlu0 %v1319
  %v1348 = vpop.xlane.xlu0 %1347
  %1349 = vadd.xlane.f32.xlu0 %v1320
  %v1350 = vpop.xlane.xlu0 %1349
  %1351 = vadd.xlane.f32.xlu0 %v1321
  %v1352 = vpop.xlane.xlu0 %1351
  %1353 = vadd.xlane.f32.xlu0 %v1322
  %v1354 = vpop.xlane.xlu0 %1353
  %v1355 = vadd.f32 %v1324, %v1025
  %v1356 = vadd.f32 %v1326, %v1025
  %v1357 = vadd.f32 %v1328, %v1025
  %v1358 = vadd.f32 %v1330, %v1025
  %v1359 = vadd.f32 %v1332, %v1025
  %v1360 = vadd.f32 %v1334, %v1025
  %v1361 = vadd.f32 %v1336, %v1025
  %v1362 = vadd.f32 %v1338, %v1025
  %v1363 = vadd.f32 %v1340, %v1025
  %v1364 = vadd.f32 %v1342, %v1025
  %v1365 = vadd.f32 %v1344, %v1025
  %v1366 = vadd.f32 %v1346, %v1025
  %v1367 = vadd.f32 %v1348, %v1025
  %v1368 = vadd.f32 %v1350, %v1025
  %v1369 = vadd.f32 %v1352, %v1025
  %v1370 = vadd.f32 %v1354, %v1025
  %v1371 = vsub.f32 0.0, %v1355
  %v1372 = vsub.f32 0.0, %v1356
  %v1373 = vsub.f32 0.0, %v1357
  %v1374 = vsub.f32 0.0, %v1358
  %v1375 = vsub.f32 0.0, %v1359
  %v1376 = vsub.f32 0.0, %v1360
  %v1377 = vsub.f32 0.0, %v1361
  %v1378 = vsub.f32 0.0, %v1362
  %v1379 = vsub.f32 0.0, %v1363
  %v1380 = vsub.f32 0.0, %v1364
  %v1381 = vsub.f32 0.0, %v1365
  %v1382 = vsub.f32 0.0, %v1366
  %v1383 = vsub.f32 0.0, %v1367
  %v1384 = vsub.f32 0.0, %v1368
  %v1385 = vsub.f32 0.0, %v1369
  %v1386 = vsub.f32 0.0, %v1370
  %v1387 = vmin.f32 %v1371, 30.0
  %v1388 = vmin.f32 %v1372, 30.0
  %v1389 = vmin.f32 %v1373, 30.0
  %v1390 = vmin.f32 %v1374, 30.0
  %v1391 = vmin.f32 %v1375, 30.0
  %v1392 = vmin.f32 %v1376, 30.0
  %v1393 = vmin.f32 %v1377, 30.0
  %v1394 = vmin.f32 %v1378, 30.0
  %v1395 = vmin.f32 %v1379, 30.0
  %v1396 = vmin.f32 %v1380, 30.0
  %v1397 = vmin.f32 %v1381, 30.0
  %v1398 = vmin.f32 %v1382, 30.0
  %v1399 = vmin.f32 %v1383, 30.0
  %v1400 = vmin.f32 %v1384, 30.0
  %v1401 = vmin.f32 %v1385, 30.0
  %v1402 = vmin.f32 %v1386, 30.0
  %v1403 = vmul.f32 %v1387, 1.442695
  %v1404 = vpow.pop %v1403
  %v1405 = vmul.f32 %v1388, 1.442695
  %v1406 = vpow.pop %v1405
  %v1407 = vmul.f32 %v1389, 1.442695
  %v1408 = vpow.pop %v1407
  %v1409 = vmul.f32 %v1390, 1.442695
  %v1410 = vpow.pop %v1409
  %v1411 = vmul.f32 %v1391, 1.442695
  %v1412 = vpow.pop %v1411
  %v1413 = vmul.f32 %v1392, 1.442695
  %v1414 = vpow.pop %v1413
  %v1415 = vmul.f32 %v1393, 1.442695
  %v1416 = vpow.pop %v1415
  %v1417 = vmul.f32 %v1394, 1.442695
  %v1418 = vpow.pop %v1417
  %v1419 = vmul.f32 %v1395, 1.442695
  %v1420 = vpow.pop %v1419
  %v1421 = vmul.f32 %v1396, 1.442695
  %v1422 = vpow.pop %v1421
  %v1423 = vmul.f32 %v1397, 1.442695
  %v1424 = vpow.pop %v1423
  %v1425 = vmul.f32 %v1398, 1.442695
  %v1426 = vpow.pop %v1425
  %v1427 = vmul.f32 %v1399, 1.442695
  %v1428 = vpow.pop %v1427
  %v1429 = vmul.f32 %v1400, 1.442695
  %v1430 = vpow.pop %v1429
  %v1431 = vmul.f32 %v1401, 1.442695
  %v1432 = vpow.pop %v1431
  %v1433 = vmul.f32 %v1402, 1.442695
  %v1434 = vpow.pop %v1433
  %v1435 = vadd.f32 %v1404, 1.0
  %v1436 = vadd.f32 %v1406, 1.0
  %v1437 = vadd.f32 %v1408, 1.0
  %v1438 = vadd.f32 %v1410, 1.0
  %v1439 = vadd.f32 %v1412, 1.0
  %v1440 = vadd.f32 %v1414, 1.0
  %v1441 = vadd.f32 %v1416, 1.0
  %v1442 = vadd.f32 %v1418, 1.0
  %v1443 = vadd.f32 %v1420, 1.0
  %v1444 = vadd.f32 %v1422, 1.0
  %v1445 = vadd.f32 %v1424, 1.0
  %v1446 = vadd.f32 %v1426, 1.0
  %v1447 = vadd.f32 %v1428, 1.0
  %v1448 = vadd.f32 %v1430, 1.0
  %v1449 = vadd.f32 %v1432, 1.0
  %v1450 = vadd.f32 %v1434, 1.0
  %v1451 = vrcp.pop %v1435
  %v1452 = vrcp.pop %v1436
  %v1453 = vrcp.pop %v1437
  %v1454 = vrcp.pop %v1438
  %v1455 = vrcp.pop %v1439
  %v1456 = vrcp.pop %v1440
  %v1457 = vrcp.pop %v1441
  %v1458 = vrcp.pop %v1442
  %v1459 = vrcp.pop %v1443
  %v1460 = vrcp.pop %v1444
  %v1461 = vrcp.pop %v1445
  %v1462 = vrcp.pop %v1446
  %v1463 = vrcp.pop %v1447
  %v1464 = vrcp.pop %v1448
  %v1465 = vrcp.pop %v1449
  %v1466 = vrcp.pop %v1450
  %v1467 = vmul.f32 %v1451, %v1245
  %v1468 = vmul.f32 %v1452, %v1248
  %v1469 = vmul.f32 %v1453, %v1253
  %v1470 = vmul.f32 %v1454, %v1256
  %v1471 = vmul.f32 %v1455, %v1261
  %v1472 = vmul.f32 %v1456, %v1264
  %v1473 = vmul.f32 %v1457, %v1269
  %v1474 = vmul.f32 %v1458, %v1272
  %v1475 = vmul.f32 %v1459, %v1277
  %v1476 = vmul.f32 %v1460, %v1280
  %v1477 = vmul.f32 %v1461, %v1285
  %v1478 = vmul.f32 %v1462, %v1288
  %v1479 = vmul.f32 %v1463, %v1293
  %v1480 = vmul.f32 %v1464, %v1296
  %v1481 = vmul.f32 %v1465, %v1301
  %v1482 = vmul.f32 %v1466, %v1304
  %v1483 = vadd.f32 %v1138, %v1467
  %v1484 = vadd.f32 %v1139, %v1468
  %v1485 = vadd.f32 %v1140, %v1469
  %v1486 = vadd.f32 %v1141, %v1470
  %v1487 = vadd.f32 %v1142, %v1471
  %v1488 = vadd.f32 %v1143, %v1472
  %v1489 = vadd.f32 %v1144, %v1473
  %v1490 = vadd.f32 %v1145, %v1474
  %v1491 = vadd.f32 %v1146, %v1475
  %v1492 = vadd.f32 %v1147, %v1476
  %v1493 = vadd.f32 %v1148, %v1477
  %v1494 = vadd.f32 %v1149, %v1478
  %v1495 = vadd.f32 %v1150, %v1479
  %v1496 = vadd.f32 %v1151, %v1480
  %v1497 = vadd.f32 %v1152, %v1481
  %v1498 = vadd.f32 %v1153, %v1482
  %v1499 = vpack.c.bf16 %v1248, %v1245
  %v1500 = vpack.c.bf16 %v1256, %v1253
  %v1501 = vpack.c.bf16 %v1264, %v1261
  %v1502 = vpack.c.bf16 %v1272, %v1269
  %v1503 = vpack.c.bf16 %v1280, %v1277
  %v1504 = vpack.c.bf16 %v1288, %v1285
  %v1505 = vpack.c.bf16 %v1296, %v1293
  %v1506 = vpack.c.bf16 %v1304, %v1301
  %1507 = vmatprep.subr.bf16.mxu0 0
  %1508 = vmatpush1.bf16.msra.mxu0 %v1506
  %1509 = vmatprep.subr.bf16.mxu0 0
  %1510 = vmatpush1.bf16.msra.mxu0 %v1505
  %1511 = vmatprep.subr.bf16.mxu0 0
  %1512 = vmatpush1.bf16.msra.mxu0 %v1504
  %1513 = vmatprep.subr.bf16.mxu0 0
  %1514 = vmatpush1.bf16.msra.mxu0 %v1503
  %1515 = vmatprep.subr.bf16.mxu0 0
  %1516 = vmatpush1.bf16.msra.mxu0 %v1502
  %1517 = vmatprep.subr.bf16.mxu0 0
  %1518 = vmatpush1.bf16.msra.mxu0 %v1501
  %1519 = vmatprep.subr.bf16.mxu0 0
  %1520 = vmatpush1.bf16.msra.mxu0 %v1500
  %1521 = vmatprep.subr.bf16.mxu0 0
  %1522 = vmatpush1.bf16.msra.mxu0 %v1499
  %1523 = vmatprep.subr.bf16.mxu0 0
  %1524 = vmatpush2.bf16.msra.mxu0 0
  %1525 = vmatprep.subr.bf16.mxu0 0
  %1526 = vmatpush2.bf16.msra.mxu0 0
  %1527 = vmatprep.subr.bf16.mxu0 0
  %1528 = vmatpush2.bf16.msra.mxu0 0
  %1529 = vmatprep.subr.bf16.mxu0 0
  %1530 = vmatpush2.bf16.msra.mxu0 0
  %1531 = vmatprep.subr.bf16.mxu0 0
  %1532 = vmatpush2.bf16.msra.mxu0 0
  %1533 = vmatprep.subr.bf16.mxu0 0
  %1534 = vmatpush2.bf16.msra.mxu0 0
  %1535 = vmatprep.subr.bf16.mxu0 0
  %1536 = vmatpush2.bf16.msra.mxu0 0
  %1537 = vmatprep.subr.bf16.mxu0 0
  %1538 = vmatpush2.bf16.msra.mxu0 0
  %1539 = vmatprep.mubr.bf16.mxu0 0
  %1540 = vmatmul.mubr.bf16.gmra.mxu0 %v1194
  %v1541 = vpop.f32.mrf.mxu0
  %v1542 = vadd.f32 0.0, %v1541
  %v1543 = vpop.f32.mrf.mxu0
  %v1544 = vpop.f32.mrf.mxu0
  %v1545 = vadd.f32 0.0, %v1544
  %v1546 = vpop.f32.mrf.mxu0
  %1547 = vmatprep.mubr.bf16.mxu0 0
  %1548 = vmatmul.mubr.bf16.gmra.mxu0 %v1195
  %v1549 = vpop.f32.mrf.mxu0
  %v1550 = vadd.f32 0.0, %v1549
  %v1551 = vpop.f32.mrf.mxu0
  %v1552 = vpop.f32.mrf.mxu0
  %v1553 = vadd.f32 0.0, %v1552
  %v1554 = vpop.f32.mrf.mxu0
  %1555 = vmatprep.mubr.bf16.mxu0 0
  %1556 = vmatmul.mubr.bf16.gmra.mxu0 %v1196
  %v1557 = vpop.f32.mrf.mxu0
  %v1558 = vadd.f32 0.0, %v1557
  %v1559 = vpop.f32.mrf.mxu0
  %v1560 = vpop.f32.mrf.mxu0
  %v1561 = vadd.f32 0.0, %v1560
  %v1562 = vpop.f32.mrf.mxu0
  %1563 = vmatprep.mubr.bf16.mxu0 0
  %1564 = vmatmul.mubr.bf16.gmra.mxu0 %v1197
  %v1565 = vpop.f32.mrf.mxu0
  %v1566 = vadd.f32 0.0, %v1565
  %v1567 = vpop.f32.mrf.mxu0
  %v1568 = vpop.f32.mrf.mxu0
  %v1569 = vadd.f32 0.0, %v1568
  %v1570 = vpop.f32.mrf.mxu0
  %1571 = vmatprep.mubr.bf16.mxu0 0
  %1572 = vmatmul.mubr.bf16.gmra.mxu0 %v1198
  %v1573 = vpop.f32.mrf.mxu0
  %v1574 = vadd.f32 0.0, %v1573
  %v1575 = vpop.f32.mrf.mxu0
  %v1576 = vpop.f32.mrf.mxu0
  %v1577 = vadd.f32 0.0, %v1576
  %v1578 = vpop.f32.mrf.mxu0
  %1579 = vmatprep.mubr.bf16.mxu0 0
  %1580 = vmatmul.mubr.bf16.gmra.mxu0 %v1199
  %v1581 = vpop.f32.mrf.mxu0
  %v1582 = vadd.f32 0.0, %v1581
  %v1583 = vpop.f32.mrf.mxu0
  %v1584 = vpop.f32.mrf.mxu0
  %v1585 = vadd.f32 0.0, %v1584
  %v1586 = vpop.f32.mrf.mxu0
  %1587 = vmatprep.mubr.bf16.mxu0 0
  %1588 = vmatmul.mubr.bf16.gmra.mxu0 %v1200
  %v1589 = vpop.f32.mrf.mxu0
  %v1590 = vadd.f32 0.0, %v1589
  %v1591 = vpop.f32.mrf.mxu0
  %v1592 = vpop.f32.mrf.mxu0
  %v1593 = vadd.f32 0.0, %v1592
  %v1594 = vpop.f32.mrf.mxu0
  %1595 = vmatprep.mubr.bf16.mxu0 0
  %1596 = vmatmul.mubr.bf16.gmra.mxu0 %v1201
  %v1597 = vpop.f32.mrf.mxu0
  %v1598 = vadd.f32 0.0, %v1597
  %v1599 = vpop.f32.mrf.mxu0
  %v1600 = vpop.f32.mrf.mxu0
  %v1601 = vadd.f32 0.0, %v1600
  %v1602 = vpop.f32.mrf.mxu0
  %1603 = vdwg.mxu0
  %v1604 = vmul.f32 %v1542, %v975
  %v1605 = vmul.f32 %v1545, %v975
  %v1606 = vmul.f32 %v1550, %v975
  %v1607 = vmul.f32 %v1553, %v975
  %v1608 = vmul.f32 %v1558, %v975
  %v1609 = vmul.f32 %v1561, %v975
  %v1610 = vmul.f32 %v1566, %v975
  %v1611 = vmul.f32 %v1569, %v975
  %v1612 = vmul.f32 %v1574, %v975
  %v1613 = vmul.f32 %v1577, %v975
  %v1614 = vmul.f32 %v1582, %v975
  %v1615 = vmul.f32 %v1585, %v975
  %v1616 = vmul.f32 %v1590, %v975
  %v1617 = vmul.f32 %v1593, %v975
  %v1618 = vmul.f32 %v1598, %v975
  %v1619 = vmul.f32 %v1601, %v975
  %1620 = vadd.xlane.f32.xlu0 %v1604
  %v1621 = vpop.xlane.xlu0 %1620
  %1622 = vadd.xlane.f32.xlu0 %v1605
  %v1623 = vpop.xlane.xlu0 %1622
  %1624 = vadd.xlane.f32.xlu0 %v1606
  %v1625 = vpop.xlane.xlu0 %1624
  %1626 = vadd.xlane.f32.xlu0 %v1607
  %v1627 = vpop.xlane.xlu0 %1626
  %1628 = vadd.xlane.f32.xlu0 %v1608
  %v1629 = vpop.xlane.xlu0 %1628
  %1630 = vadd.xlane.f32.xlu0 %v1609
  %v1631 = vpop.xlane.xlu0 %1630
  %1632 = vadd.xlane.f32.xlu0 %v1610
  %v1633 = vpop.xlane.xlu0 %1632
  %1634 = vadd.xlane.f32.xlu0 %v1611
  %v1635 = vpop.xlane.xlu0 %1634
  %1636 = vadd.xlane.f32.xlu0 %v1612
  %v1637 = vpop.xlane.xlu0 %1636
  %1638 = vadd.xlane.f32.xlu0 %v1613
  %v1639 = vpop.xlane.xlu0 %1638
  %1640 = vadd.xlane.f32.xlu0 %v1614
  %v1641 = vpop.xlane.xlu0 %1640
  %1642 = vadd.xlane.f32.xlu0 %v1615
  %v1643 = vpop.xlane.xlu0 %1642
  %1644 = vadd.xlane.f32.xlu0 %v1616
  %v1645 = vpop.xlane.xlu0 %1644
  %1646 = vadd.xlane.f32.xlu0 %v1617
  %v1647 = vpop.xlane.xlu0 %1646
  %1648 = vadd.xlane.f32.xlu0 %v1618
  %v1649 = vpop.xlane.xlu0 %1648
  %1650 = vadd.xlane.f32.xlu0 %v1619
  %v1651 = vpop.xlane.xlu0 %1650
  %v1652 = vadd.f32 %v1621, %v1025
  %v1653 = vadd.f32 %v1623, %v1025
  %v1654 = vadd.f32 %v1625, %v1025
  %v1655 = vadd.f32 %v1627, %v1025
  %v1656 = vadd.f32 %v1629, %v1025
  %v1657 = vadd.f32 %v1631, %v1025
  %v1658 = vadd.f32 %v1633, %v1025
  %v1659 = vadd.f32 %v1635, %v1025
  %v1660 = vadd.f32 %v1637, %v1025
  %v1661 = vadd.f32 %v1639, %v1025
  %v1662 = vadd.f32 %v1641, %v1025
  %v1663 = vadd.f32 %v1643, %v1025
  %v1664 = vadd.f32 %v1645, %v1025
  %v1665 = vadd.f32 %v1647, %v1025
  %v1666 = vadd.f32 %v1649, %v1025
  %v1667 = vadd.f32 %v1651, %v1025
  %v1668 = vsub.f32 0.0, %v1652
  %v1669 = vsub.f32 0.0, %v1653
  %v1670 = vsub.f32 0.0, %v1654
  %v1671 = vsub.f32 0.0, %v1655
  %v1672 = vsub.f32 0.0, %v1656
  %v1673 = vsub.f32 0.0, %v1657
  %v1674 = vsub.f32 0.0, %v1658
  %v1675 = vsub.f32 0.0, %v1659
  %v1676 = vsub.f32 0.0, %v1660
  %v1677 = vsub.f32 0.0, %v1661
  %v1678 = vsub.f32 0.0, %v1662
  %v1679 = vsub.f32 0.0, %v1663
  %v1680 = vsub.f32 0.0, %v1664
  %v1681 = vsub.f32 0.0, %v1665
  %v1682 = vsub.f32 0.0, %v1666
  %v1683 = vsub.f32 0.0, %v1667
  %v1684 = vmin.f32 %v1668, 30.0
  %v1685 = vmin.f32 %v1669, 30.0
  %v1686 = vmin.f32 %v1670, 30.0
  %v1687 = vmin.f32 %v1671, 30.0
  %v1688 = vmin.f32 %v1672, 30.0
  %v1689 = vmin.f32 %v1673, 30.0
  %v1690 = vmin.f32 %v1674, 30.0
  %v1691 = vmin.f32 %v1675, 30.0
  %v1692 = vmin.f32 %v1676, 30.0
  %v1693 = vmin.f32 %v1677, 30.0
  %v1694 = vmin.f32 %v1678, 30.0
  %v1695 = vmin.f32 %v1679, 30.0
  %v1696 = vmin.f32 %v1680, 30.0
  %v1697 = vmin.f32 %v1681, 30.0
  %v1698 = vmin.f32 %v1682, 30.0
  %v1699 = vmin.f32 %v1683, 30.0
  %v1700 = vmul.f32 %v1684, 1.442695
  %v1701 = vpow.pop %v1700
  %v1702 = vmul.f32 %v1685, 1.442695
  %v1703 = vpow.pop %v1702
  %v1704 = vmul.f32 %v1686, 1.442695
  %v1705 = vpow.pop %v1704
  %v1706 = vmul.f32 %v1687, 1.442695
  %v1707 = vpow.pop %v1706
  %v1708 = vmul.f32 %v1688, 1.442695
  %v1709 = vpow.pop %v1708
  %v1710 = vmul.f32 %v1689, 1.442695
  %v1711 = vpow.pop %v1710
  %v1712 = vmul.f32 %v1690, 1.442695
  %v1713 = vpow.pop %v1712
  %v1714 = vmul.f32 %v1691, 1.442695
  %v1715 = vpow.pop %v1714
  %v1716 = vmul.f32 %v1692, 1.442695
  %v1717 = vpow.pop %v1716
  %v1718 = vmul.f32 %v1693, 1.442695
  %v1719 = vpow.pop %v1718
  %v1720 = vmul.f32 %v1694, 1.442695
  %v1721 = vpow.pop %v1720
  %v1722 = vmul.f32 %v1695, 1.442695
  %v1723 = vpow.pop %v1722
  %v1724 = vmul.f32 %v1696, 1.442695
  %v1725 = vpow.pop %v1724
  %v1726 = vmul.f32 %v1697, 1.442695
  %v1727 = vpow.pop %v1726
  %v1728 = vmul.f32 %v1698, 1.442695
  %v1729 = vpow.pop %v1728
  %v1730 = vmul.f32 %v1699, 1.442695
  %v1731 = vpow.pop %v1730
  %v1732 = vadd.f32 %v1701, 1.0
  %v1733 = vadd.f32 %v1703, 1.0
  %v1734 = vadd.f32 %v1705, 1.0
  %v1735 = vadd.f32 %v1707, 1.0
  %v1736 = vadd.f32 %v1709, 1.0
  %v1737 = vadd.f32 %v1711, 1.0
  %v1738 = vadd.f32 %v1713, 1.0
  %v1739 = vadd.f32 %v1715, 1.0
  %v1740 = vadd.f32 %v1717, 1.0
  %v1741 = vadd.f32 %v1719, 1.0
  %v1742 = vadd.f32 %v1721, 1.0
  %v1743 = vadd.f32 %v1723, 1.0
  %v1744 = vadd.f32 %v1725, 1.0
  %v1745 = vadd.f32 %v1727, 1.0
  %v1746 = vadd.f32 %v1729, 1.0
  %v1747 = vadd.f32 %v1731, 1.0
  %v1748 = vrcp.pop %v1732
  %v1749 = vrcp.pop %v1733
  %v1750 = vrcp.pop %v1734
  %v1751 = vrcp.pop %v1735
  %v1752 = vrcp.pop %v1736
  %v1753 = vrcp.pop %v1737
  %v1754 = vrcp.pop %v1738
  %v1755 = vrcp.pop %v1739
  %v1756 = vrcp.pop %v1740
  %v1757 = vrcp.pop %v1741
  %v1758 = vrcp.pop %v1742
  %v1759 = vrcp.pop %v1743
  %v1760 = vrcp.pop %v1744
  %v1761 = vrcp.pop %v1745
  %v1762 = vrcp.pop %v1746
  %v1763 = vrcp.pop %v1747
  %v1764 = vmul.f32 %v1748, %v1542
  %v1765 = vmul.f32 %v1749, %v1545
  %v1766 = vmul.f32 %v1750, %v1550
  %v1767 = vmul.f32 %v1751, %v1553
  %v1768 = vmul.f32 %v1752, %v1558
  %v1769 = vmul.f32 %v1753, %v1561
  %v1770 = vmul.f32 %v1754, %v1566
  %v1771 = vmul.f32 %v1755, %v1569
  %v1772 = vmul.f32 %v1756, %v1574
  %v1773 = vmul.f32 %v1757, %v1577
  %v1774 = vmul.f32 %v1758, %v1582
  %v1775 = vmul.f32 %v1759, %v1585
  %v1776 = vmul.f32 %v1760, %v1590
  %v1777 = vmul.f32 %v1761, %v1593
  %v1778 = vmul.f32 %v1762, %v1598
  %v1779 = vmul.f32 %v1763, %v1601
  %v1780 = vadd.f32 %v1483, %v1764
  %v1781 = vadd.f32 %v1484, %v1765
  %v1782 = vadd.f32 %v1485, %v1766
  %v1783 = vadd.f32 %v1486, %v1767
  %v1784 = vadd.f32 %v1487, %v1768
  %v1785 = vadd.f32 %v1488, %v1769
  %v1786 = vadd.f32 %v1489, %v1770
  %v1787 = vadd.f32 %v1490, %v1771
  %v1788 = vadd.f32 %v1491, %v1772
  %v1789 = vadd.f32 %v1492, %v1773
  %v1790 = vadd.f32 %v1493, %v1774
  %v1791 = vadd.f32 %v1494, %v1775
  %v1792 = vadd.f32 %v1495, %v1776
  %v1793 = vadd.f32 %v1496, %v1777
  %v1794 = vadd.f32 %v1497, %v1778
  %v1795 = vadd.f32 %v1498, %v1779
  %v1796 = vpack.c.bf16 %v1545, %v1542
  %v1797 = vpack.c.bf16 %v1553, %v1550
  %v1798 = vpack.c.bf16 %v1561, %v1558
  %v1799 = vpack.c.bf16 %v1569, %v1566
  %v1800 = vpack.c.bf16 %v1577, %v1574
  %v1801 = vpack.c.bf16 %v1585, %v1582
  %v1802 = vpack.c.bf16 %v1593, %v1590
  %v1803 = vpack.c.bf16 %v1601, %v1598
  %1804 = vmatprep.subr.bf16.mxu0 0
  %1805 = vmatpush1.bf16.msra.mxu0 %v1803
  %1806 = vmatprep.subr.bf16.mxu0 0
  %1807 = vmatpush1.bf16.msra.mxu0 %v1802
  %1808 = vmatprep.subr.bf16.mxu0 0
  %1809 = vmatpush1.bf16.msra.mxu0 %v1801
  %1810 = vmatprep.subr.bf16.mxu0 0
  %1811 = vmatpush1.bf16.msra.mxu0 %v1800
  %1812 = vmatprep.subr.bf16.mxu0 0
  %1813 = vmatpush1.bf16.msra.mxu0 %v1799
  %1814 = vmatprep.subr.bf16.mxu0 0
  %1815 = vmatpush1.bf16.msra.mxu0 %v1798
  %1816 = vmatprep.subr.bf16.mxu0 0
  %1817 = vmatpush1.bf16.msra.mxu0 %v1797
  %1818 = vmatprep.subr.bf16.mxu0 0
  %1819 = vmatpush1.bf16.msra.mxu0 %v1796
  %1820 = vmatprep.subr.bf16.mxu0 0
  %1821 = vmatpush2.bf16.msra.mxu0 0
  %1822 = vmatprep.subr.bf16.mxu0 0
  %1823 = vmatpush2.bf16.msra.mxu0 0
  %1824 = vmatprep.subr.bf16.mxu0 0
  %1825 = vmatpush2.bf16.msra.mxu0 0
  %1826 = vmatprep.subr.bf16.mxu0 0
  %1827 = vmatpush2.bf16.msra.mxu0 0
  %1828 = vmatprep.subr.bf16.mxu0 0
  %1829 = vmatpush2.bf16.msra.mxu0 0
  %1830 = vmatprep.subr.bf16.mxu0 0
  %1831 = vmatpush2.bf16.msra.mxu0 0
  %1832 = vmatprep.subr.bf16.mxu0 0
  %1833 = vmatpush2.bf16.msra.mxu0 0
  %1834 = vmatprep.subr.bf16.mxu0 0
  %1835 = vmatpush2.bf16.msra.mxu0 0
  %1836 = vmatprep.mubr.bf16.mxu0 0
  %1837 = vmatmul.mubr.bf16.gmra.mxu0 %v1194
  %v1838 = vpop.f32.mrf.mxu0
  %v1839 = vadd.f32 0.0, %v1838
  %v1840 = vpop.f32.mrf.mxu0
  %v1841 = vpop.f32.mrf.mxu0
  %v1842 = vadd.f32 0.0, %v1841
  %v1843 = vpop.f32.mrf.mxu0
  %1844 = vmatprep.mubr.bf16.mxu0 0
  %1845 = vmatmul.mubr.bf16.gmra.mxu0 %v1195
  %v1846 = vpop.f32.mrf.mxu0
  %v1847 = vadd.f32 0.0, %v1846
  %v1848 = vpop.f32.mrf.mxu0
  %v1849 = vpop.f32.mrf.mxu0
  %v1850 = vadd.f32 0.0, %v1849
  %v1851 = vpop.f32.mrf.mxu0
  %1852 = vmatprep.mubr.bf16.mxu0 0
  %1853 = vmatmul.mubr.bf16.gmra.mxu0 %v1196
  %v1854 = vpop.f32.mrf.mxu0
  %v1855 = vadd.f32 0.0, %v1854
  %v1856 = vpop.f32.mrf.mxu0
  %v1857 = vpop.f32.mrf.mxu0
  %v1858 = vadd.f32 0.0, %v1857
  %v1859 = vpop.f32.mrf.mxu0
  %1860 = vmatprep.mubr.bf16.mxu0 0
  %1861 = vmatmul.mubr.bf16.gmra.mxu0 %v1197
  %v1862 = vpop.f32.mrf.mxu0
  %v1863 = vadd.f32 0.0, %v1862
  %v1864 = vpop.f32.mrf.mxu0
  %v1865 = vpop.f32.mrf.mxu0
  %v1866 = vadd.f32 0.0, %v1865
  %v1867 = vpop.f32.mrf.mxu0
  %1868 = vmatprep.mubr.bf16.mxu0 0
  %1869 = vmatmul.mubr.bf16.gmra.mxu0 %v1198
  %v1870 = vpop.f32.mrf.mxu0
  %v1871 = vadd.f32 0.0, %v1870
  %v1872 = vpop.f32.mrf.mxu0
  %v1873 = vpop.f32.mrf.mxu0
  %v1874 = vadd.f32 0.0, %v1873
  %v1875 = vpop.f32.mrf.mxu0
  %1876 = vmatprep.mubr.bf16.mxu0 0
  %1877 = vmatmul.mubr.bf16.gmra.mxu0 %v1199
  %v1878 = vpop.f32.mrf.mxu0
  %v1879 = vadd.f32 0.0, %v1878
  %v1880 = vpop.f32.mrf.mxu0
  %v1881 = vpop.f32.mrf.mxu0
  %v1882 = vadd.f32 0.0, %v1881
  %v1883 = vpop.f32.mrf.mxu0
  %1884 = vmatprep.mubr.bf16.mxu0 0
  %1885 = vmatmul.mubr.bf16.gmra.mxu0 %v1200
  %v1886 = vpop.f32.mrf.mxu0
  %v1887 = vadd.f32 0.0, %v1886
  %v1888 = vpop.f32.mrf.mxu0
  %v1889 = vpop.f32.mrf.mxu0
  %v1890 = vadd.f32 0.0, %v1889
  %v1891 = vpop.f32.mrf.mxu0
  %1892 = vmatprep.mubr.bf16.mxu0 0
  %1893 = vmatmul.mubr.bf16.gmra.mxu0 %v1201
  %v1894 = vpop.f32.mrf.mxu0
  %v1895 = vadd.f32 0.0, %v1894
  %v1896 = vpop.f32.mrf.mxu0
  %v1897 = vpop.f32.mrf.mxu0
  %v1898 = vadd.f32 0.0, %v1897
  %v1899 = vpop.f32.mrf.mxu0
  %1900 = vdwg.mxu0
  %v1901 = vmul.f32 %v1839, %v975
  %v1902 = vmul.f32 %v1842, %v975
  %v1903 = vmul.f32 %v1847, %v975
  %v1904 = vmul.f32 %v1850, %v975
  %v1905 = vmul.f32 %v1855, %v975
  %v1906 = vmul.f32 %v1858, %v975
  %v1907 = vmul.f32 %v1863, %v975
  %v1908 = vmul.f32 %v1866, %v975
  %v1909 = vmul.f32 %v1871, %v975
  %v1910 = vmul.f32 %v1874, %v975
  %v1911 = vmul.f32 %v1879, %v975
  %v1912 = vmul.f32 %v1882, %v975
  %v1913 = vmul.f32 %v1887, %v975
  %v1914 = vmul.f32 %v1890, %v975
  %v1915 = vmul.f32 %v1895, %v975
  %v1916 = vmul.f32 %v1898, %v975
  %1917 = vadd.xlane.f32.xlu0 %v1901
  %v1918 = vpop.xlane.xlu0 %1917
  %1919 = vadd.xlane.f32.xlu0 %v1902
  %v1920 = vpop.xlane.xlu0 %1919
  %1921 = vadd.xlane.f32.xlu0 %v1903
  %v1922 = vpop.xlane.xlu0 %1921
  %1923 = vadd.xlane.f32.xlu0 %v1904
  %v1924 = vpop.xlane.xlu0 %1923
  %1925 = vadd.xlane.f32.xlu0 %v1905
  %v1926 = vpop.xlane.xlu0 %1925
  %1927 = vadd.xlane.f32.xlu0 %v1906
  %v1928 = vpop.xlane.xlu0 %1927
  %1929 = vadd.xlane.f32.xlu0 %v1907
  %v1930 = vpop.xlane.xlu0 %1929
  %1931 = vadd.xlane.f32.xlu0 %v1908
  %v1932 = vpop.xlane.xlu0 %1931
  %1933 = vadd.xlane.f32.xlu0 %v1909
  %v1934 = vpop.xlane.xlu0 %1933
  %1935 = vadd.xlane.f32.xlu0 %v1910
  %v1936 = vpop.xlane.xlu0 %1935
  %1937 = vadd.xlane.f32.xlu0 %v1911
  %v1938 = vpop.xlane.xlu0 %1937
  %1939 = vadd.xlane.f32.xlu0 %v1912
  %v1940 = vpop.xlane.xlu0 %1939
  %1941 = vadd.xlane.f32.xlu0 %v1913
  %v1942 = vpop.xlane.xlu0 %1941
  %1943 = vadd.xlane.f32.xlu0 %v1914
  %v1944 = vpop.xlane.xlu0 %1943
  %1945 = vadd.xlane.f32.xlu0 %v1915
  %v1946 = vpop.xlane.xlu0 %1945
  %1947 = vadd.xlane.f32.xlu0 %v1916
  %v1948 = vpop.xlane.xlu0 %1947
  %v1949 = vadd.f32 %v1918, %v1025
  %v1950 = vadd.f32 %v1920, %v1025
  %v1951 = vadd.f32 %v1922, %v1025
  %v1952 = vadd.f32 %v1924, %v1025
  %v1953 = vadd.f32 %v1926, %v1025
  %v1954 = vadd.f32 %v1928, %v1025
  %v1955 = vadd.f32 %v1930, %v1025
  %v1956 = vadd.f32 %v1932, %v1025
  %v1957 = vadd.f32 %v1934, %v1025
  %v1958 = vadd.f32 %v1936, %v1025
  %v1959 = vadd.f32 %v1938, %v1025
  %v1960 = vadd.f32 %v1940, %v1025
  %v1961 = vadd.f32 %v1942, %v1025
  %v1962 = vadd.f32 %v1944, %v1025
  %v1963 = vadd.f32 %v1946, %v1025
  %v1964 = vadd.f32 %v1948, %v1025
  %v1965 = vsub.f32 0.0, %v1949
  %v1966 = vsub.f32 0.0, %v1950
  %v1967 = vsub.f32 0.0, %v1951
  %v1968 = vsub.f32 0.0, %v1952
  %v1969 = vsub.f32 0.0, %v1953
  %v1970 = vsub.f32 0.0, %v1954
  %v1971 = vsub.f32 0.0, %v1955
  %v1972 = vsub.f32 0.0, %v1956
  %v1973 = vsub.f32 0.0, %v1957
  %v1974 = vsub.f32 0.0, %v1958
  %v1975 = vsub.f32 0.0, %v1959
  %v1976 = vsub.f32 0.0, %v1960
  %v1977 = vsub.f32 0.0, %v1961
  %v1978 = vsub.f32 0.0, %v1962
  %v1979 = vsub.f32 0.0, %v1963
  %v1980 = vsub.f32 0.0, %v1964
  %v1981 = vmin.f32 %v1965, 30.0
  %v1982 = vmin.f32 %v1966, 30.0
  %v1983 = vmin.f32 %v1967, 30.0
  %v1984 = vmin.f32 %v1968, 30.0
  %v1985 = vmin.f32 %v1969, 30.0
  %v1986 = vmin.f32 %v1970, 30.0
  %v1987 = vmin.f32 %v1971, 30.0
  %v1988 = vmin.f32 %v1972, 30.0
  %v1989 = vmin.f32 %v1973, 30.0
  %v1990 = vmin.f32 %v1974, 30.0
  %v1991 = vmin.f32 %v1975, 30.0
  %v1992 = vmin.f32 %v1976, 30.0
  %v1993 = vmin.f32 %v1977, 30.0
  %v1994 = vmin.f32 %v1978, 30.0
  %v1995 = vmin.f32 %v1979, 30.0
  %v1996 = vmin.f32 %v1980, 30.0
  %v1997 = vmul.f32 %v1981, 1.442695
  %v1998 = vpow.pop %v1997
  %v1999 = vmul.f32 %v1982, 1.442695
  %v2000 = vpow.pop %v1999
  %v2001 = vmul.f32 %v1983, 1.442695
  %v2002 = vpow.pop %v2001
  %v2003 = vmul.f32 %v1984, 1.442695
  %v2004 = vpow.pop %v2003
  %v2005 = vmul.f32 %v1985, 1.442695
  %v2006 = vpow.pop %v2005
  %v2007 = vmul.f32 %v1986, 1.442695
  %v2008 = vpow.pop %v2007
  %v2009 = vmul.f32 %v1987, 1.442695
  %v2010 = vpow.pop %v2009
  %v2011 = vmul.f32 %v1988, 1.442695
  %v2012 = vpow.pop %v2011
  %v2013 = vmul.f32 %v1989, 1.442695
  %v2014 = vpow.pop %v2013
  %v2015 = vmul.f32 %v1990, 1.442695
  %v2016 = vpow.pop %v2015
  %v2017 = vmul.f32 %v1991, 1.442695
  %v2018 = vpow.pop %v2017
  %v2019 = vmul.f32 %v1992, 1.442695
  %v2020 = vpow.pop %v2019
  %v2021 = vmul.f32 %v1993, 1.442695
  %v2022 = vpow.pop %v2021
  %v2023 = vmul.f32 %v1994, 1.442695
  %v2024 = vpow.pop %v2023
  %v2025 = vmul.f32 %v1995, 1.442695
  %v2026 = vpow.pop %v2025
  %v2027 = vmul.f32 %v1996, 1.442695
  %v2028 = vpow.pop %v2027
  %v2029 = vadd.f32 %v1998, 1.0
  %v2030 = vadd.f32 %v2000, 1.0
  %v2031 = vadd.f32 %v2002, 1.0
  %v2032 = vadd.f32 %v2004, 1.0
  %v2033 = vadd.f32 %v2006, 1.0
  %v2034 = vadd.f32 %v2008, 1.0
  %v2035 = vadd.f32 %v2010, 1.0
  %v2036 = vadd.f32 %v2012, 1.0
  %v2037 = vadd.f32 %v2014, 1.0
  %v2038 = vadd.f32 %v2016, 1.0
  %v2039 = vadd.f32 %v2018, 1.0
  %v2040 = vadd.f32 %v2020, 1.0
  %v2041 = vadd.f32 %v2022, 1.0
  %v2042 = vadd.f32 %v2024, 1.0
  %v2043 = vadd.f32 %v2026, 1.0
  %v2044 = vadd.f32 %v2028, 1.0
  %v2045 = vrcp.pop %v2029
  %v2046 = vrcp.pop %v2030
  %v2047 = vrcp.pop %v2031
  %v2048 = vrcp.pop %v2032
  %v2049 = vrcp.pop %v2033
  %v2050 = vrcp.pop %v2034
  %v2051 = vrcp.pop %v2035
  %v2052 = vrcp.pop %v2036
  %v2053 = vrcp.pop %v2037
  %v2054 = vrcp.pop %v2038
  %v2055 = vrcp.pop %v2039
  %v2056 = vrcp.pop %v2040
  %v2057 = vrcp.pop %v2041
  %v2058 = vrcp.pop %v2042
  %v2059 = vrcp.pop %v2043
  %v2060 = vrcp.pop %v2044
  %v2061 = vmul.f32 %v2045, %v1839
  %v2062 = vmul.f32 %v2046, %v1842
  %v2063 = vmul.f32 %v2047, %v1847
  %v2064 = vmul.f32 %v2048, %v1850
  %v2065 = vmul.f32 %v2049, %v1855
  %v2066 = vmul.f32 %v2050, %v1858
  %v2067 = vmul.f32 %v2051, %v1863
  %v2068 = vmul.f32 %v2052, %v1866
  %v2069 = vmul.f32 %v2053, %v1871
  %v2070 = vmul.f32 %v2054, %v1874
  %v2071 = vmul.f32 %v2055, %v1879
  %v2072 = vmul.f32 %v2056, %v1882
  %v2073 = vmul.f32 %v2057, %v1887
  %v2074 = vmul.f32 %v2058, %v1890
  %v2075 = vmul.f32 %v2059, %v1895
  %v2076 = vmul.f32 %v2060, %v1898
  %v2077 = vadd.f32 %v1780, %v2061
  %v2078 = vadd.f32 %v1781, %v2062
  %v2079 = vadd.f32 %v1782, %v2063
  %v2080 = vadd.f32 %v1783, %v2064
  %v2081 = vadd.f32 %v1784, %v2065
  %v2082 = vadd.f32 %v1785, %v2066
  %v2083 = vadd.f32 %v1786, %v2067
  %v2084 = vadd.f32 %v1787, %v2068
  %v2085 = vadd.f32 %v1788, %v2069
  %v2086 = vadd.f32 %v1789, %v2070
  %v2087 = vadd.f32 %v1790, %v2071
  %v2088 = vadd.f32 %v1791, %v2072
  %v2089 = vadd.f32 %v1792, %v2073
  %v2090 = vadd.f32 %v1793, %v2074
  %v2091 = vadd.f32 %v1794, %v2075
  %v2092 = vadd.f32 %v1795, %v2076
  %v2093 = vpack.c.bf16 %v1842, %v1839
  %v2094 = vpack.c.bf16 %v1850, %v1847
  %v2095 = vpack.c.bf16 %v1858, %v1855
  %v2096 = vpack.c.bf16 %v1866, %v1863
  %v2097 = vpack.c.bf16 %v1874, %v1871
  %v2098 = vpack.c.bf16 %v1882, %v1879
  %v2099 = vpack.c.bf16 %v1890, %v1887
  %v2100 = vpack.c.bf16 %v1898, %v1895
  %2101 = vmatprep.subr.bf16.mxu0 0
  %2102 = vmatpush1.bf16.msra.mxu0 %v2100
  %2103 = vmatprep.subr.bf16.mxu0 0
  %2104 = vmatpush1.bf16.msra.mxu0 %v2099
  %2105 = vmatprep.subr.bf16.mxu0 0
  %2106 = vmatpush1.bf16.msra.mxu0 %v2098
  %2107 = vmatprep.subr.bf16.mxu0 0
  %2108 = vmatpush1.bf16.msra.mxu0 %v2097
  %2109 = vmatprep.subr.bf16.mxu0 0
  %2110 = vmatpush1.bf16.msra.mxu0 %v2096
  %2111 = vmatprep.subr.bf16.mxu0 0
  %2112 = vmatpush1.bf16.msra.mxu0 %v2095
  %2113 = vmatprep.subr.bf16.mxu0 0
  %2114 = vmatpush1.bf16.msra.mxu0 %v2094
  %2115 = vmatprep.subr.bf16.mxu0 0
  %2116 = vmatpush1.bf16.msra.mxu0 %v2093
  %2117 = vmatprep.subr.bf16.mxu0 0
  %2118 = vmatpush2.bf16.msra.mxu0 0
  %2119 = vmatprep.subr.bf16.mxu0 0
  %2120 = vmatpush2.bf16.msra.mxu0 0
  %2121 = vmatprep.subr.bf16.mxu0 0
  %2122 = vmatpush2.bf16.msra.mxu0 0
  %2123 = vmatprep.subr.bf16.mxu0 0
  %2124 = vmatpush2.bf16.msra.mxu0 0
  %2125 = vmatprep.subr.bf16.mxu0 0
  %2126 = vmatpush2.bf16.msra.mxu0 0
  %2127 = vmatprep.subr.bf16.mxu0 0
  %2128 = vmatpush2.bf16.msra.mxu0 0
  %2129 = vmatprep.subr.bf16.mxu0 0
  %2130 = vmatpush2.bf16.msra.mxu0 0
  %2131 = vmatprep.subr.bf16.mxu0 0
  %2132 = vmatpush2.bf16.msra.mxu0 0
  %2133 = vmatprep.mubr.bf16.mxu0 0
  %2134 = vmatmul.mubr.bf16.gmra.mxu0 %v1194
  %v2135 = vpop.f32.mrf.mxu0
  %v2136 = vadd.f32 0.0, %v2135
  %v2137 = vpop.f32.mrf.mxu0
  %v2138 = vpop.f32.mrf.mxu0
  %v2139 = vadd.f32 0.0, %v2138
  %v2140 = vpop.f32.mrf.mxu0
  %2141 = vmatprep.mubr.bf16.mxu0 0
  %2142 = vmatmul.mubr.bf16.gmra.mxu0 %v1195
  %v2143 = vpop.f32.mrf.mxu0
  %v2144 = vadd.f32 0.0, %v2143
  %v2145 = vpop.f32.mrf.mxu0
  %v2146 = vpop.f32.mrf.mxu0
  %v2147 = vadd.f32 0.0, %v2146
  %v2148 = vpop.f32.mrf.mxu0
  %2149 = vmatprep.mubr.bf16.mxu0 0
  %2150 = vmatmul.mubr.bf16.gmra.mxu0 %v1196
  %v2151 = vpop.f32.mrf.mxu0
  %v2152 = vadd.f32 0.0, %v2151
  %v2153 = vpop.f32.mrf.mxu0
  %v2154 = vpop.f32.mrf.mxu0
  %v2155 = vadd.f32 0.0, %v2154
  %v2156 = vpop.f32.mrf.mxu0
  %2157 = vmatprep.mubr.bf16.mxu0 0
  %2158 = vmatmul.mubr.bf16.gmra.mxu0 %v1197
  %v2159 = vpop.f32.mrf.mxu0
  %v2160 = vadd.f32 0.0, %v2159
  %v2161 = vpop.f32.mrf.mxu0
  %v2162 = vpop.f32.mrf.mxu0
  %v2163 = vadd.f32 0.0, %v2162
  %v2164 = vpop.f32.mrf.mxu0
  %2165 = vmatprep.mubr.bf16.mxu0 0
  %2166 = vmatmul.mubr.bf16.gmra.mxu0 %v1198
  %v2167 = vpop.f32.mrf.mxu0
  %v2168 = vadd.f32 0.0, %v2167
  %v2169 = vpop.f32.mrf.mxu0
  %v2170 = vpop.f32.mrf.mxu0
  %v2171 = vadd.f32 0.0, %v2170
  %v2172 = vpop.f32.mrf.mxu0
  %2173 = vmatprep.mubr.bf16.mxu0 0
  %2174 = vmatmul.mubr.bf16.gmra.mxu0 %v1199
  %v2175 = vpop.f32.mrf.mxu0
  %v2176 = vadd.f32 0.0, %v2175
  %v2177 = vpop.f32.mrf.mxu0
  %v2178 = vpop.f32.mrf.mxu0
  %v2179 = vadd.f32 0.0, %v2178
  %v2180 = vpop.f32.mrf.mxu0
  %2181 = vmatprep.mubr.bf16.mxu0 0
  %2182 = vmatmul.mubr.bf16.gmra.mxu0 %v1200
  %v2183 = vpop.f32.mrf.mxu0
  %v2184 = vadd.f32 0.0, %v2183
  %v2185 = vpop.f32.mrf.mxu0
  %v2186 = vpop.f32.mrf.mxu0
  %v2187 = vadd.f32 0.0, %v2186
  %v2188 = vpop.f32.mrf.mxu0
  %2189 = vmatprep.mubr.bf16.mxu0 0
  %2190 = vmatmul.mubr.bf16.gmra.mxu0 %v1201
  %v2191 = vpop.f32.mrf.mxu0
  %v2192 = vadd.f32 0.0, %v2191
  %v2193 = vpop.f32.mrf.mxu0
  %v2194 = vpop.f32.mrf.mxu0
  %v2195 = vadd.f32 0.0, %v2194
  %v2196 = vpop.f32.mrf.mxu0
  %2197 = vdwg.mxu0
  %v2198 = vmul.f32 %v2136, %v975
  %v2199 = vmul.f32 %v2139, %v975
  %v2200 = vmul.f32 %v2144, %v975
  %v2201 = vmul.f32 %v2147, %v975
  %v2202 = vmul.f32 %v2152, %v975
  %v2203 = vmul.f32 %v2155, %v975
  %v2204 = vmul.f32 %v2160, %v975
  %v2205 = vmul.f32 %v2163, %v975
  %v2206 = vmul.f32 %v2168, %v975
  %v2207 = vmul.f32 %v2171, %v975
  %v2208 = vmul.f32 %v2176, %v975
  %v2209 = vmul.f32 %v2179, %v975
  %v2210 = vmul.f32 %v2184, %v975
  %v2211 = vmul.f32 %v2187, %v975
  %v2212 = vmul.f32 %v2192, %v975
  %v2213 = vmul.f32 %v2195, %v975
  %2214 = vadd.xlane.f32.xlu0 %v2198
  %v2215 = vpop.xlane.xlu0 %2214
  %2216 = vadd.xlane.f32.xlu0 %v2199
  %v2217 = vpop.xlane.xlu0 %2216
  %2218 = vadd.xlane.f32.xlu0 %v2200
  %v2219 = vpop.xlane.xlu0 %2218
  %2220 = vadd.xlane.f32.xlu0 %v2201
  %v2221 = vpop.xlane.xlu0 %2220
  %2222 = vadd.xlane.f32.xlu0 %v2202
  %v2223 = vpop.xlane.xlu0 %2222
  %2224 = vadd.xlane.f32.xlu0 %v2203
  %v2225 = vpop.xlane.xlu0 %2224
  %2226 = vadd.xlane.f32.xlu0 %v2204
  %v2227 = vpop.xlane.xlu0 %2226
  %2228 = vadd.xlane.f32.xlu0 %v2205
  %v2229 = vpop.xlane.xlu0 %2228
  %2230 = vadd.xlane.f32.xlu0 %v2206
  %v2231 = vpop.xlane.xlu0 %2230
  %2232 = vadd.xlane.f32.xlu0 %v2207
  %v2233 = vpop.xlane.xlu0 %2232
  %2234 = vadd.xlane.f32.xlu0 %v2208
  %v2235 = vpop.xlane.xlu0 %2234
  %2236 = vadd.xlane.f32.xlu0 %v2209
  %v2237 = vpop.xlane.xlu0 %2236
  %2238 = vadd.xlane.f32.xlu0 %v2210
  %v2239 = vpop.xlane.xlu0 %2238
  %2240 = vadd.xlane.f32.xlu0 %v2211
  %v2241 = vpop.xlane.xlu0 %2240
  %2242 = vadd.xlane.f32.xlu0 %v2212
  %v2243 = vpop.xlane.xlu0 %2242
  %2244 = vadd.xlane.f32.xlu0 %v2213
  %v2245 = vpop.xlane.xlu0 %2244
  %v2246 = vadd.f32 %v2215, %v1025
  %v2247 = vadd.f32 %v2217, %v1025
  %v2248 = vadd.f32 %v2219, %v1025
  %v2249 = vadd.f32 %v2221, %v1025
  %v2250 = vadd.f32 %v2223, %v1025
  %v2251 = vadd.f32 %v2225, %v1025
  %v2252 = vadd.f32 %v2227, %v1025
  %v2253 = vadd.f32 %v2229, %v1025
  %v2254 = vadd.f32 %v2231, %v1025
  %v2255 = vadd.f32 %v2233, %v1025
  %v2256 = vadd.f32 %v2235, %v1025
  %v2257 = vadd.f32 %v2237, %v1025
  %v2258 = vadd.f32 %v2239, %v1025
  %v2259 = vadd.f32 %v2241, %v1025
  %v2260 = vadd.f32 %v2243, %v1025
  %v2261 = vadd.f32 %v2245, %v1025
  %v2262 = vsub.f32 0.0, %v2246
  %v2263 = vsub.f32 0.0, %v2247
  %v2264 = vsub.f32 0.0, %v2248
  %v2265 = vsub.f32 0.0, %v2249
  %v2266 = vsub.f32 0.0, %v2250
  %v2267 = vsub.f32 0.0, %v2251
  %v2268 = vsub.f32 0.0, %v2252
  %v2269 = vsub.f32 0.0, %v2253
  %v2270 = vsub.f32 0.0, %v2254
  %v2271 = vsub.f32 0.0, %v2255
  %v2272 = vsub.f32 0.0, %v2256
  %v2273 = vsub.f32 0.0, %v2257
  %v2274 = vsub.f32 0.0, %v2258
  %v2275 = vsub.f32 0.0, %v2259
  %v2276 = vsub.f32 0.0, %v2260
  %v2277 = vsub.f32 0.0, %v2261
  %v2278 = vmin.f32 %v2262, 30.0
  %v2279 = vmin.f32 %v2263, 30.0
  %v2280 = vmin.f32 %v2264, 30.0
  %v2281 = vmin.f32 %v2265, 30.0
  %v2282 = vmin.f32 %v2266, 30.0
  %v2283 = vmin.f32 %v2267, 30.0
  %v2284 = vmin.f32 %v2268, 30.0
  %v2285 = vmin.f32 %v2269, 30.0
  %v2286 = vmin.f32 %v2270, 30.0
  %v2287 = vmin.f32 %v2271, 30.0
  %v2288 = vmin.f32 %v2272, 30.0
  %v2289 = vmin.f32 %v2273, 30.0
  %v2290 = vmin.f32 %v2274, 30.0
  %v2291 = vmin.f32 %v2275, 30.0
  %v2292 = vmin.f32 %v2276, 30.0
  %v2293 = vmin.f32 %v2277, 30.0
  %v2294 = vmul.f32 %v2278, 1.442695
  %v2295 = vpow.pop %v2294
  %v2296 = vmul.f32 %v2279, 1.442695
  %v2297 = vpow.pop %v2296
  %v2298 = vmul.f32 %v2280, 1.442695
  %v2299 = vpow.pop %v2298
  %v2300 = vmul.f32 %v2281, 1.442695
  %v2301 = vpow.pop %v2300
  %v2302 = vmul.f32 %v2282, 1.442695
  %v2303 = vpow.pop %v2302
  %v2304 = vmul.f32 %v2283, 1.442695
  %v2305 = vpow.pop %v2304
  %v2306 = vmul.f32 %v2284, 1.442695
  %v2307 = vpow.pop %v2306
  %v2308 = vmul.f32 %v2285, 1.442695
  %v2309 = vpow.pop %v2308
  %v2310 = vmul.f32 %v2286, 1.442695
  %v2311 = vpow.pop %v2310
  %v2312 = vmul.f32 %v2287, 1.442695
  %v2313 = vpow.pop %v2312
  %v2314 = vmul.f32 %v2288, 1.442695
  %v2315 = vpow.pop %v2314
  %v2316 = vmul.f32 %v2289, 1.442695
  %v2317 = vpow.pop %v2316
  %v2318 = vmul.f32 %v2290, 1.442695
  %v2319 = vpow.pop %v2318
  %v2320 = vmul.f32 %v2291, 1.442695
  %v2321 = vpow.pop %v2320
  %v2322 = vmul.f32 %v2292, 1.442695
  %v2323 = vpow.pop %v2322
  %v2324 = vmul.f32 %v2293, 1.442695
  %v2325 = vpow.pop %v2324
  %v2326 = vadd.f32 %v2295, 1.0
  %v2327 = vadd.f32 %v2297, 1.0
  %v2328 = vadd.f32 %v2299, 1.0
  %v2329 = vadd.f32 %v2301, 1.0
  %v2330 = vadd.f32 %v2303, 1.0
  %v2331 = vadd.f32 %v2305, 1.0
  %v2332 = vadd.f32 %v2307, 1.0
  %v2333 = vadd.f32 %v2309, 1.0
  %v2334 = vadd.f32 %v2311, 1.0
  %v2335 = vadd.f32 %v2313, 1.0
  %v2336 = vadd.f32 %v2315, 1.0
  %v2337 = vadd.f32 %v2317, 1.0
  %v2338 = vadd.f32 %v2319, 1.0
  %v2339 = vadd.f32 %v2321, 1.0
  %v2340 = vadd.f32 %v2323, 1.0
  %v2341 = vadd.f32 %v2325, 1.0
  %v2342 = vrcp.pop %v2326
  %v2343 = vrcp.pop %v2327
  %v2344 = vrcp.pop %v2328
  %v2345 = vrcp.pop %v2329
  %v2346 = vrcp.pop %v2330
  %v2347 = vrcp.pop %v2331
  %v2348 = vrcp.pop %v2332
  %v2349 = vrcp.pop %v2333
  %v2350 = vrcp.pop %v2334
  %v2351 = vrcp.pop %v2335
  %v2352 = vrcp.pop %v2336
  %v2353 = vrcp.pop %v2337
  %v2354 = vrcp.pop %v2338
  %v2355 = vrcp.pop %v2339
  %v2356 = vrcp.pop %v2340
  %v2357 = vrcp.pop %v2341
  %v2358 = vmul.f32 %v2342, %v2136
  %v2359 = vmul.f32 %v2343, %v2139
  %v2360 = vmul.f32 %v2344, %v2144
  %v2361 = vmul.f32 %v2345, %v2147
  %v2362 = vmul.f32 %v2346, %v2152
  %v2363 = vmul.f32 %v2347, %v2155
  %v2364 = vmul.f32 %v2348, %v2160
  %v2365 = vmul.f32 %v2349, %v2163
  %v2366 = vmul.f32 %v2350, %v2168
  %v2367 = vmul.f32 %v2351, %v2171
  %v2368 = vmul.f32 %v2352, %v2176
  %v2369 = vmul.f32 %v2353, %v2179
  %v2370 = vmul.f32 %v2354, %v2184
  %v2371 = vmul.f32 %v2355, %v2187
  %v2372 = vmul.f32 %v2356, %v2192
  %v2373 = vmul.f32 %v2357, %v2195
  %v2374 = vadd.f32 %v2077, %v2358
  %v2375 = vadd.f32 %v2078, %v2359
  %v2376 = vadd.f32 %v2079, %v2360
  %v2377 = vadd.f32 %v2080, %v2361
  %v2378 = vadd.f32 %v2081, %v2362
  %v2379 = vadd.f32 %v2082, %v2363
  %v2380 = vadd.f32 %v2083, %v2364
  %v2381 = vadd.f32 %v2084, %v2365
  %v2382 = vadd.f32 %v2085, %v2366
  %v2383 = vadd.f32 %v2086, %v2367
  %v2384 = vadd.f32 %v2087, %v2368
  %v2385 = vadd.f32 %v2088, %v2369
  %v2386 = vadd.f32 %v2089, %v2370
  %v2387 = vadd.f32 %v2090, %v2371
  %v2388 = vadd.f32 %v2091, %v2372
  %v2389 = vadd.f32 %v2092, %v2373
  %v2390 = vpack.c.bf16 %v2139, %v2136
  %v2391 = vpack.c.bf16 %v2147, %v2144
  %v2392 = vpack.c.bf16 %v2155, %v2152
  %v2393 = vpack.c.bf16 %v2163, %v2160
  %v2394 = vpack.c.bf16 %v2171, %v2168
  %v2395 = vpack.c.bf16 %v2179, %v2176
  %v2396 = vpack.c.bf16 %v2187, %v2184
  %v2397 = vpack.c.bf16 %v2195, %v2192
  %2398 = vmatprep.subr.bf16.mxu0 0
  %2399 = vmatpush1.bf16.msra.mxu0 %v2397
  %2400 = vmatprep.subr.bf16.mxu0 0
  %2401 = vmatpush1.bf16.msra.mxu0 %v2396
  %2402 = vmatprep.subr.bf16.mxu0 0
  %2403 = vmatpush1.bf16.msra.mxu0 %v2395
  %2404 = vmatprep.subr.bf16.mxu0 0
  %2405 = vmatpush1.bf16.msra.mxu0 %v2394
  %2406 = vmatprep.subr.bf16.mxu0 0
  %2407 = vmatpush1.bf16.msra.mxu0 %v2393
  %2408 = vmatprep.subr.bf16.mxu0 0
  %2409 = vmatpush1.bf16.msra.mxu0 %v2392
  %2410 = vmatprep.subr.bf16.mxu0 0
  %2411 = vmatpush1.bf16.msra.mxu0 %v2391
  %2412 = vmatprep.subr.bf16.mxu0 0
  %2413 = vmatpush1.bf16.msra.mxu0 %v2390
  %2414 = vmatprep.subr.bf16.mxu0 0
  %2415 = vmatpush2.bf16.msra.mxu0 0
  %2416 = vmatprep.subr.bf16.mxu0 0
  %2417 = vmatpush2.bf16.msra.mxu0 0
  %2418 = vmatprep.subr.bf16.mxu0 0
  %2419 = vmatpush2.bf16.msra.mxu0 0
  %2420 = vmatprep.subr.bf16.mxu0 0
  %2421 = vmatpush2.bf16.msra.mxu0 0
  %2422 = vmatprep.subr.bf16.mxu0 0
  %2423 = vmatpush2.bf16.msra.mxu0 0
  %2424 = vmatprep.subr.bf16.mxu0 0
  %2425 = vmatpush2.bf16.msra.mxu0 0
  %2426 = vmatprep.subr.bf16.mxu0 0
  %2427 = vmatpush2.bf16.msra.mxu0 0
  %2428 = vmatprep.subr.bf16.mxu0 0
  %2429 = vmatpush2.bf16.msra.mxu0 0
  %2430 = vmatprep.mubr.bf16.mxu0 0
  %2431 = vmatmul.mubr.bf16.gmra.mxu0 %v1194
  %v2432 = vpop.f32.mrf.mxu0
  %v2433 = vadd.f32 0.0, %v2432
  %v2434 = vpop.f32.mrf.mxu0
  %v2435 = vpop.f32.mrf.mxu0
  %v2436 = vadd.f32 0.0, %v2435
  %v2437 = vpop.f32.mrf.mxu0
  %2438 = vmatprep.mubr.bf16.mxu0 0
  %2439 = vmatmul.mubr.bf16.gmra.mxu0 %v1195
  %v2440 = vpop.f32.mrf.mxu0
  %v2441 = vadd.f32 0.0, %v2440
  %v2442 = vpop.f32.mrf.mxu0
  %v2443 = vpop.f32.mrf.mxu0
  %v2444 = vadd.f32 0.0, %v2443
  %v2445 = vpop.f32.mrf.mxu0
  %2446 = vmatprep.mubr.bf16.mxu0 0
  %2447 = vmatmul.mubr.bf16.gmra.mxu0 %v1196
  %v2448 = vpop.f32.mrf.mxu0
  %v2449 = vadd.f32 0.0, %v2448
  %v2450 = vpop.f32.mrf.mxu0
  %v2451 = vpop.f32.mrf.mxu0
  %v2452 = vadd.f32 0.0, %v2451
  %v2453 = vpop.f32.mrf.mxu0
  %2454 = vmatprep.mubr.bf16.mxu0 0
  %2455 = vmatmul.mubr.bf16.gmra.mxu0 %v1197
  %v2456 = vpop.f32.mrf.mxu0
  %v2457 = vadd.f32 0.0, %v2456
  %v2458 = vpop.f32.mrf.mxu0
  %v2459 = vpop.f32.mrf.mxu0
  %v2460 = vadd.f32 0.0, %v2459
  %v2461 = vpop.f32.mrf.mxu0
  %2462 = vmatprep.mubr.bf16.mxu0 0
  %2463 = vmatmul.mubr.bf16.gmra.mxu0 %v1198
  %v2464 = vpop.f32.mrf.mxu0
  %v2465 = vadd.f32 0.0, %v2464
  %v2466 = vpop.f32.mrf.mxu0
  %v2467 = vpop.f32.mrf.mxu0
  %v2468 = vadd.f32 0.0, %v2467
  %v2469 = vpop.f32.mrf.mxu0
  %2470 = vmatprep.mubr.bf16.mxu0 0
  %2471 = vmatmul.mubr.bf16.gmra.mxu0 %v1199
  %v2472 = vpop.f32.mrf.mxu0
  %v2473 = vadd.f32 0.0, %v2472
  %v2474 = vpop.f32.mrf.mxu0
  %v2475 = vpop.f32.mrf.mxu0
  %v2476 = vadd.f32 0.0, %v2475
  %v2477 = vpop.f32.mrf.mxu0
  %2478 = vmatprep.mubr.bf16.mxu0 0
  %2479 = vmatmul.mubr.bf16.gmra.mxu0 %v1200
  %v2480 = vpop.f32.mrf.mxu0
  %v2481 = vadd.f32 0.0, %v2480
  %v2482 = vpop.f32.mrf.mxu0
  %v2483 = vpop.f32.mrf.mxu0
  %v2484 = vadd.f32 0.0, %v2483
  %v2485 = vpop.f32.mrf.mxu0
  %2486 = vmatprep.mubr.bf16.mxu0 0
  %2487 = vmatmul.mubr.bf16.gmra.mxu0 %v1201
  %v2488 = vpop.f32.mrf.mxu0
  %v2489 = vadd.f32 0.0, %v2488
  %v2490 = vpop.f32.mrf.mxu0
  %v2491 = vpop.f32.mrf.mxu0
  %v2492 = vadd.f32 0.0, %v2491
  %v2493 = vpop.f32.mrf.mxu0
  %2494 = vdwg.mxu0
  %v2495 = vmul.f32 %v2433, %v975
  %v2496 = vmul.f32 %v2436, %v975
  %v2497 = vmul.f32 %v2441, %v975
  %v2498 = vmul.f32 %v2444, %v975
  %v2499 = vmul.f32 %v2449, %v975
  %v2500 = vmul.f32 %v2452, %v975
  %v2501 = vmul.f32 %v2457, %v975
  %v2502 = vmul.f32 %v2460, %v975
  %v2503 = vmul.f32 %v2465, %v975
  %v2504 = vmul.f32 %v2468, %v975
  %v2505 = vmul.f32 %v2473, %v975
  %v2506 = vmul.f32 %v2476, %v975
  %v2507 = vmul.f32 %v2481, %v975
  %v2508 = vmul.f32 %v2484, %v975
  %v2509 = vmul.f32 %v2489, %v975
  %v2510 = vmul.f32 %v2492, %v975
  %2511 = vadd.xlane.f32.xlu0 %v2495
  %v2512 = vpop.xlane.xlu0 %2511
  %2513 = vadd.xlane.f32.xlu0 %v2496
  %v2514 = vpop.xlane.xlu0 %2513
  %2515 = vadd.xlane.f32.xlu0 %v2497
  %v2516 = vpop.xlane.xlu0 %2515
  %2517 = vadd.xlane.f32.xlu0 %v2498
  %v2518 = vpop.xlane.xlu0 %2517
  %2519 = vadd.xlane.f32.xlu0 %v2499
  %v2520 = vpop.xlane.xlu0 %2519
  %2521 = vadd.xlane.f32.xlu0 %v2500
  %v2522 = vpop.xlane.xlu0 %2521
  %2523 = vadd.xlane.f32.xlu0 %v2501
  %v2524 = vpop.xlane.xlu0 %2523
  %2525 = vadd.xlane.f32.xlu0 %v2502
  %v2526 = vpop.xlane.xlu0 %2525
  %2527 = vadd.xlane.f32.xlu0 %v2503
  %v2528 = vpop.xlane.xlu0 %2527
  %2529 = vadd.xlane.f32.xlu0 %v2504
  %v2530 = vpop.xlane.xlu0 %2529
  %2531 = vadd.xlane.f32.xlu0 %v2505
  %v2532 = vpop.xlane.xlu0 %2531
  %2533 = vadd.xlane.f32.xlu0 %v2506
  %v2534 = vpop.xlane.xlu0 %2533
  %2535 = vadd.xlane.f32.xlu0 %v2507
  %v2536 = vpop.xlane.xlu0 %2535
  %2537 = vadd.xlane.f32.xlu0 %v2508
  %v2538 = vpop.xlane.xlu0 %2537
  %2539 = vadd.xlane.f32.xlu0 %v2509
  %v2540 = vpop.xlane.xlu0 %2539
  %2541 = vadd.xlane.f32.xlu0 %v2510
  %v2542 = vpop.xlane.xlu0 %2541
  %v2543 = vadd.f32 %v2512, %v1025
  %v2544 = vadd.f32 %v2514, %v1025
  %v2545 = vadd.f32 %v2516, %v1025
  %v2546 = vadd.f32 %v2518, %v1025
  %v2547 = vadd.f32 %v2520, %v1025
  %v2548 = vadd.f32 %v2522, %v1025
  %v2549 = vadd.f32 %v2524, %v1025
  %v2550 = vadd.f32 %v2526, %v1025
  %v2551 = vadd.f32 %v2528, %v1025
  %v2552 = vadd.f32 %v2530, %v1025
  %v2553 = vadd.f32 %v2532, %v1025
  %v2554 = vadd.f32 %v2534, %v1025
  %v2555 = vadd.f32 %v2536, %v1025
  %v2556 = vadd.f32 %v2538, %v1025
  %v2557 = vadd.f32 %v2540, %v1025
  %v2558 = vadd.f32 %v2542, %v1025
  %v2559 = vsub.f32 0.0, %v2543
  %v2560 = vsub.f32 0.0, %v2544
  %v2561 = vsub.f32 0.0, %v2545
  %v2562 = vsub.f32 0.0, %v2546
  %v2563 = vsub.f32 0.0, %v2547
  %v2564 = vsub.f32 0.0, %v2548
  %v2565 = vsub.f32 0.0, %v2549
  %v2566 = vsub.f32 0.0, %v2550
  %v2567 = vsub.f32 0.0, %v2551
  %v2568 = vsub.f32 0.0, %v2552
  %v2569 = vsub.f32 0.0, %v2553
  %v2570 = vsub.f32 0.0, %v2554
  %v2571 = vsub.f32 0.0, %v2555
  %v2572 = vsub.f32 0.0, %v2556
  %v2573 = vsub.f32 0.0, %v2557
  %v2574 = vsub.f32 0.0, %v2558
  %v2575 = vmin.f32 %v2559, 30.0
  %v2576 = vmin.f32 %v2560, 30.0
  %v2577 = vmin.f32 %v2561, 30.0
  %v2578 = vmin.f32 %v2562, 30.0
  %v2579 = vmin.f32 %v2563, 30.0
  %v2580 = vmin.f32 %v2564, 30.0
  %v2581 = vmin.f32 %v2565, 30.0
  %v2582 = vmin.f32 %v2566, 30.0
  %v2583 = vmin.f32 %v2567, 30.0
  %v2584 = vmin.f32 %v2568, 30.0
  %v2585 = vmin.f32 %v2569, 30.0
  %v2586 = vmin.f32 %v2570, 30.0
  %v2587 = vmin.f32 %v2571, 30.0
  %v2588 = vmin.f32 %v2572, 30.0
  %v2589 = vmin.f32 %v2573, 30.0
  %v2590 = vmin.f32 %v2574, 30.0
  %v2591 = vmul.f32 %v2575, 1.442695
  %v2592 = vpow.pop %v2591
  %v2593 = vmul.f32 %v2576, 1.442695
  %v2594 = vpow.pop %v2593
  %v2595 = vmul.f32 %v2577, 1.442695
  %v2596 = vpow.pop %v2595
  %v2597 = vmul.f32 %v2578, 1.442695
  %v2598 = vpow.pop %v2597
  %v2599 = vmul.f32 %v2579, 1.442695
  %v2600 = vpow.pop %v2599
  %v2601 = vmul.f32 %v2580, 1.442695
  %v2602 = vpow.pop %v2601
  %v2603 = vmul.f32 %v2581, 1.442695
  %v2604 = vpow.pop %v2603
  %v2605 = vmul.f32 %v2582, 1.442695
  %v2606 = vpow.pop %v2605
  %v2607 = vmul.f32 %v2583, 1.442695
  %v2608 = vpow.pop %v2607
  %v2609 = vmul.f32 %v2584, 1.442695
  %v2610 = vpow.pop %v2609
  %v2611 = vmul.f32 %v2585, 1.442695
  %v2612 = vpow.pop %v2611
  %v2613 = vmul.f32 %v2586, 1.442695
  %v2614 = vpow.pop %v2613
  %v2615 = vmul.f32 %v2587, 1.442695
  %v2616 = vpow.pop %v2615
  %v2617 = vmul.f32 %v2588, 1.442695
  %v2618 = vpow.pop %v2617
  %v2619 = vmul.f32 %v2589, 1.442695
  %v2620 = vpow.pop %v2619
  %v2621 = vmul.f32 %v2590, 1.442695
  %v2622 = vpow.pop %v2621
  %v2623 = vadd.f32 %v2592, 1.0
  %v2624 = vadd.f32 %v2594, 1.0
  %v2625 = vadd.f32 %v2596, 1.0
  %v2626 = vadd.f32 %v2598, 1.0
  %v2627 = vadd.f32 %v2600, 1.0
  %v2628 = vadd.f32 %v2602, 1.0
  %v2629 = vadd.f32 %v2604, 1.0
  %v2630 = vadd.f32 %v2606, 1.0
  %v2631 = vadd.f32 %v2608, 1.0
  %v2632 = vadd.f32 %v2610, 1.0
  %v2633 = vadd.f32 %v2612, 1.0
  %v2634 = vadd.f32 %v2614, 1.0
  %v2635 = vadd.f32 %v2616, 1.0
  %v2636 = vadd.f32 %v2618, 1.0
  %v2637 = vadd.f32 %v2620, 1.0
  %v2638 = vadd.f32 %v2622, 1.0
  %v2639 = vrcp.pop %v2623
  %v2640 = vrcp.pop %v2624
  %v2641 = vrcp.pop %v2625
  %v2642 = vrcp.pop %v2626
  %v2643 = vrcp.pop %v2627
  %v2644 = vrcp.pop %v2628
  %v2645 = vrcp.pop %v2629
  %v2646 = vrcp.pop %v2630
  %v2647 = vrcp.pop %v2631
  %v2648 = vrcp.pop %v2632
  %v2649 = vrcp.pop %v2633
  %v2650 = vrcp.pop %v2634
  %v2651 = vrcp.pop %v2635
  %v2652 = vrcp.pop %v2636
  %v2653 = vrcp.pop %v2637
  %v2654 = vrcp.pop %v2638
  %v2655 = vmul.f32 %v2639, %v2433
  %v2656 = vmul.f32 %v2640, %v2436
  %v2657 = vmul.f32 %v2641, %v2441
  %v2658 = vmul.f32 %v2642, %v2444
  %v2659 = vmul.f32 %v2643, %v2449
  %v2660 = vmul.f32 %v2644, %v2452
  %v2661 = vmul.f32 %v2645, %v2457
  %v2662 = vmul.f32 %v2646, %v2460
  %v2663 = vmul.f32 %v2647, %v2465
  %v2664 = vmul.f32 %v2648, %v2468
  %v2665 = vmul.f32 %v2649, %v2473
  %v2666 = vmul.f32 %v2650, %v2476
  %v2667 = vmul.f32 %v2651, %v2481
  %v2668 = vmul.f32 %v2652, %v2484
  %v2669 = vmul.f32 %v2653, %v2489
  %v2670 = vmul.f32 %v2654, %v2492
  %v2671 = vadd.f32 %v2374, %v2655
  %v2672 = vadd.f32 %v2375, %v2656
  %v2673 = vadd.f32 %v2376, %v2657
  %v2674 = vadd.f32 %v2377, %v2658
  %v2675 = vadd.f32 %v2378, %v2659
  %v2676 = vadd.f32 %v2379, %v2660
  %v2677 = vadd.f32 %v2380, %v2661
  %v2678 = vadd.f32 %v2381, %v2662
  %v2679 = vadd.f32 %v2382, %v2663
  %v2680 = vadd.f32 %v2383, %v2664
  %v2681 = vadd.f32 %v2384, %v2665
  %v2682 = vadd.f32 %v2385, %v2666
  %v2683 = vadd.f32 %v2386, %v2667
  %v2684 = vadd.f32 %v2387, %v2668
  %v2685 = vadd.f32 %v2388, %v2669
  %v2686 = vadd.f32 %v2389, %v2670
  %v2687 = vpack.c.bf16 %v2436, %v2433
  %v2688 = vpack.c.bf16 %v2444, %v2441
  %v2689 = vpack.c.bf16 %v2452, %v2449
  %v2690 = vpack.c.bf16 %v2460, %v2457
  %v2691 = vpack.c.bf16 %v2468, %v2465
  %v2692 = vpack.c.bf16 %v2476, %v2473
  %v2693 = vpack.c.bf16 %v2484, %v2481
  %v2694 = vpack.c.bf16 %v2492, %v2489
  %2695 = vmatprep.subr.bf16.mxu0 0
  %2696 = vmatpush1.bf16.msra.mxu0 %v2694
  %2697 = vmatprep.subr.bf16.mxu0 0
  %2698 = vmatpush1.bf16.msra.mxu0 %v2693
  %2699 = vmatprep.subr.bf16.mxu0 0
  %2700 = vmatpush1.bf16.msra.mxu0 %v2692
  %2701 = vmatprep.subr.bf16.mxu0 0
  %2702 = vmatpush1.bf16.msra.mxu0 %v2691
  %2703 = vmatprep.subr.bf16.mxu0 0
  %2704 = vmatpush1.bf16.msra.mxu0 %v2690
  %2705 = vmatprep.subr.bf16.mxu0 0
  %2706 = vmatpush1.bf16.msra.mxu0 %v2689
  %2707 = vmatprep.subr.bf16.mxu0 0
  %2708 = vmatpush1.bf16.msra.mxu0 %v2688
  %2709 = vmatprep.subr.bf16.mxu0 0
  %2710 = vmatpush1.bf16.msra.mxu0 %v2687
  %2711 = vmatprep.subr.bf16.mxu0 0
  %2712 = vmatpush2.bf16.msra.mxu0 0
  %2713 = vmatprep.subr.bf16.mxu0 0
  %2714 = vmatpush2.bf16.msra.mxu0 0
  %2715 = vmatprep.subr.bf16.mxu0 0
  %2716 = vmatpush2.bf16.msra.mxu0 0
  %2717 = vmatprep.subr.bf16.mxu0 0
  %2718 = vmatpush2.bf16.msra.mxu0 0
  %2719 = vmatprep.subr.bf16.mxu0 0
  %2720 = vmatpush2.bf16.msra.mxu0 0
  %2721 = vmatprep.subr.bf16.mxu0 0
  %2722 = vmatpush2.bf16.msra.mxu0 0
  %2723 = vmatprep.subr.bf16.mxu0 0
  %2724 = vmatpush2.bf16.msra.mxu0 0
  %2725 = vmatprep.subr.bf16.mxu0 0
  %2726 = vmatpush2.bf16.msra.mxu0 0
  %2727 = vmatprep.mubr.bf16.mxu0 0
  %2728 = vmatmul.mubr.bf16.gmra.mxu0 %v1194
  %v2729 = vpop.f32.mrf.mxu0
  %v2730 = vadd.f32 0.0, %v2729
  %v2731 = vpop.f32.mrf.mxu0
  %v2732 = vpop.f32.mrf.mxu0
  %v2733 = vadd.f32 0.0, %v2732
  %v2734 = vpop.f32.mrf.mxu0
  %2735 = vmatprep.mubr.bf16.mxu0 0
  %2736 = vmatmul.mubr.bf16.gmra.mxu0 %v1195
  %v2737 = vpop.f32.mrf.mxu0
  %v2738 = vadd.f32 0.0, %v2737
  %v2739 = vpop.f32.mrf.mxu0
  %v2740 = vpop.f32.mrf.mxu0
  %v2741 = vadd.f32 0.0, %v2740
  %v2742 = vpop.f32.mrf.mxu0
  %2743 = vmatprep.mubr.bf16.mxu0 0
  %2744 = vmatmul.mubr.bf16.gmra.mxu0 %v1196
  %v2745 = vpop.f32.mrf.mxu0
  %v2746 = vadd.f32 0.0, %v2745
  %v2747 = vpop.f32.mrf.mxu0
  %v2748 = vpop.f32.mrf.mxu0
  %v2749 = vadd.f32 0.0, %v2748
  %v2750 = vpop.f32.mrf.mxu0
  %2751 = vmatprep.mubr.bf16.mxu0 0
  %2752 = vmatmul.mubr.bf16.gmra.mxu0 %v1197
  %v2753 = vpop.f32.mrf.mxu0
  %v2754 = vadd.f32 0.0, %v2753
  %v2755 = vpop.f32.mrf.mxu0
  %v2756 = vpop.f32.mrf.mxu0
  %v2757 = vadd.f32 0.0, %v2756
  %v2758 = vpop.f32.mrf.mxu0
  %2759 = vmatprep.mubr.bf16.mxu0 0
  %2760 = vmatmul.mubr.bf16.gmra.mxu0 %v1198
  %v2761 = vpop.f32.mrf.mxu0
  %v2762 = vadd.f32 0.0, %v2761
  %v2763 = vpop.f32.mrf.mxu0
  %v2764 = vpop.f32.mrf.mxu0
  %v2765 = vadd.f32 0.0, %v2764
  %v2766 = vpop.f32.mrf.mxu0
  %2767 = vmatprep.mubr.bf16.mxu0 0
  %2768 = vmatmul.mubr.bf16.gmra.mxu0 %v1199
  %v2769 = vpop.f32.mrf.mxu0
  %v2770 = vadd.f32 0.0, %v2769
  %v2771 = vpop.f32.mrf.mxu0
  %v2772 = vpop.f32.mrf.mxu0
  %v2773 = vadd.f32 0.0, %v2772
  %v2774 = vpop.f32.mrf.mxu0
  %2775 = vmatprep.mubr.bf16.mxu0 0
  %2776 = vmatmul.mubr.bf16.gmra.mxu0 %v1200
  %v2777 = vpop.f32.mrf.mxu0
  %v2778 = vadd.f32 0.0, %v2777
  %v2779 = vpop.f32.mrf.mxu0
  %v2780 = vpop.f32.mrf.mxu0
  %v2781 = vadd.f32 0.0, %v2780
  %v2782 = vpop.f32.mrf.mxu0
  %2783 = vmatprep.mubr.bf16.mxu0 0
  %2784 = vmatmul.mubr.bf16.gmra.mxu0 %v1201
  %v2785 = vpop.f32.mrf.mxu0
  %v2786 = vadd.f32 0.0, %v2785
  %v2787 = vpop.f32.mrf.mxu0
  %v2788 = vpop.f32.mrf.mxu0
  %v2789 = vadd.f32 0.0, %v2788
  %v2790 = vpop.f32.mrf.mxu0
  %2791 = vdwg.mxu0
  %v2792 = vmul.f32 %v2730, %v975
  %v2793 = vmul.f32 %v2733, %v975
  %v2794 = vmul.f32 %v2738, %v975
  %v2795 = vmul.f32 %v2741, %v975
  %v2796 = vmul.f32 %v2746, %v975
  %v2797 = vmul.f32 %v2749, %v975
  %v2798 = vmul.f32 %v2754, %v975
  %v2799 = vmul.f32 %v2757, %v975
  %v2800 = vmul.f32 %v2762, %v975
  %v2801 = vmul.f32 %v2765, %v975
  %v2802 = vmul.f32 %v2770, %v975
  %v2803 = vmul.f32 %v2773, %v975
  %v2804 = vmul.f32 %v2778, %v975
  %v2805 = vmul.f32 %v2781, %v975
  %v2806 = vmul.f32 %v2786, %v975
  %v2807 = vmul.f32 %v2789, %v975
  %2808 = vadd.xlane.f32.xlu0 %v2792
  %v2809 = vpop.xlane.xlu0 %2808
  %2810 = vadd.xlane.f32.xlu0 %v2793
  %v2811 = vpop.xlane.xlu0 %2810
  %2812 = vadd.xlane.f32.xlu0 %v2794
  %v2813 = vpop.xlane.xlu0 %2812
  %2814 = vadd.xlane.f32.xlu0 %v2795
  %v2815 = vpop.xlane.xlu0 %2814
  %2816 = vadd.xlane.f32.xlu0 %v2796
  %v2817 = vpop.xlane.xlu0 %2816
  %2818 = vadd.xlane.f32.xlu0 %v2797
  %v2819 = vpop.xlane.xlu0 %2818
  %2820 = vadd.xlane.f32.xlu0 %v2798
  %v2821 = vpop.xlane.xlu0 %2820
  %2822 = vadd.xlane.f32.xlu0 %v2799
  %v2823 = vpop.xlane.xlu0 %2822
  %2824 = vadd.xlane.f32.xlu0 %v2800
  %v2825 = vpop.xlane.xlu0 %2824
  %2826 = vadd.xlane.f32.xlu0 %v2801
  %v2827 = vpop.xlane.xlu0 %2826
  %2828 = vadd.xlane.f32.xlu0 %v2802
  %v2829 = vpop.xlane.xlu0 %2828
  %2830 = vadd.xlane.f32.xlu0 %v2803
  %v2831 = vpop.xlane.xlu0 %2830
  %2832 = vadd.xlane.f32.xlu0 %v2804
  %v2833 = vpop.xlane.xlu0 %2832
  %2834 = vadd.xlane.f32.xlu0 %v2805
  %v2835 = vpop.xlane.xlu0 %2834
  %2836 = vadd.xlane.f32.xlu0 %v2806
  %v2837 = vpop.xlane.xlu0 %2836
  %2838 = vadd.xlane.f32.xlu0 %v2807
  %v2839 = vpop.xlane.xlu0 %2838
  %v2840 = vadd.f32 %v2809, %v1025
  %v2841 = vadd.f32 %v2811, %v1025
  %v2842 = vadd.f32 %v2813, %v1025
  %v2843 = vadd.f32 %v2815, %v1025
  %v2844 = vadd.f32 %v2817, %v1025
  %v2845 = vadd.f32 %v2819, %v1025
  %v2846 = vadd.f32 %v2821, %v1025
  %v2847 = vadd.f32 %v2823, %v1025
  %v2848 = vadd.f32 %v2825, %v1025
  %v2849 = vadd.f32 %v2827, %v1025
  %v2850 = vadd.f32 %v2829, %v1025
  %v2851 = vadd.f32 %v2831, %v1025
  %v2852 = vadd.f32 %v2833, %v1025
  %v2853 = vadd.f32 %v2835, %v1025
  %v2854 = vadd.f32 %v2837, %v1025
  %v2855 = vadd.f32 %v2839, %v1025
  %v2856 = vsub.f32 0.0, %v2840
  %v2857 = vsub.f32 0.0, %v2841
  %v2858 = vsub.f32 0.0, %v2842
  %v2859 = vsub.f32 0.0, %v2843
  %v2860 = vsub.f32 0.0, %v2844
  %v2861 = vsub.f32 0.0, %v2845
  %v2862 = vsub.f32 0.0, %v2846
  %v2863 = vsub.f32 0.0, %v2847
  %v2864 = vsub.f32 0.0, %v2848
  %v2865 = vsub.f32 0.0, %v2849
  %v2866 = vsub.f32 0.0, %v2850
  %v2867 = vsub.f32 0.0, %v2851
  %v2868 = vsub.f32 0.0, %v2852
  %v2869 = vsub.f32 0.0, %v2853
  %v2870 = vsub.f32 0.0, %v2854
  %v2871 = vsub.f32 0.0, %v2855
  %v2872 = vmin.f32 %v2856, 30.0
  %v2873 = vmin.f32 %v2857, 30.0
  %v2874 = vmin.f32 %v2858, 30.0
  %v2875 = vmin.f32 %v2859, 30.0
  %v2876 = vmin.f32 %v2860, 30.0
  %v2877 = vmin.f32 %v2861, 30.0
  %v2878 = vmin.f32 %v2862, 30.0
  %v2879 = vmin.f32 %v2863, 30.0
  %v2880 = vmin.f32 %v2864, 30.0
  %v2881 = vmin.f32 %v2865, 30.0
  %v2882 = vmin.f32 %v2866, 30.0
  %v2883 = vmin.f32 %v2867, 30.0
  %v2884 = vmin.f32 %v2868, 30.0
  %v2885 = vmin.f32 %v2869, 30.0
  %v2886 = vmin.f32 %v2870, 30.0
  %v2887 = vmin.f32 %v2871, 30.0
  %v2888 = vmul.f32 %v2872, 1.442695
  %v2889 = vpow.pop %v2888
  %v2890 = vmul.f32 %v2873, 1.442695
  %v2891 = vpow.pop %v2890
  %v2892 = vmul.f32 %v2874, 1.442695
  %v2893 = vpow.pop %v2892
  %v2894 = vmul.f32 %v2875, 1.442695
  %v2895 = vpow.pop %v2894
  %v2896 = vmul.f32 %v2876, 1.442695
  %v2897 = vpow.pop %v2896
  %v2898 = vmul.f32 %v2877, 1.442695
  %v2899 = vpow.pop %v2898
  %v2900 = vmul.f32 %v2878, 1.442695
  %v2901 = vpow.pop %v2900
  %v2902 = vmul.f32 %v2879, 1.442695
  %v2903 = vpow.pop %v2902
  %v2904 = vmul.f32 %v2880, 1.442695
  %v2905 = vpow.pop %v2904
  %v2906 = vmul.f32 %v2881, 1.442695
  %v2907 = vpow.pop %v2906
  %v2908 = vmul.f32 %v2882, 1.442695
  %v2909 = vpow.pop %v2908
  %v2910 = vmul.f32 %v2883, 1.442695
  %v2911 = vpow.pop %v2910
  %v2912 = vmul.f32 %v2884, 1.442695
  %v2913 = vpow.pop %v2912
  %v2914 = vmul.f32 %v2885, 1.442695
  %v2915 = vpow.pop %v2914
  %v2916 = vmul.f32 %v2886, 1.442695
  %v2917 = vpow.pop %v2916
  %v2918 = vmul.f32 %v2887, 1.442695
  %v2919 = vpow.pop %v2918
  %v2920 = vadd.f32 %v2889, 1.0
  %v2921 = vadd.f32 %v2891, 1.0
  %v2922 = vadd.f32 %v2893, 1.0
  %v2923 = vadd.f32 %v2895, 1.0
  %v2924 = vadd.f32 %v2897, 1.0
  %v2925 = vadd.f32 %v2899, 1.0
  %v2926 = vadd.f32 %v2901, 1.0
  %v2927 = vadd.f32 %v2903, 1.0
  %v2928 = vadd.f32 %v2905, 1.0
  %v2929 = vadd.f32 %v2907, 1.0
  %v2930 = vadd.f32 %v2909, 1.0
  %v2931 = vadd.f32 %v2911, 1.0
  %v2932 = vadd.f32 %v2913, 1.0
  %v2933 = vadd.f32 %v2915, 1.0
  %v2934 = vadd.f32 %v2917, 1.0
  %v2935 = vadd.f32 %v2919, 1.0
  %v2936 = vrcp.pop %v2920
  %v2937 = vrcp.pop %v2921
  %v2938 = vrcp.pop %v2922
  %v2939 = vrcp.pop %v2923
  %v2940 = vrcp.pop %v2924
  %v2941 = vrcp.pop %v2925
  %v2942 = vrcp.pop %v2926
  %v2943 = vrcp.pop %v2927
  %v2944 = vrcp.pop %v2928
  %v2945 = vrcp.pop %v2929
  %v2946 = vrcp.pop %v2930
  %v2947 = vrcp.pop %v2931
  %v2948 = vrcp.pop %v2932
  %v2949 = vrcp.pop %v2933
  %v2950 = vrcp.pop %v2934
  %v2951 = vrcp.pop %v2935
  %v2952 = vmul.f32 %v2936, %v2730
  %v2953 = vmul.f32 %v2937, %v2733
  %v2954 = vmul.f32 %v2938, %v2738
  %v2955 = vmul.f32 %v2939, %v2741
  %v2956 = vmul.f32 %v2940, %v2746
  %v2957 = vmul.f32 %v2941, %v2749
  %v2958 = vmul.f32 %v2942, %v2754
  %v2959 = vmul.f32 %v2943, %v2757
  %v2960 = vmul.f32 %v2944, %v2762
  %v2961 = vmul.f32 %v2945, %v2765
  %v2962 = vmul.f32 %v2946, %v2770
  %v2963 = vmul.f32 %v2947, %v2773
  %v2964 = vmul.f32 %v2948, %v2778
  %v2965 = vmul.f32 %v2949, %v2781
  %v2966 = vmul.f32 %v2950, %v2786
  %v2967 = vmul.f32 %v2951, %v2789
  %v2968 = vadd.f32 %v2671, %v2952
  %v2969 = vadd.f32 %v2672, %v2953
  %v2970 = vadd.f32 %v2673, %v2954
  %v2971 = vadd.f32 %v2674, %v2955
  %v2972 = vadd.f32 %v2675, %v2956
  %v2973 = vadd.f32 %v2676, %v2957
  %v2974 = vadd.f32 %v2677, %v2958
  %v2975 = vadd.f32 %v2678, %v2959
  %v2976 = vadd.f32 %v2679, %v2960
  %v2977 = vadd.f32 %v2680, %v2961
  %v2978 = vadd.f32 %v2681, %v2962
  %v2979 = vadd.f32 %v2682, %v2963
  %v2980 = vadd.f32 %v2683, %v2964
  %v2981 = vadd.f32 %v2684, %v2965
  %v2982 = vadd.f32 %v2685, %v2966
  %v2983 = vadd.f32 %v2686, %v2967
  %v2984 = vpack.c.bf16 %v2733, %v2730
  %v2985 = vpack.c.bf16 %v2741, %v2738
  %v2986 = vpack.c.bf16 %v2749, %v2746
  %v2987 = vpack.c.bf16 %v2757, %v2754
  %v2988 = vpack.c.bf16 %v2765, %v2762
  %v2989 = vpack.c.bf16 %v2773, %v2770
  %v2990 = vpack.c.bf16 %v2781, %v2778
  %v2991 = vpack.c.bf16 %v2789, %v2786
  %2992 = vmatprep.subr.bf16.mxu0 0
  %2993 = vmatpush1.bf16.msra.mxu0 %v2991
  %2994 = vmatprep.subr.bf16.mxu0 0
  %2995 = vmatpush1.bf16.msra.mxu0 %v2990
  %2996 = vmatprep.subr.bf16.mxu0 0
  %2997 = vmatpush1.bf16.msra.mxu0 %v2989
  %2998 = vmatprep.subr.bf16.mxu0 0
  %2999 = vmatpush1.bf16.msra.mxu0 %v2988
  %3000 = vmatprep.subr.bf16.mxu0 0
  %3001 = vmatpush1.bf16.msra.mxu0 %v2987
  %3002 = vmatprep.subr.bf16.mxu0 0
  %3003 = vmatpush1.bf16.msra.mxu0 %v2986
  %3004 = vmatprep.subr.bf16.mxu0 0
  %3005 = vmatpush1.bf16.msra.mxu0 %v2985
  %3006 = vmatprep.subr.bf16.mxu0 0
  %3007 = vmatpush1.bf16.msra.mxu0 %v2984
  %3008 = vmatprep.subr.bf16.mxu0 0
  %3009 = vmatpush2.bf16.msra.mxu0 0
  %3010 = vmatprep.subr.bf16.mxu0 0
  %3011 = vmatpush2.bf16.msra.mxu0 0
  %3012 = vmatprep.subr.bf16.mxu0 0
  %3013 = vmatpush2.bf16.msra.mxu0 0
  %3014 = vmatprep.subr.bf16.mxu0 0
  %3015 = vmatpush2.bf16.msra.mxu0 0
  %3016 = vmatprep.subr.bf16.mxu0 0
  %3017 = vmatpush2.bf16.msra.mxu0 0
  %3018 = vmatprep.subr.bf16.mxu0 0
  %3019 = vmatpush2.bf16.msra.mxu0 0
  %3020 = vmatprep.subr.bf16.mxu0 0
  %3021 = vmatpush2.bf16.msra.mxu0 0
  %3022 = vmatprep.subr.bf16.mxu0 0
  %3023 = vmatpush2.bf16.msra.mxu0 0
  %3024 = vmatprep.mubr.bf16.mxu0 0
  %3025 = vmatmul.mubr.bf16.gmra.mxu0 %v1194
  %v3026 = vpop.f32.mrf.mxu0
  %v3027 = vadd.f32 0.0, %v3026
  %v3028 = vpop.f32.mrf.mxu0
  %v3029 = vpop.f32.mrf.mxu0
  %v3030 = vadd.f32 0.0, %v3029
  %v3031 = vpop.f32.mrf.mxu0
  %3032 = vmatprep.mubr.bf16.mxu0 0
  %3033 = vmatmul.mubr.bf16.gmra.mxu0 %v1195
  %v3034 = vpop.f32.mrf.mxu0
  %v3035 = vadd.f32 0.0, %v3034
  %v3036 = vpop.f32.mrf.mxu0
  %v3037 = vpop.f32.mrf.mxu0
  %v3038 = vadd.f32 0.0, %v3037
  %v3039 = vpop.f32.mrf.mxu0
  %3040 = vmatprep.mubr.bf16.mxu0 0
  %3041 = vmatmul.mubr.bf16.gmra.mxu0 %v1196
  %v3042 = vpop.f32.mrf.mxu0
  %v3043 = vadd.f32 0.0, %v3042
  %v3044 = vpop.f32.mrf.mxu0
  %v3045 = vpop.f32.mrf.mxu0
  %v3046 = vadd.f32 0.0, %v3045
  %v3047 = vpop.f32.mrf.mxu0
  %3048 = vmatprep.mubr.bf16.mxu0 0
  %3049 = vmatmul.mubr.bf16.gmra.mxu0 %v1197
  %v3050 = vpop.f32.mrf.mxu0
  %v3051 = vadd.f32 0.0, %v3050
  %v3052 = vpop.f32.mrf.mxu0
  %v3053 = vpop.f32.mrf.mxu0
  %v3054 = vadd.f32 0.0, %v3053
  %v3055 = vpop.f32.mrf.mxu0
  %3056 = vmatprep.mubr.bf16.mxu0 0
  %3057 = vmatmul.mubr.bf16.gmra.mxu0 %v1198
  %v3058 = vpop.f32.mrf.mxu0
  %v3059 = vadd.f32 0.0, %v3058
  %v3060 = vpop.f32.mrf.mxu0
  %v3061 = vpop.f32.mrf.mxu0
  %v3062 = vadd.f32 0.0, %v3061
  %v3063 = vpop.f32.mrf.mxu0
  %3064 = vmatprep.mubr.bf16.mxu0 0
  %3065 = vmatmul.mubr.bf16.gmra.mxu0 %v1199
  %v3066 = vpop.f32.mrf.mxu0
  %v3067 = vadd.f32 0.0, %v3066
  %v3068 = vpop.f32.mrf.mxu0
  %v3069 = vpop.f32.mrf.mxu0
  %v3070 = vadd.f32 0.0, %v3069
  %v3071 = vpop.f32.mrf.mxu0
  %3072 = vmatprep.mubr.bf16.mxu0 0
  %3073 = vmatmul.mubr.bf16.gmra.mxu0 %v1200
  %v3074 = vpop.f32.mrf.mxu0
  %v3075 = vadd.f32 0.0, %v3074
  %v3076 = vpop.f32.mrf.mxu0
  %v3077 = vpop.f32.mrf.mxu0
  %v3078 = vadd.f32 0.0, %v3077
  %v3079 = vpop.f32.mrf.mxu0
  %3080 = vmatprep.mubr.bf16.mxu0 0
  %3081 = vmatmul.mubr.bf16.gmra.mxu0 %v1201
  %v3082 = vpop.f32.mrf.mxu0
  %v3083 = vadd.f32 0.0, %v3082
  %v3084 = vpop.f32.mrf.mxu0
  %v3085 = vpop.f32.mrf.mxu0
  %v3086 = vadd.f32 0.0, %v3085
  %v3087 = vpop.f32.mrf.mxu0
  %3088 = vdwg.mxu0
  %v3089 = vmul.f32 %v3027, %v975
  %v3090 = vmul.f32 %v3030, %v975
  %v3091 = vmul.f32 %v3035, %v975
  %v3092 = vmul.f32 %v3038, %v975
  %v3093 = vmul.f32 %v3043, %v975
  %v3094 = vmul.f32 %v3046, %v975
  %v3095 = vmul.f32 %v3051, %v975
  %v3096 = vmul.f32 %v3054, %v975
  %v3097 = vmul.f32 %v3059, %v975
  %v3098 = vmul.f32 %v3062, %v975
  %v3099 = vmul.f32 %v3067, %v975
  %v3100 = vmul.f32 %v3070, %v975
  %v3101 = vmul.f32 %v3075, %v975
  %v3102 = vmul.f32 %v3078, %v975
  %v3103 = vmul.f32 %v3083, %v975
  %v3104 = vmul.f32 %v3086, %v975
  %3105 = vadd.xlane.f32.xlu0 %v3089
  %v3106 = vpop.xlane.xlu0 %3105
  %3107 = vadd.xlane.f32.xlu0 %v3090
  %v3108 = vpop.xlane.xlu0 %3107
  %3109 = vadd.xlane.f32.xlu0 %v3091
  %v3110 = vpop.xlane.xlu0 %3109
  %3111 = vadd.xlane.f32.xlu0 %v3092
  %v3112 = vpop.xlane.xlu0 %3111
  %3113 = vadd.xlane.f32.xlu0 %v3093
  %v3114 = vpop.xlane.xlu0 %3113
  %3115 = vadd.xlane.f32.xlu0 %v3094
  %v3116 = vpop.xlane.xlu0 %3115
  %3117 = vadd.xlane.f32.xlu0 %v3095
  %v3118 = vpop.xlane.xlu0 %3117
  %3119 = vadd.xlane.f32.xlu0 %v3096
  %v3120 = vpop.xlane.xlu0 %3119
  %3121 = vadd.xlane.f32.xlu0 %v3097
  %v3122 = vpop.xlane.xlu0 %3121
  %3123 = vadd.xlane.f32.xlu0 %v3098
  %v3124 = vpop.xlane.xlu0 %3123
  %3125 = vadd.xlane.f32.xlu0 %v3099
  %v3126 = vpop.xlane.xlu0 %3125
  %3127 = vadd.xlane.f32.xlu0 %v3100
  %v3128 = vpop.xlane.xlu0 %3127
  %3129 = vadd.xlane.f32.xlu0 %v3101
  %v3130 = vpop.xlane.xlu0 %3129
  %3131 = vadd.xlane.f32.xlu0 %v3102
  %v3132 = vpop.xlane.xlu0 %3131
  %3133 = vadd.xlane.f32.xlu0 %v3103
  %v3134 = vpop.xlane.xlu0 %3133
  %3135 = vadd.xlane.f32.xlu0 %v3104
  %v3136 = vpop.xlane.xlu0 %3135
  %v3137 = vadd.f32 %v3106, %v1025
  %v3138 = vadd.f32 %v3108, %v1025
  %v3139 = vadd.f32 %v3110, %v1025
  %v3140 = vadd.f32 %v3112, %v1025
  %v3141 = vadd.f32 %v3114, %v1025
  %v3142 = vadd.f32 %v3116, %v1025
  %v3143 = vadd.f32 %v3118, %v1025
  %v3144 = vadd.f32 %v3120, %v1025
  %v3145 = vadd.f32 %v3122, %v1025
  %v3146 = vadd.f32 %v3124, %v1025
  %v3147 = vadd.f32 %v3126, %v1025
  %v3148 = vadd.f32 %v3128, %v1025
  %v3149 = vadd.f32 %v3130, %v1025
  %v3150 = vadd.f32 %v3132, %v1025
  %v3151 = vadd.f32 %v3134, %v1025
  %v3152 = vadd.f32 %v3136, %v1025
  %v3153 = vsub.f32 0.0, %v3137
  %v3154 = vsub.f32 0.0, %v3138
  %v3155 = vsub.f32 0.0, %v3139
  %v3156 = vsub.f32 0.0, %v3140
  %v3157 = vsub.f32 0.0, %v3141
  %v3158 = vsub.f32 0.0, %v3142
  %v3159 = vsub.f32 0.0, %v3143
  %v3160 = vsub.f32 0.0, %v3144
  %v3161 = vsub.f32 0.0, %v3145
  %v3162 = vsub.f32 0.0, %v3146
  %v3163 = vsub.f32 0.0, %v3147
  %v3164 = vsub.f32 0.0, %v3148
  %v3165 = vsub.f32 0.0, %v3149
  %v3166 = vsub.f32 0.0, %v3150
  %v3167 = vsub.f32 0.0, %v3151
  %v3168 = vsub.f32 0.0, %v3152
  %v3169 = vmin.f32 %v3153, 30.0
  %v3170 = vmin.f32 %v3154, 30.0
  %v3171 = vmin.f32 %v3155, 30.0
  %v3172 = vmin.f32 %v3156, 30.0
  %v3173 = vmin.f32 %v3157, 30.0
  %v3174 = vmin.f32 %v3158, 30.0
  %v3175 = vmin.f32 %v3159, 30.0
  %v3176 = vmin.f32 %v3160, 30.0
  %v3177 = vmin.f32 %v3161, 30.0
  %v3178 = vmin.f32 %v3162, 30.0
  %v3179 = vmin.f32 %v3163, 30.0
  %v3180 = vmin.f32 %v3164, 30.0
  %v3181 = vmin.f32 %v3165, 30.0
  %v3182 = vmin.f32 %v3166, 30.0
  %v3183 = vmin.f32 %v3167, 30.0
  %v3184 = vmin.f32 %v3168, 30.0
  %v3185 = vmul.f32 %v3169, 1.442695
  %v3186 = vpow.pop %v3185
  %v3187 = vmul.f32 %v3170, 1.442695
  %v3188 = vpow.pop %v3187
  %v3189 = vmul.f32 %v3171, 1.442695
  %v3190 = vpow.pop %v3189
  %v3191 = vmul.f32 %v3172, 1.442695
  %v3192 = vpow.pop %v3191
  %v3193 = vmul.f32 %v3173, 1.442695
  %v3194 = vpow.pop %v3193
  %v3195 = vmul.f32 %v3174, 1.442695
  %v3196 = vpow.pop %v3195
  %v3197 = vmul.f32 %v3175, 1.442695
  %v3198 = vpow.pop %v3197
  %v3199 = vmul.f32 %v3176, 1.442695
  %v3200 = vpow.pop %v3199
  %v3201 = vmul.f32 %v3177, 1.442695
  %v3202 = vpow.pop %v3201
  %v3203 = vmul.f32 %v3178, 1.442695
  %v3204 = vpow.pop %v3203
  %v3205 = vmul.f32 %v3179, 1.442695
  %v3206 = vpow.pop %v3205
  %v3207 = vmul.f32 %v3180, 1.442695
  %v3208 = vpow.pop %v3207
  %v3209 = vmul.f32 %v3181, 1.442695
  %v3210 = vpow.pop %v3209
  %v3211 = vmul.f32 %v3182, 1.442695
  %v3212 = vpow.pop %v3211
  %v3213 = vmul.f32 %v3183, 1.442695
  %v3214 = vpow.pop %v3213
  %v3215 = vmul.f32 %v3184, 1.442695
  %v3216 = vpow.pop %v3215
  %v3217 = vadd.f32 %v3186, 1.0
  %v3218 = vadd.f32 %v3188, 1.0
  %v3219 = vadd.f32 %v3190, 1.0
  %v3220 = vadd.f32 %v3192, 1.0
  %v3221 = vadd.f32 %v3194, 1.0
  %v3222 = vadd.f32 %v3196, 1.0
  %v3223 = vadd.f32 %v3198, 1.0
  %v3224 = vadd.f32 %v3200, 1.0
  %v3225 = vadd.f32 %v3202, 1.0
  %v3226 = vadd.f32 %v3204, 1.0
  %v3227 = vadd.f32 %v3206, 1.0
  %v3228 = vadd.f32 %v3208, 1.0
  %v3229 = vadd.f32 %v3210, 1.0
  %v3230 = vadd.f32 %v3212, 1.0
  %v3231 = vadd.f32 %v3214, 1.0
  %v3232 = vadd.f32 %v3216, 1.0
  %v3233 = vrcp.pop %v3217
  %v3234 = vrcp.pop %v3218
  %v3235 = vrcp.pop %v3219
  %v3236 = vrcp.pop %v3220
  %v3237 = vrcp.pop %v3221
  %v3238 = vrcp.pop %v3222
  %v3239 = vrcp.pop %v3223
  %v3240 = vrcp.pop %v3224
  %v3241 = vrcp.pop %v3225
  %v3242 = vrcp.pop %v3226
  %v3243 = vrcp.pop %v3227
  %v3244 = vrcp.pop %v3228
  %v3245 = vrcp.pop %v3229
  %v3246 = vrcp.pop %v3230
  %v3247 = vrcp.pop %v3231
  %v3248 = vrcp.pop %v3232
  %v3249 = vmul.f32 %v3233, %v3027
  %v3250 = vmul.f32 %v3234, %v3030
  %v3251 = vmul.f32 %v3235, %v3035
  %v3252 = vmul.f32 %v3236, %v3038
  %v3253 = vmul.f32 %v3237, %v3043
  %v3254 = vmul.f32 %v3238, %v3046
  %v3255 = vmul.f32 %v3239, %v3051
  %v3256 = vmul.f32 %v3240, %v3054
  %v3257 = vmul.f32 %v3241, %v3059
  %v3258 = vmul.f32 %v3242, %v3062
  %v3259 = vmul.f32 %v3243, %v3067
  %v3260 = vmul.f32 %v3244, %v3070
  %v3261 = vmul.f32 %v3245, %v3075
  %v3262 = vmul.f32 %v3246, %v3078
  %v3263 = vmul.f32 %v3247, %v3083
  %v3264 = vmul.f32 %v3248, %v3086
  %v3265 = vadd.f32 %v2968, %v3249
  %v3266 = vadd.f32 %v2969, %v3250
  %v3267 = vadd.f32 %v2970, %v3251
  %v3268 = vadd.f32 %v2971, %v3252
  %v3269 = vadd.f32 %v2972, %v3253
  %v3270 = vadd.f32 %v2973, %v3254
  %v3271 = vadd.f32 %v2974, %v3255
  %v3272 = vadd.f32 %v2975, %v3256
  %v3273 = vadd.f32 %v2976, %v3257
  %v3274 = vadd.f32 %v2977, %v3258
  %v3275 = vadd.f32 %v2978, %v3259
  %v3276 = vadd.f32 %v2979, %v3260
  %v3277 = vadd.f32 %v2980, %v3261
  %v3278 = vadd.f32 %v2981, %v3262
  %v3279 = vadd.f32 %v2982, %v3263
  %v3280 = vadd.f32 %v2983, %v3264
  %v3281 = vpack.c.bf16 %v3030, %v3027
  %v3282 = vpack.c.bf16 %v3038, %v3035
  %v3283 = vpack.c.bf16 %v3046, %v3043
  %v3284 = vpack.c.bf16 %v3054, %v3051
  %v3285 = vpack.c.bf16 %v3062, %v3059
  %v3286 = vpack.c.bf16 %v3070, %v3067
  %v3287 = vpack.c.bf16 %v3078, %v3075
  %v3288 = vpack.c.bf16 %v3086, %v3083
  %3289 = vmatprep.subr.bf16.mxu0 0
  %3290 = vmatpush1.bf16.msra.mxu0 %v3288
  %3291 = vmatprep.subr.bf16.mxu0 0
  %3292 = vmatpush1.bf16.msra.mxu0 %v3287
  %3293 = vmatprep.subr.bf16.mxu0 0
  %3294 = vmatpush1.bf16.msra.mxu0 %v3286
  %3295 = vmatprep.subr.bf16.mxu0 0
  %3296 = vmatpush1.bf16.msra.mxu0 %v3285
  %3297 = vmatprep.subr.bf16.mxu0 0
  %3298 = vmatpush1.bf16.msra.mxu0 %v3284
  %3299 = vmatprep.subr.bf16.mxu0 0
  %3300 = vmatpush1.bf16.msra.mxu0 %v3283
  %3301 = vmatprep.subr.bf16.mxu0 0
  %3302 = vmatpush1.bf16.msra.mxu0 %v3282
  %3303 = vmatprep.subr.bf16.mxu0 0
  %3304 = vmatpush1.bf16.msra.mxu0 %v3281
  %3305 = vmatprep.subr.bf16.mxu0 0
  %3306 = vmatpush2.bf16.msra.mxu0 0
  %3307 = vmatprep.subr.bf16.mxu0 0
  %3308 = vmatpush2.bf16.msra.mxu0 0
  %3309 = vmatprep.subr.bf16.mxu0 0
  %3310 = vmatpush2.bf16.msra.mxu0 0
  %3311 = vmatprep.subr.bf16.mxu0 0
  %3312 = vmatpush2.bf16.msra.mxu0 0
  %3313 = vmatprep.subr.bf16.mxu0 0
  %3314 = vmatpush2.bf16.msra.mxu0 0
  %3315 = vmatprep.subr.bf16.mxu0 0
  %3316 = vmatpush2.bf16.msra.mxu0 0
  %3317 = vmatprep.subr.bf16.mxu0 0
  %3318 = vmatpush2.bf16.msra.mxu0 0
  %3319 = vmatprep.subr.bf16.mxu0 0
  %3320 = vmatpush2.bf16.msra.mxu0 0
  %3321 = vmatprep.mubr.bf16.mxu0 0
  %3322 = vmatmul.mubr.bf16.gmra.mxu0 %v1194
  %v3323 = vpop.f32.mrf.mxu0
  %v3324 = vadd.f32 0.0, %v3323
  %v3325 = vpop.f32.mrf.mxu0
  %v3326 = vpop.f32.mrf.mxu0
  %v3327 = vadd.f32 0.0, %v3326
  %v3328 = vpop.f32.mrf.mxu0
  %3329 = vmatprep.mubr.bf16.mxu0 0
  %3330 = vmatmul.mubr.bf16.gmra.mxu0 %v1195
  %v3331 = vpop.f32.mrf.mxu0
  %v3332 = vadd.f32 0.0, %v3331
  %v3333 = vpop.f32.mrf.mxu0
  %v3334 = vpop.f32.mrf.mxu0
  %v3335 = vadd.f32 0.0, %v3334
  %v3336 = vpop.f32.mrf.mxu0
  %3337 = vmatprep.mubr.bf16.mxu0 0
  %3338 = vmatmul.mubr.bf16.gmra.mxu0 %v1196
  %v3339 = vpop.f32.mrf.mxu0
  %v3340 = vadd.f32 0.0, %v3339
  %v3341 = vpop.f32.mrf.mxu0
  %v3342 = vpop.f32.mrf.mxu0
  %v3343 = vadd.f32 0.0, %v3342
  %v3344 = vpop.f32.mrf.mxu0
  %3345 = vmatprep.mubr.bf16.mxu0 0
  %3346 = vmatmul.mubr.bf16.gmra.mxu0 %v1197
  %v3347 = vpop.f32.mrf.mxu0
  %v3348 = vadd.f32 0.0, %v3347
  %v3349 = vpop.f32.mrf.mxu0
  %v3350 = vpop.f32.mrf.mxu0
  %v3351 = vadd.f32 0.0, %v3350
  %v3352 = vpop.f32.mrf.mxu0
  %3353 = vmatprep.mubr.bf16.mxu0 0
  %3354 = vmatmul.mubr.bf16.gmra.mxu0 %v1198
  %v3355 = vpop.f32.mrf.mxu0
  %v3356 = vadd.f32 0.0, %v3355
  %v3357 = vpop.f32.mrf.mxu0
  %v3358 = vpop.f32.mrf.mxu0
  %v3359 = vadd.f32 0.0, %v3358
  %v3360 = vpop.f32.mrf.mxu0
  %3361 = vmatprep.mubr.bf16.mxu0 0
  %3362 = vmatmul.mubr.bf16.gmra.mxu0 %v1199
  %v3363 = vpop.f32.mrf.mxu0
  %v3364 = vadd.f32 0.0, %v3363
  %v3365 = vpop.f32.mrf.mxu0
  %v3366 = vpop.f32.mrf.mxu0
  %v3367 = vadd.f32 0.0, %v3366
  %v3368 = vpop.f32.mrf.mxu0
  %3369 = vmatprep.mubr.bf16.mxu0 0
  %3370 = vmatmul.mubr.bf16.gmra.mxu0 %v1200
  %v3371 = vpop.f32.mrf.mxu0
  %v3372 = vadd.f32 0.0, %v3371
  %v3373 = vpop.f32.mrf.mxu0
  %v3374 = vpop.f32.mrf.mxu0
  %v3375 = vadd.f32 0.0, %v3374
  %v3376 = vpop.f32.mrf.mxu0
  %3377 = vmatprep.mubr.bf16.mxu0 0
  %3378 = vmatmul.mubr.bf16.gmra.mxu0 %v1201
  %v3379 = vpop.f32.mrf.mxu0
  %v3380 = vadd.f32 0.0, %v3379
  %v3381 = vpop.f32.mrf.mxu0
  %v3382 = vpop.f32.mrf.mxu0
  %v3383 = vadd.f32 0.0, %v3382
  %v3384 = vpop.f32.mrf.mxu0
  %3385 = vdwg.mxu0
  %v3386 = vmul.f32 %v3324, %v975
  %v3387 = vmul.f32 %v3327, %v975
  %v3388 = vmul.f32 %v3332, %v975
  %v3389 = vmul.f32 %v3335, %v975
  %v3390 = vmul.f32 %v3340, %v975
  %v3391 = vmul.f32 %v3343, %v975
  %v3392 = vmul.f32 %v3348, %v975
  %v3393 = vmul.f32 %v3351, %v975
  %v3394 = vmul.f32 %v3356, %v975
  %v3395 = vmul.f32 %v3359, %v975
  %v3396 = vmul.f32 %v3364, %v975
  %v3397 = vmul.f32 %v3367, %v975
  %v3398 = vmul.f32 %v3372, %v975
  %v3399 = vmul.f32 %v3375, %v975
  %v3400 = vmul.f32 %v3380, %v975
  %v3401 = vmul.f32 %v3383, %v975
  %3402 = vadd.xlane.f32.xlu0 %v3386
  %v3403 = vpop.xlane.xlu0 %3402
  %3404 = vadd.xlane.f32.xlu0 %v3387
  %v3405 = vpop.xlane.xlu0 %3404
  %3406 = vadd.xlane.f32.xlu0 %v3388
  %v3407 = vpop.xlane.xlu0 %3406
  %3408 = vadd.xlane.f32.xlu0 %v3389
  %v3409 = vpop.xlane.xlu0 %3408
  %3410 = vadd.xlane.f32.xlu0 %v3390
  %v3411 = vpop.xlane.xlu0 %3410
  %3412 = vadd.xlane.f32.xlu0 %v3391
  %v3413 = vpop.xlane.xlu0 %3412
  %3414 = vadd.xlane.f32.xlu0 %v3392
  %v3415 = vpop.xlane.xlu0 %3414
  %3416 = vadd.xlane.f32.xlu0 %v3393
  %v3417 = vpop.xlane.xlu0 %3416
  %3418 = vadd.xlane.f32.xlu0 %v3394
  %v3419 = vpop.xlane.xlu0 %3418
  %3420 = vadd.xlane.f32.xlu0 %v3395
  %v3421 = vpop.xlane.xlu0 %3420
  %3422 = vadd.xlane.f32.xlu0 %v3396
  %v3423 = vpop.xlane.xlu0 %3422
  %3424 = vadd.xlane.f32.xlu0 %v3397
  %v3425 = vpop.xlane.xlu0 %3424
  %3426 = vadd.xlane.f32.xlu0 %v3398
  %v3427 = vpop.xlane.xlu0 %3426
  %3428 = vadd.xlane.f32.xlu0 %v3399
  %v3429 = vpop.xlane.xlu0 %3428
  %3430 = vadd.xlane.f32.xlu0 %v3400
  %v3431 = vpop.xlane.xlu0 %3430
  %3432 = vadd.xlane.f32.xlu0 %v3401
  %v3433 = vpop.xlane.xlu0 %3432
  %v3434 = vadd.f32 %v3403, %v1025
  %v3435 = vadd.f32 %v3405, %v1025
  %v3436 = vadd.f32 %v3407, %v1025
  %v3437 = vadd.f32 %v3409, %v1025
  %v3438 = vadd.f32 %v3411, %v1025
  %v3439 = vadd.f32 %v3413, %v1025
  %v3440 = vadd.f32 %v3415, %v1025
  %v3441 = vadd.f32 %v3417, %v1025
  %v3442 = vadd.f32 %v3419, %v1025
  %v3443 = vadd.f32 %v3421, %v1025
  %v3444 = vadd.f32 %v3423, %v1025
  %v3445 = vadd.f32 %v3425, %v1025
  %v3446 = vadd.f32 %v3427, %v1025
  %v3447 = vadd.f32 %v3429, %v1025
  %v3448 = vadd.f32 %v3431, %v1025
  %v3449 = vadd.f32 %v3433, %v1025
  %v3450 = vsub.f32 0.0, %v3434
  %v3451 = vsub.f32 0.0, %v3435
  %v3452 = vsub.f32 0.0, %v3436
  %v3453 = vsub.f32 0.0, %v3437
  %v3454 = vsub.f32 0.0, %v3438
  %v3455 = vsub.f32 0.0, %v3439
  %v3456 = vsub.f32 0.0, %v3440
  %v3457 = vsub.f32 0.0, %v3441
  %v3458 = vsub.f32 0.0, %v3442
  %v3459 = vsub.f32 0.0, %v3443
  %v3460 = vsub.f32 0.0, %v3444
  %v3461 = vsub.f32 0.0, %v3445
  %v3462 = vsub.f32 0.0, %v3446
  %v3463 = vsub.f32 0.0, %v3447
  %v3464 = vsub.f32 0.0, %v3448
  %v3465 = vsub.f32 0.0, %v3449
  %v3466 = vmin.f32 %v3450, 30.0
  %v3467 = vmin.f32 %v3451, 30.0
  %v3468 = vmin.f32 %v3452, 30.0
  %v3469 = vmin.f32 %v3453, 30.0
  %v3470 = vmin.f32 %v3454, 30.0
  %v3471 = vmin.f32 %v3455, 30.0
  %v3472 = vmin.f32 %v3456, 30.0
  %v3473 = vmin.f32 %v3457, 30.0
  %v3474 = vmin.f32 %v3458, 30.0
  %v3475 = vmin.f32 %v3459, 30.0
  %v3476 = vmin.f32 %v3460, 30.0
  %v3477 = vmin.f32 %v3461, 30.0
  %v3478 = vmin.f32 %v3462, 30.0
  %v3479 = vmin.f32 %v3463, 30.0
  %v3480 = vmin.f32 %v3464, 30.0
  %v3481 = vmin.f32 %v3465, 30.0
  %v3482 = vmul.f32 %v3466, 1.442695
  %v3483 = vpow.pop %v3482
  %v3484 = vmul.f32 %v3467, 1.442695
  %v3485 = vpow.pop %v3484
  %v3486 = vmul.f32 %v3468, 1.442695
  %v3487 = vpow.pop %v3486
  %v3488 = vmul.f32 %v3469, 1.442695
  %v3489 = vpow.pop %v3488
  %v3490 = vmul.f32 %v3470, 1.442695
  %v3491 = vpow.pop %v3490
  %v3492 = vmul.f32 %v3471, 1.442695
  %v3493 = vpow.pop %v3492
  %v3494 = vmul.f32 %v3472, 1.442695
  %v3495 = vpow.pop %v3494
  %v3496 = vmul.f32 %v3473, 1.442695
  %v3497 = vpow.pop %v3496
  %v3498 = vmul.f32 %v3474, 1.442695
  %v3499 = vpow.pop %v3498
  %v3500 = vmul.f32 %v3475, 1.442695
  %v3501 = vpow.pop %v3500
  %v3502 = vmul.f32 %v3476, 1.442695
  %v3503 = vpow.pop %v3502
  %v3504 = vmul.f32 %v3477, 1.442695
  %v3505 = vpow.pop %v3504
  %v3506 = vmul.f32 %v3478, 1.442695
  %v3507 = vpow.pop %v3506
  %v3508 = vmul.f32 %v3479, 1.442695
  %v3509 = vpow.pop %v3508
  %v3510 = vmul.f32 %v3480, 1.442695
  %v3511 = vpow.pop %v3510
  %v3512 = vmul.f32 %v3481, 1.442695
  %v3513 = vpow.pop %v3512
  %v3514 = vadd.f32 %v3483, 1.0
  %v3515 = vadd.f32 %v3485, 1.0
  %v3516 = vadd.f32 %v3487, 1.0
  %v3517 = vadd.f32 %v3489, 1.0
  %v3518 = vadd.f32 %v3491, 1.0
  %v3519 = vadd.f32 %v3493, 1.0
  %v3520 = vadd.f32 %v3495, 1.0
  %v3521 = vadd.f32 %v3497, 1.0
  %v3522 = vadd.f32 %v3499, 1.0
  %v3523 = vadd.f32 %v3501, 1.0
  %v3524 = vadd.f32 %v3503, 1.0
  %v3525 = vadd.f32 %v3505, 1.0
  %v3526 = vadd.f32 %v3507, 1.0
  %v3527 = vadd.f32 %v3509, 1.0
  %v3528 = vadd.f32 %v3511, 1.0
  %v3529 = vadd.f32 %v3513, 1.0
  %v3530 = vrcp.pop %v3514
  %v3531 = vrcp.pop %v3515
  %v3532 = vrcp.pop %v3516
  %v3533 = vrcp.pop %v3517
  %v3534 = vrcp.pop %v3518
  %v3535 = vrcp.pop %v3519
  %v3536 = vrcp.pop %v3520
  %v3537 = vrcp.pop %v3521
  %v3538 = vrcp.pop %v3522
  %v3539 = vrcp.pop %v3523
  %v3540 = vrcp.pop %v3524
  %v3541 = vrcp.pop %v3525
  %v3542 = vrcp.pop %v3526
  %v3543 = vrcp.pop %v3527
  %v3544 = vrcp.pop %v3528
  %v3545 = vrcp.pop %v3529
  %v3546 = vmul.f32 %v3530, %v3324
  %v3547 = vmul.f32 %v3531, %v3327
  %v3548 = vmul.f32 %v3532, %v3332
  %v3549 = vmul.f32 %v3533, %v3335
  %v3550 = vmul.f32 %v3534, %v3340
  %v3551 = vmul.f32 %v3535, %v3343
  %v3552 = vmul.f32 %v3536, %v3348
  %v3553 = vmul.f32 %v3537, %v3351
  %v3554 = vmul.f32 %v3538, %v3356
  %v3555 = vmul.f32 %v3539, %v3359
  %v3556 = vmul.f32 %v3540, %v3364
  %v3557 = vmul.f32 %v3541, %v3367
  %v3558 = vmul.f32 %v3542, %v3372
  %v3559 = vmul.f32 %v3543, %v3375
  %v3560 = vmul.f32 %v3544, %v3380
  %v3561 = vmul.f32 %v3545, %v3383
  %v3562 = vadd.f32 %v3265, %v3546
  %v3563 = vadd.f32 %v3266, %v3547
  %v3564 = vadd.f32 %v3267, %v3548
  %v3565 = vadd.f32 %v3268, %v3549
  %v3566 = vadd.f32 %v3269, %v3550
  %v3567 = vadd.f32 %v3270, %v3551
  %v3568 = vadd.f32 %v3271, %v3552
  %v3569 = vadd.f32 %v3272, %v3553
  %v3570 = vadd.f32 %v3273, %v3554
  %v3571 = vadd.f32 %v3274, %v3555
  %v3572 = vadd.f32 %v3275, %v3556
  %v3573 = vadd.f32 %v3276, %v3557
  %v3574 = vadd.f32 %v3277, %v3558
  %v3575 = vadd.f32 %v3278, %v3559
  %v3576 = vadd.f32 %v3279, %v3560
  %v3577 = vadd.f32 %v3280, %v3561
  %v3578 = vlaneseq
  %v3579 = vand.u32 %v3578, 127
  %vm3580 = vcmp.lt.s32.totalorder %v3579, 10
  %v3581 = vsel %vm3580, %v3562, -1e+30
  %v3582 = vsel %vm3580, %v3563, -1e+30
  %v3583 = vsel %vm3580, %v3564, -1e+30
  %v3584 = vsel %vm3580, %v3565, -1e+30
  %v3585 = vsel %vm3580, %v3566, -1e+30
  %v3586 = vsel %vm3580, %v3567, -1e+30
  %v3587 = vsel %vm3580, %v3568, -1e+30
  %v3588 = vsel %vm3580, %v3569, -1e+30
  %v3589 = vsel %vm3580, %v3570, -1e+30
  %v3590 = vsel %vm3580, %v3571, -1e+30
  %v3591 = vsel %vm3580, %v3572, -1e+30
  %v3592 = vsel %vm3580, %v3573, -1e+30
  %v3593 = vsel %vm3580, %v3574, -1e+30
  %v3594 = vsel %vm3580, %v3575, -1e+30
  %v3595 = vsel %vm3580, %v3576, -1e+30
  %v3596 = vsel %vm3580, %v3577, -1e+30
  %3597 = vmax.xlane.f32.xlu0 %v3581
  %v3598 = vpop.xlane.xlu0 %3597
  %3599 = vmax.xlane.f32.xlu0 %v3582
  %v3600 = vpop.xlane.xlu0 %3599
  %3601 = vmax.xlane.f32.xlu0 %v3583
  %v3602 = vpop.xlane.xlu0 %3601
  %3603 = vmax.xlane.f32.xlu0 %v3584
  %v3604 = vpop.xlane.xlu0 %3603
  %3605 = vmax.xlane.f32.xlu0 %v3585
  %v3606 = vpop.xlane.xlu0 %3605
  %3607 = vmax.xlane.f32.xlu0 %v3586
  %v3608 = vpop.xlane.xlu0 %3607
  %3609 = vmax.xlane.f32.xlu0 %v3587
  %v3610 = vpop.xlane.xlu0 %3609
  %3611 = vmax.xlane.f32.xlu0 %v3588
  %v3612 = vpop.xlane.xlu0 %3611
  %3613 = vmax.xlane.f32.xlu0 %v3589
  %v3614 = vpop.xlane.xlu0 %3613
  %3615 = vmax.xlane.f32.xlu0 %v3590
  %v3616 = vpop.xlane.xlu0 %3615
  %3617 = vmax.xlane.f32.xlu0 %v3591
  %v3618 = vpop.xlane.xlu0 %3617
  %3619 = vmax.xlane.f32.xlu0 %v3592
  %v3620 = vpop.xlane.xlu0 %3619
  %3621 = vmax.xlane.f32.xlu0 %v3593
  %v3622 = vpop.xlane.xlu0 %3621
  %3623 = vmax.xlane.f32.xlu0 %v3594
  %v3624 = vpop.xlane.xlu0 %3623
  %3625 = vmax.xlane.f32.xlu0 %v3595
  %v3626 = vpop.xlane.xlu0 %3625
  %3627 = vmax.xlane.f32.xlu0 %v3596
  %v3628 = vpop.xlane.xlu0 %3627
  %v3629 = vsub.f32 %v3581, %v3598
  %v3630 = vsub.f32 %v3582, %v3600
  %v3631 = vsub.f32 %v3583, %v3602
  %v3632 = vsub.f32 %v3584, %v3604
  %v3633 = vsub.f32 %v3585, %v3606
  %v3634 = vsub.f32 %v3586, %v3608
  %v3635 = vsub.f32 %v3587, %v3610
  %v3636 = vsub.f32 %v3588, %v3612
  %v3637 = vsub.f32 %v3589, %v3614
  %v3638 = vsub.f32 %v3590, %v3616
  %v3639 = vsub.f32 %v3591, %v3618
  %v3640 = vsub.f32 %v3592, %v3620
  %v3641 = vsub.f32 %v3593, %v3622
  %v3642 = vsub.f32 %v3594, %v3624
  %v3643 = vsub.f32 %v3595, %v3626
  %v3644 = vsub.f32 %v3596, %v3628
  %v3645 = vmul.f32 %v3629, 1.442695
  %v3646 = vpow.pop %v3645
  %v3647 = vmul.f32 %v3630, 1.442695
  %v3648 = vpow.pop %v3647
  %v3649 = vmul.f32 %v3631, 1.442695
  %v3650 = vpow.pop %v3649
  %v3651 = vmul.f32 %v3632, 1.442695
  %v3652 = vpow.pop %v3651
  %v3653 = vmul.f32 %v3633, 1.442695
  %v3654 = vpow.pop %v3653
  %v3655 = vmul.f32 %v3634, 1.442695
  %v3656 = vpow.pop %v3655
  %v3657 = vmul.f32 %v3635, 1.442695
  %v3658 = vpow.pop %v3657
  %v3659 = vmul.f32 %v3636, 1.442695
  %v3660 = vpow.pop %v3659
  %v3661 = vmul.f32 %v3637, 1.442695
  %v3662 = vpow.pop %v3661
  %v3663 = vmul.f32 %v3638, 1.442695
  %v3664 = vpow.pop %v3663
  %v3665 = vmul.f32 %v3639, 1.442695
  %v3666 = vpow.pop %v3665
  %v3667 = vmul.f32 %v3640, 1.442695
  %v3668 = vpow.pop %v3667
  %v3669 = vmul.f32 %v3641, 1.442695
  %v3670 = vpow.pop %v3669
  %v3671 = vmul.f32 %v3642, 1.442695
  %v3672 = vpow.pop %v3671
  %v3673 = vmul.f32 %v3643, 1.442695
  %v3674 = vpow.pop %v3673
  %v3675 = vmul.f32 %v3644, 1.442695
  %v3676 = vpow.pop %v3675
  %3677 = vadd.xlane.f32.xlu0 %v3646
  %v3678 = vpop.xlane.xlu0 %3677
  %3679 = vadd.xlane.f32.xlu0 %v3648
  %v3680 = vpop.xlane.xlu0 %3679
  %3681 = vadd.xlane.f32.xlu0 %v3650
  %v3682 = vpop.xlane.xlu0 %3681
  %3683 = vadd.xlane.f32.xlu0 %v3652
  %v3684 = vpop.xlane.xlu0 %3683
  %3685 = vadd.xlane.f32.xlu0 %v3654
  %v3686 = vpop.xlane.xlu0 %3685
  %3687 = vadd.xlane.f32.xlu0 %v3656
  %v3688 = vpop.xlane.xlu0 %3687
  %3689 = vadd.xlane.f32.xlu0 %v3658
  %v3690 = vpop.xlane.xlu0 %3689
  %3691 = vadd.xlane.f32.xlu0 %v3660
  %v3692 = vpop.xlane.xlu0 %3691
  %3693 = vadd.xlane.f32.xlu0 %v3662
  %v3694 = vpop.xlane.xlu0 %3693
  %3695 = vadd.xlane.f32.xlu0 %v3664
  %v3696 = vpop.xlane.xlu0 %3695
  %3697 = vadd.xlane.f32.xlu0 %v3666
  %v3698 = vpop.xlane.xlu0 %3697
  %3699 = vadd.xlane.f32.xlu0 %v3668
  %v3700 = vpop.xlane.xlu0 %3699
  %3701 = vadd.xlane.f32.xlu0 %v3670
  %v3702 = vpop.xlane.xlu0 %3701
  %3703 = vadd.xlane.f32.xlu0 %v3672
  %v3704 = vpop.xlane.xlu0 %3703
  %3705 = vadd.xlane.f32.xlu0 %v3674
  %v3706 = vpop.xlane.xlu0 %3705
  %3707 = vadd.xlane.f32.xlu0 %v3676
  %v3708 = vpop.xlane.xlu0 %3707
  %v3709 = vlog2.pop %v3678
  %v3710 = vmul.f32 %v3709, 0.6931472
  %v3711 = vlog2.pop %v3680
  %v3712 = vmul.f32 %v3711, 0.6931472
  %v3713 = vlog2.pop %v3682
  %v3714 = vmul.f32 %v3713, 0.6931472
  %v3715 = vlog2.pop %v3684
  %v3716 = vmul.f32 %v3715, 0.6931472
  %v3717 = vlog2.pop %v3686
  %v3718 = vmul.f32 %v3717, 0.6931472
  %v3719 = vlog2.pop %v3688
  %v3720 = vmul.f32 %v3719, 0.6931472
  %v3721 = vlog2.pop %v3690
  %v3722 = vmul.f32 %v3721, 0.6931472
  %v3723 = vlog2.pop %v3692
  %v3724 = vmul.f32 %v3723, 0.6931472
  %v3725 = vlog2.pop %v3694
  %v3726 = vmul.f32 %v3725, 0.6931472
  %v3727 = vlog2.pop %v3696
  %v3728 = vmul.f32 %v3727, 0.6931472
  %v3729 = vlog2.pop %v3698
  %v3730 = vmul.f32 %v3729, 0.6931472
  %v3731 = vlog2.pop %v3700
  %v3732 = vmul.f32 %v3731, 0.6931472
  %v3733 = vlog2.pop %v3702
  %v3734 = vmul.f32 %v3733, 0.6931472
  %v3735 = vlog2.pop %v3704
  %v3736 = vmul.f32 %v3735, 0.6931472
  %v3737 = vlog2.pop %v3706
  %v3738 = vmul.f32 %v3737, 0.6931472
  %v3739 = vlog2.pop %v3708
  %v3740 = vmul.f32 %v3739, 0.6931472
  %v3741 = vsub.f32 %v3629, %v3710
  %v3742 = vsub.f32 %v3630, %v3712
  %v3743 = vsub.f32 %v3631, %v3714
  %v3744 = vsub.f32 %v3632, %v3716
  %v3745 = vsub.f32 %v3633, %v3718
  %v3746 = vsub.f32 %v3634, %v3720
  %v3747 = vsub.f32 %v3635, %v3722
  %v3748 = vsub.f32 %v3636, %v3724
  %v3749 = vsub.f32 %v3637, %v3726
  %v3750 = vsub.f32 %v3638, %v3728
  %v3751 = vsub.f32 %v3639, %v3730
  %v3752 = vsub.f32 %v3640, %v3732
  %v3753 = vsub.f32 %v3641, %v3734
  %v3754 = vsub.f32 %v3642, %v3736
  %v3755 = vsub.f32 %v3643, %v3738
  %v3756 = vsub.f32 %v3644, %v3740
  %3757 = vst [vmem:[%s13] sm:$0xff] %v3741
  %3758 = vst [vmem:[%s13 + $0x8] sm:$0xff] %v3742
  %3759 = vst [vmem:[%s13 + $0x10] sm:$0xff] %v3743
  %3760 = vst [vmem:[%s13 + $0x18] sm:$0xff] %v3744
  %3761 = vst [vmem:[%s13 + $0x20] sm:$0xff] %v3745
  %3762 = vst [vmem:[%s13 + $0x28] sm:$0xff] %v3746
  %3763 = vst [vmem:[%s13 + $0x30] sm:$0xff] %v3747
  %3764 = vst [vmem:[%s13 + $0x38] sm:$0xff] %v3748
  %3765 = vst [vmem:[%s13 + $0x40] sm:$0xff] %v3749
  %3766 = vst [vmem:[%s13 + $0x48] sm:$0xff] %v3750
  %3767 = vst [vmem:[%s13 + $0x50] sm:$0xff] %v3751
  %3768 = vst [vmem:[%s13 + $0x58] sm:$0xff] %v3752
  %3769 = vst [vmem:[%s13 + $0x60] sm:$0xff] %v3753
  %3770 = vst [vmem:[%s13 + $0x68] sm:$0xff] %v3754
  %3771 = vst [vmem:[%s13 + $0x70] sm:$0xff] %v3755
  %3772 = vst [vmem:[%s13 + $0x78] sm:$0xff] %v3756
  // Predicated region
  $region54: #{appnp_air_forward.1} parent=0 // pred_check
    _
  $region55: #{appnp_air_forward.1} parent=0 // pred_check_branch
    %3774 = sbr.rel (0) target = $region57
  $region56: #{appnp_air_forward.1} parent=0 // pred_region
    _
  $region57: #{appnp_air_forward.1} parent=0 // pred_fallthru
    _
  // Predicated region
  $region58: #{appnp_air_forward.1} parent=0 // pred_check
    _
  $region59: #{appnp_air_forward.1} parent=0 // pred_check_branch
    %3776 = sbr.rel (0) target = $region61
  $region60: #{appnp_air_forward.1} parent=0 // pred_region
    _
  $region61: #{appnp_air_forward.1} parent=0 // pred_fallthru
    _

</llo_original>
